<compile_context>
chip_gen: v7x
topology: tpu7x:2x2x1
jax: 0.10.0
libtpu: 0.0.40
codegen_flags: <defaults>
</compile_context>

<pallas_src>
import math

import jax
import jax.numpy as jnp
import numpy as np
from jax import lax
from jax.experimental import pallas as pl
from jax.experimental.pallas import tpu as pltpu

_TK = 128      # kv tile (lane width of the scores matmul)
_LANE = 128    # lane width


def _round_up(v, m):
    return (v + m - 1) // m * m


def dynamic_multihead_attention(x, labels, params):
    """x: (N, E) f32, labels: (N,) int, params: PyTorch-style [out,in] weights + biases."""
    n, e = x.shape
    e_pad = _round_up(max(e, _LANE), _LANE)
    scale = 1.0 / math.sqrt(e)          # SDPA scale uses the *real* embed dim

    device_kind = jax.devices()[0].device_kind.lower()
    # v6e/v7x MXU is 2x256^2: 256-row LHS tiles fill it; keep 128 on v5e.
    tq = 128 if "v5" in device_kind else 256

    n_pad = _round_up(max(n, tq), tq)
    nq = n_pad // tq
    nk = n_pad // _TK

    labels = labels.astype(jnp.int32)

    # ---- sort tokens by label so attention becomes block-diagonal (invalid/-1 last) ----
    int_max = jnp.int32(np.iinfo(np.int32).max)
    sort_key = jnp.where(labels == -1, int_max, labels)
    order = jnp.argsort(sort_key)
    inv_order = jnp.argsort(order)
    x_sorted = x[order]
    lab_sorted = labels[order]
    key_sorted = sort_key[order]

    # ---- pad to tile multiples; padded rows act like label -1 (never attend / attended) ----
    x_pad = jnp.zeros((n_pad, e_pad), jnp.float32).at[:n, :e].set(x_sorted)
    lab_pad = jnp.full((n_pad,), -1, jnp.int32).at[:n].set(lab_sorted)
    key_pad = jnp.full((n_pad,), int_max, jnp.int32).at[:n].set(key_sorted)
    valid_pad = lab_pad != -1

    lab_col = lab_pad.reshape(n_pad, 1)          # query-side labels (tiny column)
    lab_row = lab_pad.reshape(1, n_pad)          # key-side labels (lane-dense row)

    # ---- per-block label ranges over *valid* rows only -> KV block range per query block ----
    def blk_range(keys, valid, blk):
        k2 = keys.reshape(-1, blk)
        v2 = valid.reshape(-1, blk)
        bmin = jnp.min(jnp.where(v2, k2, int_max), axis=1)
        bmax = jnp.max(jnp.where(v2, k2, jnp.int32(-2)), axis=1)
        has = jnp.any(v2, axis=1).astype(jnp.int32)
        return bmin, bmax, has

    q_min, q_max, q_has = blk_range(key_pad, valid_pad, tq)
    k_min, k_max, _ = blk_range(key_pad, valid_pad, _TK)

    overlap = (k_min[None, :] <= q_max[:, None]) & (k_max[None, :] >= q_min[:, None])
    kidx = jnp.arange(nk, dtype=jnp.int32)
    kv_lo = jnp.min(jnp.where(overlap, kidx[None, :], jnp.int32(nk)), axis=1).astype(jnp.int32)
    kv_hi = jnp.max(jnp.where(overlap, kidx[None, :], jnp.int32(-1)), axis=1).astype(jnp.int32)

    # KV grid length = max span over query tiles.  Needs a concrete Python int (the wrapper
    # runs eagerly here); fall back to nk if the wrapper is ever traced under jit.
    span = jnp.maximum(kv_hi - kv_lo + 1, 1)
    try:
        span_max = max(int(jnp.max(span)), 1)
    except Exception:  # ConcretizationTypeError under jit -> correct but un-pruned grid
        span_max = nk
    span_max = min(span_max, nk)

    # ---- weights: [out,in] -> padded [in,out]; precompute Q/K/V with plain XLA matmuls ----
    def pad_w(w):
        return jnp.zeros((e_pad, e_pad), jnp.float32).at[:e, :e].set(w.T)

    def pad_b(b):
        return jnp.zeros((1, e_pad), jnp.float32).at[0, :e].set(b)

    # Scale folded into Q on the host (review: removes a per-step (TQ,TK) vmul).
    q_bf = ((x_pad @ pad_w(params["wq"]) + pad_b(params["bq"])) * scale).astype(jnp.bfloat16)
    k_bf = (x_pad @ pad_w(params["wk"]) + pad_b(params["bk"])).astype(jnp.bfloat16)
    v_bf = (x_pad @ pad_w(params["wv"]) + pad_b(params["bv"])).astype(jnp.bfloat16)
    wo_bf = pad_w(params["wo"]).astype(jnp.bfloat16)
    bo = pad_b(params["bo"])

    # ---------------------------------- kernel ----------------------------------
    def kernel(kv_lo_ref, kv_hi_ref, q_has_ref,                 # scalar prefetch (SMEM)
               q_ref, k_ref, v_ref, labq_ref, labk_ref, wo_ref, bo_ref,
               out_ref,
               m_sc, l_sc, acc_sc):
        qi = pl.program_id(0)
        ki = pl.program_id(1)
        last = pl.num_programs(1) - 1
        has_valid = q_has_ref[qi] > 0

        @pl.when(ki == 0)
        def _init():
            m_sc[...] = jnp.full(m_sc.shape, -jnp.inf, jnp.float32)
            l_sc[...] = jnp.zeros(l_sc.shape, jnp.float32)
            acc_sc[...] = jnp.zeros(acc_sc.shape, jnp.float32)

        in_range = jnp.logical_and(has_valid, ki <= kv_hi_ref[qi] - kv_lo_ref[qi])

        @pl.when(in_range)
        def _compute():
            # Scores: contract the last dims of q and k directly (no k.T relayout).
            s = lax.dot_general(q_ref[...], k_ref[...], (((1,), (1,)), ((), ())),
                                preferred_element_type=jnp.float32)

            lab_q = labq_ref[...]                 # (TQ, 1)
            lab_k = labk_ref[...]                 # (1, TK)
            mask = jnp.logical_and(lab_q == lab_k, lab_q != -1)
            # -1e30 sentinel is safe: every valid row always visits its own block (self
            # match), so bogus exp(0)=1 rows from fully-masked tiles are flushed by
            # alpha=0 or contribute exp(-1e30 - m)=0.
            s = jnp.where(mask, s, jnp.float32(-1e30))

            # Online softmax (f32).
            m_prev = m_sc[...]
            m_new = jnp.maximum(m_prev, jnp.max(s, axis=-1, keepdims=True))
            alpha = jnp.exp(m_prev - m_new)
            p = jnp.exp(s - m_new)
            l_sc[...] = alpha * l_sc[...] + jnp.sum(p, axis=-1, keepdims=True)
            acc_sc[...] = alpha * acc_sc[...] + jnp.dot(
                p.astype(jnp.bfloat16), v_ref[...], preferred_element_type=jnp.float32)
            m_sc[...] = m_new

        @pl.when(jnp.logical_and(ki == last, has_valid))
        def _finalize():
            row_valid = labq_ref[...] != -1                       # (TQ, 1)
            attn = acc_sc[...] * pl.reciprocal(l_sc[...], approx=True)
            attn = jnp.where(row_valid, attn, jnp.float32(0.0))   # -1 rows stay zero
            out_ref[...] = jnp.dot(attn.astype(jnp.bfloat16), wo_ref[...],
                                   preferred_element_type=jnp.float32) + bo_ref[...]

        @pl.when(jnp.logical_and(ki == last, jnp.logical_not(has_valid)))
        def _finalize_bias():
            # Fully invalid / padded query tile: zeros through out_proj == bias only.
            out_ref[...] = jnp.broadcast_to(bo_ref[...], (tq, e_pad))

    # ---------------------------------- specs ----------------------------------
    def q_map(qi, ki, lo, hi, has):
        return (qi, 0)

    def kv_block(qi, ki, lo, hi):
        # In-range steps walk lo..hi; trailing steps clamp to hi (DMA dedups with the last
        # real fetch); invalid tiles (lo=nk, hi=-1) clamp to block 0.
        return jnp.minimum(lo[qi] + ki, jnp.maximum(hi[qi], 0))

    def kv_map(qi, ki, lo, hi, has):
        return (kv_block(qi, ki, lo, hi), 0)

    def labk_map(qi, ki, lo, hi, has):
        return (0, kv_block(qi, ki, lo, hi))

    def const_map(qi, ki, lo, hi, has):
        return (0, 0)

    grid_spec = pltpu.PrefetchScalarGridSpec(
        num_scalar_prefetch=3,
        grid=(nq, span_max),
        in_specs=[
            pl.BlockSpec((tq, e_pad), q_map),             # q (bf16, pre-projected & scaled)
            pl.BlockSpec((_TK, e_pad), kv_map),           # k (bf16, pre-projected)
            pl.BlockSpec((_TK, e_pad), kv_map),           # v (bf16, pre-projected)
            pl.BlockSpec((tq, 1), q_map),                 # labels (query column)
            pl.BlockSpec((1, _TK), labk_map),             # labels (key row, lane-dense)
            pl.BlockSpec((e_pad, e_pad), const_map),      # wo
            pl.BlockSpec((1, e_pad), const_map),          # bo
        ],
        out_specs=pl.BlockSpec((tq, e_pad), q_map),       # resident across the KV axis
        scratch_shapes=[
            pltpu.VMEM((tq, 1), jnp.float32),             # running max
            pltpu.VMEM((tq, 1), jnp.float32),             # running denom
            pltpu.VMEM((tq, e_pad), jnp.float32),         # accumulator
        ],
    )

    # Query tiles are fully independent: shard them across the two TensorCores on v7x.
    q_sem = pltpu.PARALLEL
    if "v7" in device_kind and nq >= 2:
        q_sem = getattr(pltpu, "CORE_PARALLEL", pltpu.PARALLEL)

    out_pad = pl.pallas_call(
        kernel,
        out_shape=jax.ShapeDtypeStruct((n_pad, e_pad), jnp.float32),
        grid_spec=grid_spec,
        compiler_params=pltpu.CompilerParams(
            dimension_semantics=(q_sem, pltpu.ARBITRARY),
            vmem_limit_bytes=32 * 1024 * 1024,
        ),
    )(kv_lo, kv_hi, q_has, q_bf, k_bf, v_bf, lab_col, lab_row, wo_bf, bo)

    # Undo the label sort and strip padding.
    return out_pad[inv_order, :e]


def _init_linear(key, embed_dim):
    """Deterministic init mimicking nn.Linear default (uniform +-1/sqrt(fan_in))."""
    kw, kb = jax.random.split(key)
    bound = 1.0 / math.sqrt(embed_dim)
    w = jax.random.uniform(kw, (embed_dim, embed_dim), jnp.float32, -bound, bound)
    b = jax.random.uniform(kb, (embed_dim,), jnp.float32, -bound, bound)
    return w, b


def _reference_numpy(x, labels, params):
    """Pure-numpy replica of the PyTorch forward (group loop)."""
    x = np.asarray(x, np.float32)
    labels = np.asarray(labels)
    e = x.shape[-1]
    wq, bq = np.asarray(params["wq"]), np.asarray(params["bq"])
    wk, bk = np.asarray(params["wk"]), np.asarray(params["bk"])
    wv, bv = np.asarray(params["wv"]), np.asarray(params["bv"])
    wo, bo = np.asarray(params["wo"]), np.asarray(params["bo"])

    outputs = np.zeros_like(x)
    for label in np.unique(labels[labels != -1]):
        m = labels == label
        g = x[m]
        q = g @ wq.T + bq
        k = g @ wk.T + bk
        v = g @ wv.T + bv
        s = q @ k.T / math.sqrt(e)
        s = s - s.max(axis=-1, keepdims=True)
        p = np.exp(s)
        p = p / p.sum(axis=-1, keepdims=True)
        outputs[m] = p @ v
    return outputs @ wo.T + bo


if __name__ == "__main__":
    E = 32
    key = jax.random.PRNGKey(0)
    kx, kq, kk, kv, ko, kx2, kl2 = jax.random.split(key, 7)

    wq, bq = _init_linear(kq, E)
    wk, bk = _init_linear(kk, E)
    wv, bv = _init_linear(kv, E)
    wo, bo = _init_linear(ko, E)
    params = {"wq": wq, "bq": bq, "wk": wk, "bk": bk,
              "wv": wv, "bv": bv, "wo": wo, "bo": bo}

    # Test 1: tiny case (seq=8, hidden=32), single tile.
    x1 = jax.random.normal(kx, (8, E), jnp.float32)
    labels1 = jnp.array([0, 0, 1, 1, -1, 2, 2, 0], dtype=jnp.int32)
    out1 = jax.block_until_ready(dynamic_multihead_attention(x1, labels1, params))
    ref1 = _reference_numpy(x1, labels1, params)
    np.testing.assert_allclose(np.asarray(out1), ref1, rtol=5e-2, atol=5e-2)

    # Test 2: exercises the multi-tile online-softmax / span-pruned grid path.
    x2 = jax.random.normal(kx2, (300, E), jnp.float32)
    labels2 = jax.random.randint(kl2, (300,), -1, 5).astype(jnp.int32)
    out2 = jax.block_until_ready(dynamic_multihead_attention(x2, labels2, params))
    ref2 = _reference_numpy(x2, labels2, params)
    np.testing.assert_allclose(np.asarray(out2), ref2, rtol=5e-2, atol=5e-2)

    print("KERNEL_OK")
</pallas_src>

<mosaic_0001>
module attributes {stable_mosaic.version = 11 : i64} {
  func.func @kernel(%arg0: i32, %arg1: i32, %arg2: memref<1xi32, #tpu.memory_space<smem>>, %arg3: memref<1xi32, #tpu.memory_space<smem>>, %arg4: memref<1xi32, #tpu.memory_space<smem>>, %arg5: memref<256x128xbf16, #tpu.memory_space<vmem>>, %arg6: memref<128x128xbf16, #tpu.memory_space<vmem>>, %arg7: memref<128x128xbf16, #tpu.memory_space<vmem>>, %arg8: memref<256x1xi32, #tpu.memory_space<vmem>>, %arg9: memref<1x128xi32, #tpu.memory_space<vmem>>, %arg10: memref<128x128xbf16, #tpu.memory_space<vmem>>, %arg11: memref<1x128xf32, #tpu.memory_space<vmem>>, %arg12: memref<256x128xf32, #tpu.memory_space<vmem>>, %arg13: memref<256x1xf32, #tpu.memory_space<vmem>>, %arg14: memref<256x1xf32, #tpu.memory_space<vmem>>, %arg15: memref<256x128xf32, #tpu.memory_space<vmem>>) attributes {dimension_semantics = [#tpu.dimension_semantics<parallel>, #tpu.dimension_semantics<arbitrary>], iteration_bounds = array<i64: 1, 1>, scalar_prefetch = 3 : i64, scratch_operands = 3 : i64, tpu.core_type = #tpu.core_type<tc>, window_params = [{transform_indices = @transform_0, window_bounds = array<i64: 256, 128>}, {transform_indices = @transform_1, window_bounds = array<i64: 128, 128>}, {transform_indices = @transform_2, window_bounds = array<i64: 128, 128>}, {transform_indices = @transform_3, window_bounds = array<i64: 256, 1>}, {transform_indices = @transform_4, window_bounds = array<i64: 1, 128>}, {pipeline_mode = #tpu.pipeline_mode<synchronous>, transform_indices = @transform_5, window_bounds = array<i64: 128, 128>}, {pipeline_mode = #tpu.pipeline_mode<synchronous>, transform_indices = @transform_6, window_bounds = array<i64: 1, 128>}, {transform_indices = @transform_7, window_bounds = array<i64: 256, 128>}]} {
    %0 = arith.index_cast %arg0 : i32 to index
    %1 = memref.load %arg4[%0] : memref<1xi32, #tpu.memory_space<smem>>
    %c0_i32 = arith.constant 0 : i32
    %2 = arith.cmpi sgt, %1, %c0_i32 : i32
    %c0_i32_0 = arith.constant 0 : i32
    %3 = arith.cmpi eq, %arg1, %c0_i32_0 : i32
    %4 = arith.extui %3 : i1 to i32
    %c0_i32_1 = arith.constant 0 : i32
    %5 = arith.cmpi ne, %4, %c0_i32_1 : i32
    scf.if %5 {
      %cst = arith.constant 0xFF800000 : f32
      %24 = vector.broadcast %cst : f32 to vector<256x1xf32>
      %c0 = arith.constant 0 : index
      %c0_7 = arith.constant 0 : index
      %25 = vector.load %arg13[%c0, %c0_7] : memref<256x1xf32, #tpu.memory_space<vmem>>, vector<256x1xf32>
      tpu.vector_store %arg13[%c0, %c0_7], %24 {strides = array<i32>} : memref<256x1xf32, #tpu.memory_space<vmem>>, vector<256x1xf32>,
      %cst_8 = arith.constant 0.000000e+00 : f32
      %26 = vector.broadcast %cst_8 : f32 to vector<256x1xf32>
      %c0_9 = arith.constant 0 : index
      %c0_10 = arith.constant 0 : index
      %27 = vector.load %arg14[%c0_9, %c0_10] : memref<256x1xf32, #tpu.memory_space<vmem>>, vector<256x1xf32>
      tpu.vector_store %arg14[%c0_9, %c0_10], %26 {strides = array<i32>} : memref<256x1xf32, #tpu.memory_space<vmem>>, vector<256x1xf32>,
      %cst_11 = arith.constant 0.000000e+00 : f32
      %28 = vector.broadcast %cst_11 : f32 to vector<256x128xf32>
      %c0_12 = arith.constant 0 : index
      %c0_13 = arith.constant 0 : index
      %29 = vector.load %arg15[%c0_12, %c0_13] : memref<256x128xf32, #tpu.memory_space<vmem>>, vector<256x128xf32>
      tpu.vector_store %arg15[%c0_12, %c0_13], %28 {strides = array<i32>} : memref<256x128xf32, #tpu.memory_space<vmem>>, vector<256x128xf32>,
    } else {
    }
    %6 = arith.index_cast %arg0 : i32 to index
    %7 = memref.load %arg3[%6] : memref<1xi32, #tpu.memory_space<smem>>
    %8 = arith.index_cast %arg0 : i32 to index
    %9 = memref.load %arg2[%8] : memref<1xi32, #tpu.memory_space<smem>>
    %10 = arith.subi %7, %9 : i32
    %11 = arith.cmpi sle, %arg1, %10 : i32
    %12 = arith.andi %2, %11 : i1
    %13 = arith.extui %12 : i1 to i32
    %c0_i32_2 = arith.constant 0 : i32
    %14 = arith.cmpi ne, %13, %c0_i32_2 : i32
    scf.if %14 {
      %c0 = arith.constant 0 : index
      %c0_7 = arith.constant 0 : index
      %24 = vector.load %arg5[%c0, %c0_7] : memref<256x128xbf16, #tpu.memory_space<vmem>>, vector<256x128xbf16>
      %c0_8 = arith.constant 0 : index
      %c0_9 = arith.constant 0 : index
      %25 = vector.load %arg6[%c0_8, %c0_9] : memref<128x128xbf16, #tpu.memory_space<vmem>>, vector<128x128xbf16>
      %cst = arith.constant dense<0.000000e+00> : vector<256x128xf32>
      %26 = tpu.matmul %24, %25, %cst {dimension_numbers = #tpu.dot_dimension_numbers<[1], [1], [0], [0], [0, 0, 1, 0], [], []>} : vector<256x128xbf16>, vector<128x128xbf16>, vector<256x128xf32> -> vector<256x128xf32>
      %c0_10 = arith.constant 0 : index
      %c0_11 = arith.constant 0 : index
      %27 = vector.load %arg8[%c0_10, %c0_11] : memref<256x1xi32, #tpu.memory_space<vmem>>, vector<256x1xi32>
      %c0_12 = arith.constant 0 : index
      %c0_13 = arith.constant 0 : index
      %28 = vector.load %arg9[%c0_12, %c0_13] : memref<1x128xi32, #tpu.memory_space<vmem>>, vector<1x128xi32>
      %29 = vector.broadcast %27 : vector<256x1xi32> to vector<256x128xi32>
      %30 = vector.broadcast %28 : vector<1x128xi32> to vector<256x128xi32>
      %31 = arith.cmpi eq, %29, %30 : vector<256x128xi32>
      %c-1_i32 = arith.constant -1 : i32
      %32 = vector.broadcast %c-1_i32 : i32 to vector<256x1xi32>
      %33 = arith.cmpi ne, %27, %32 : vector<256x1xi32>
      %34 = vector.broadcast %33 : vector<256x1xi1> to vector<256x128xi1>
      %35 = arith.andi %31, %34 : vector<256x128xi1>
      %cst_14 = arith.constant -1.000000e+30 : f32
      %36 = vector.broadcast %cst_14 : f32 to vector<256x128xf32>
      %37 = arith.select %35, %26, %36 : vector<256x128xi1>, vector<256x128xf32>
      %c0_15 = arith.constant 0 : index
      %c0_16 = arith.constant 0 : index
      %38 = vector.load %arg13[%c0_15, %c0_16] : memref<256x1xf32, #tpu.memory_space<vmem>>, vector<256x1xf32>
      %cst_17 = arith.constant dense<0xFF800000> : vector<256xf32>
      %39 = vector.multi_reduction <maximumf>, %37, %cst_17 [1] : vector<256x128xf32> to vector<256xf32>
      %40 = vector.shape_cast %39 : vector<256xf32> to vector<256x1xf32>
      %41 = arith.maximumf %38, %40 : vector<256x1xf32>
      %42 = arith.subf %38, %41 : vector<256x1xf32>
      %43 = math.exp %42 : vector<256x1xf32>
      %44 = vector.broadcast %41 : vector<256x1xf32> to vector<256x128xf32>
      %45 = arith.subf %37, %44 : vector<256x128xf32>
      %46 = math.exp %45 : vector<256x128xf32>
      %c0_18 = arith.constant 0 : index
      %c0_19 = arith.constant 0 : index
      %47 = vector.load %arg14[%c0_18, %c0_19] : memref<256x1xf32, #tpu.memory_space<vmem>>, vector<256x1xf32>
      %48 = arith.mulf %43, %47 : vector<256x1xf32>
      %cst_20 = arith.constant dense<0.000000e+00> : vector<256xf32>
      %49 = vector.multi_reduction <add>, %46, %cst_20 [1] : vector<256x128xf32> to vector<256xf32>
      %50 = vector.shape_cast %49 : vector<256xf32> to vector<256x1xf32>
      %51 = arith.addf %48, %50 : vector<256x1xf32>
      %c0_21 = arith.constant 0 : index
      %c0_22 = arith.constant 0 : index
      %52 = vector.load %arg14[%c0_21, %c0_22] : memref<256x1xf32, #tpu.memory_space<vmem>>, vector<256x1xf32>
      tpu.vector_store %arg14[%c0_21, %c0_22], %51 {strides = array<i32>} : memref<256x1xf32, #tpu.memory_space<vmem>>, vector<256x1xf32>,
      %c0_23 = arith.constant 0 : index
      %c0_24 = arith.constant 0 : index
      %53 = vector.load %arg15[%c0_23, %c0_24] : memref<256x128xf32, #tpu.memory_space<vmem>>, vector<256x128xf32>
      %54 = vector.broadcast %43 : vector<256x1xf32> to vector<256x128xf32>
      %55 = arith.mulf %54, %53 : vector<256x128xf32>
      %56 = arith.truncf %46 : vector<256x128xf32> to vector<256x128xbf16>
      %c0_25 = arith.constant 0 : index
      %c0_26 = arith.constant 0 : index
      %57 = vector.load %arg7[%c0_25, %c0_26] : memref<128x128xbf16, #tpu.memory_space<vmem>>, vector<128x128xbf16>
      %cst_27 = arith.constant dense<0.000000e+00> : vector<256x128xf32>
      %58 = tpu.matmul %56, %57, %cst_27 {dimension_numbers = #tpu.dot_dimension_numbers<[1], [0], [0], [1], [0, 0, 1, 1], [], []>} : vector<256x128xbf16>, vector<128x128xbf16>, vector<256x128xf32> -> vector<256x128xf32>
      %59 = arith.addf %55, %58 : vector<256x128xf32>
      %c0_28 = arith.constant 0 : index
      %c0_29 = arith.constant 0 : index
      %60 = vector.load %arg15[%c0_28, %c0_29] : memref<256x128xf32, #tpu.memory_space<vmem>>, vector<256x128xf32>
      tpu.vector_store %arg15[%c0_28, %c0_29], %59 {strides = array<i32>} : memref<256x128xf32, #tpu.memory_space<vmem>>, vector<256x128xf32>,
      %c0_30 = arith.constant 0 : index
      %c0_31 = arith.constant 0 : index
      %61 = vector.load %arg13[%c0_30, %c0_31] : memref<256x1xf32, #tpu.memory_space<vmem>>, vector<256x1xf32>
      tpu.vector_store %arg13[%c0_30, %c0_31], %41 {strides = array<i32>} : memref<256x1xf32, #tpu.memory_space<vmem>>, vector<256x1xf32>,
    } else {
    }
    %c0_i32_3 = arith.constant 0 : i32
    %15 = arith.cmpi eq, %arg1, %c0_i32_3 : i32
    %16 = arith.andi %15, %2 : i1
    %17 = arith.extui %16 : i1 to i32
    %c0_i32_4 = arith.constant 0 : i32
    %18 = arith.cmpi ne, %17, %c0_i32_4 : i32
    scf.if %18 {
      %c0 = arith.constant 0 : index
      %c0_7 = arith.constant 0 : index
      %24 = vector.load %arg8[%c0, %c0_7] : memref<256x1xi32, #tpu.memory_space<vmem>>, vector<256x1xi32>
      %c-1_i32 = arith.constant -1 : i32
      %25 = vector.broadcast %c-1_i32 : i32 to vector<256x1xi32>
      %26 = arith.cmpi ne, %24, %25 : vector<256x1xi32>
      %c0_8 = arith.constant 0 : index
      %c0_9 = arith.constant 0 : index
      %27 = vector.load %arg15[%c0_8, %c0_9] : memref<256x128xf32, #tpu.memory_space<vmem>>, vector<256x128xf32>
      %c0_10 = arith.constant 0 : index
      %c0_11 = arith.constant 0 : index
      %28 = vector.load %arg14[%c0_10, %c0_11] : memref<256x1xf32, #tpu.memory_space<vmem>>, vector<256x1xf32>
      %29 = tpu.reciprocal %28 {approx = true} : vector<256x1xf32> -> vector<256x1xf32>
      %30 = vector.broadcast %29 : vector<256x1xf32> to vector<256x128xf32>
      %31 = arith.mulf %27, %30 : vector<256x128xf32>
      %cst = arith.constant 0.000000e+00 : f32
      %32 = vector.shape_cast %26 : vector<256x1xi1> to vector<256x1xi1>
      %33 = vector.broadcast %32 : vector<256x1xi1> to vector<256x128xi1>
      %34 = vector.broadcast %cst : f32 to vector<256x128xf32>
      %35 = arith.select %33, %31, %34 : vector<256x128xi1>, vector<256x128xf32>
      %36 = arith.truncf %35 : vector<256x128xf32> to vector<256x128xbf16>
      %c0_12 = arith.constant 0 : index
      %c0_13 = arith.constant 0 : index
      %37 = vector.load %arg10[%c0_12, %c0_13] : memref<128x128xbf16, #tpu.memory_space<vmem>>, vector<128x128xbf16>
      %cst_14 = arith.constant dense<0.000000e+00> : vector<256x128xf32>
      %38 = tpu.matmul %36, %37, %cst_14 {dimension_numbers = #tpu.dot_dimension_numbers<[1], [0], [0], [1], [0, 0, 1, 1], [], []>} : vector<256x128xbf16>, vector<128x128xbf16>, vector<256x128xf32> -> vector<256x128xf32>
      %c0_15 = arith.constant 0 : index
      %c0_16 = arith.constant 0 : index
      %39 = vector.load %arg11[%c0_15, %c0_16] : memref<1x128xf32, #tpu.memory_space<vmem>>, vector<1x128xf32>
      %40 = vector.broadcast %39 : vector<1x128xf32> to vector<256x128xf32>
      %41 = arith.addf %38, %40 : vector<256x128xf32>
      %c0_17 = arith.constant 0 : index
      %c0_18 = arith.constant 0 : index
      %42 = vector.load %arg12[%c0_17, %c0_18] : memref<256x128xf32, #tpu.memory_space<vmem>>, vector<256x128xf32>
      tpu.vector_store %arg12[%c0_17, %c0_18], %41 {strides = array<i32>} : memref<256x128xf32, #tpu.memory_space<vmem>>, vector<256x128xf32>,
    } else {
    }
    %c0_i32_5 = arith.constant 0 : i32
    %19 = arith.cmpi eq, %arg1, %c0_i32_5 : i32
    %true = arith.constant true
    %20 = arith.xori %2, %true : i1
    %21 = arith.andi %19, %20 : i1
    %22 = arith.extui %21 : i1 to i32
    %c0_i32_6 = arith.constant 0 : i32
    %23 = arith.cmpi ne, %22, %c0_i32_6 : i32
    scf.if %23 {
      %c0 = arith.constant 0 : index
      %c0_7 = arith.constant 0 : index
      %24 = vector.load %arg11[%c0, %c0_7] : memref<1x128xf32, #tpu.memory_space<vmem>>, vector<1x128xf32>
      %25 = vector.shape_cast %24 : vector<1x128xf32> to vector<1x128xf32>
      %26 = vector.broadcast %25 : vector<1x128xf32> to vector<256x128xf32>
      %c0_8 = arith.constant 0 : index
      %c0_9 = arith.constant 0 : index
      %27 = vector.load %arg12[%c0_8, %c0_9] : memref<256x128xf32, #tpu.memory_space<vmem>>, vector<256x128xf32>
      tpu.vector_store %arg12[%c0_8, %c0_9], %26 {strides = array<i32>} : memref<256x128xf32, #tpu.memory_space<vmem>>, vector<256x128xf32>,
    } else {
    }
    return
  }
  func.func @transform_0(%arg0: i32, %arg1: i32, %arg2: memref<1xi32, #tpu.memory_space<smem>>, %arg3: memref<1xi32, #tpu.memory_space<smem>>, %arg4: memref<1xi32, #tpu.memory_space<smem>>) -> (i32, i32) {
    %c0_i32 = arith.constant 0 : i32
    %c0_i32_0 = arith.constant 0 : i32
    return %arg0, %c0_i32 : i32, i32
  }
  func.func @transform_1(%arg0: i32, %arg1: i32, %arg2: memref<1xi32, #tpu.memory_space<smem>>, %arg3: memref<1xi32, #tpu.memory_space<smem>>, %arg4: memref<1xi32, #tpu.memory_space<smem>>) -> (i32, i32) {
    %0 = arith.index_cast %arg0 : i32 to index
    %1 = memref.load %arg2[%0] : memref<1xi32, #tpu.memory_space<smem>>
    %2 = arith.addi %1, %arg1 : i32
    %3 = arith.index_cast %arg0 : i32 to index
    %4 = memref.load %arg3[%3] : memref<1xi32, #tpu.memory_space<smem>>
    %c0_i32 = arith.constant 0 : i32
    %5 = arith.maxsi %4, %c0_i32 : i32
    %6 = arith.minsi %2, %5 : i32
    %c0_i32_0 = arith.constant 0 : i32
    %c0_i32_1 = arith.constant 0 : i32
    return %6, %c0_i32_0 : i32, i32
  }
  func.func @transform_2(%arg0: i32, %arg1: i32, %arg2: memref<1xi32, #tpu.memory_space<smem>>, %arg3: memref<1xi32, #tpu.memory_space<smem>>, %arg4: memref<1xi32, #tpu.memory_space<smem>>) -> (i32, i32) {
    %0 = arith.index_cast %arg0 : i32 to index
    %1 = memref.load %arg2[%0] : memref<1xi32, #tpu.memory_space<smem>>
    %2 = arith.addi %1, %arg1 : i32
    %3 = arith.index_cast %arg0 : i32 to index
    %4 = memref.load %arg3[%3] : memref<1xi32, #tpu.memory_space<smem>>
    %c0_i32 = arith.constant 0 : i32
    %5 = arith.maxsi %4, %c0_i32 : i32
    %6 = arith.minsi %2, %5 : i32
    %c0_i32_0 = arith.constant 0 : i32
    %c0_i32_1 = arith.constant 0 : i32
    return %6, %c0_i32_0 : i32, i32
  }
  func.func @transform_3(%arg0: i32, %arg1: i32, %arg2: memref<1xi32, #tpu.memory_space<smem>>, %arg3: memref<1xi32, #tpu.memory_space<smem>>, %arg4: memref<1xi32, #tpu.memory_space<smem>>) -> (i32, i32) {
    %c0_i32 = arith.constant 0 : i32
    %c0_i32_0 = arith.constant 0 : i32
    return %arg0, %c0_i32 : i32, i32
  }
  func.func @transform_4(%arg0: i32, %arg1: i32, %arg2: memref<1xi32, #tpu.memory_space<smem>>, %arg3: memref<1xi32, #tpu.memory_space<smem>>, %arg4: memref<1xi32, #tpu.memory_space<smem>>) -> (i32, i32) {
    %0 = arith.index_cast %arg0 : i32 to index
    %1 = memref.load %arg2[%0] : memref<1xi32, #tpu.memory_space<smem>>
    %2 = arith.addi %1, %arg1 : i32
    %3 = arith.index_cast %arg0 : i32 to index
    %4 = memref.load %arg3[%3] : memref<1xi32, #tpu.memory_space<smem>>
    %c0_i32 = arith.constant 0 : i32
    %5 = arith.maxsi %4, %c0_i32 : i32
    %6 = arith.minsi %2, %5 : i32
    %c0_i32_0 = arith.constant 0 : i32
    %c0_i32_1 = arith.constant 0 : i32
    return %c0_i32_0, %6 : i32, i32
  }
  func.func @transform_5(%arg0: i32, %arg1: i32, %arg2: memref<1xi32, #tpu.memory_space<smem>>, %arg3: memref<1xi32, #tpu.memory_space<smem>>, %arg4: memref<1xi32, #tpu.memory_space<smem>>) -> (i32, i32) {
    %c0_i32 = arith.constant 0 : i32
    %c0_i32_0 = arith.constant 0 : i32
    %c0_i32_1 = arith.constant 0 : i32
    return %c0_i32, %c0_i32_0 : i32, i32
  }
  func.func @transform_6(%arg0: i32, %arg1: i32, %arg2: memref<1xi32, #tpu.memory_space<smem>>, %arg3: memref<1xi32, #tpu.memory_space<smem>>, %arg4: memref<1xi32, #tpu.memory_space<smem>>) -> (i32, i32) {
    %c0_i32 = arith.constant 0 : i32
    %c0_i32_0 = arith.constant 0 : i32
    %c0_i32_1 = arith.constant 0 : i32
    return %c0_i32, %c0_i32_0 : i32, i32
  }
  func.func @transform_7(%arg0: i32, %arg1: i32, %arg2: memref<1xi32, #tpu.memory_space<smem>>, %arg3: memref<1xi32, #tpu.memory_space<smem>>, %arg4: memref<1xi32, #tpu.memory_space<smem>>) -> (i32, i32) {
    %c0_i32 = arith.constant 0 : i32
    %c0_i32_0 = arith.constant 0 : i32
    return %arg0, %c0_i32 : i32, i32
  }
}

</mosaic_0001>

<llo_original>
// kernel: tpu_custom_call.1
$region0: #{tpu_custom_call.1}
  #allocation0 [shape = 'u32[]', space=smem, size = 0x4, offset = 0x4, fixed_abs, tag = 'smem constant byte address 0x4 - core index']
  #allocation1 [shape = 'u32[144,128]{1,0:T(1,128)}', space=vmem, size = 0x12000, scoped, tag = 'internal scratch']
  #allocation2 [shape = 'f32[256,1]{1,0:T(8,128)}', space=vmem, size = 0x20000, scoped, tag = 'scratch operand']
  #allocation3 [shape = 'f32[256,1]{1,0:T(8,128)}', space=vmem, size = 0x20000, scoped, tag = 'scratch operand']
  #allocation4 [shape = 'f32[256,128]{1,0:T(8,128)}', space=vmem, size = 0x20000, scoped, tag = 'scratch operand']
  #allocation5 [shape = 's32[1]{0}', space=sflag, size = 0x4, scoped, tag = 'scoped memory for tpu_custom_call.1']
  #allocation6 [shape = 's32[1]{0:T(128)S(6)}', space=smem, size = 0x200, scoped, tag = 'prefetched SMEM operand 0']
  #allocation7 [shape = 's32[1]{0:T(128)S(6)}', space=smem, size = 0x200, scoped, tag = 'prefetched SMEM operand 1']
  #allocation8 [shape = 's32[1]{0:T(128)S(6)}', space=smem, size = 0x200, scoped, tag = 'prefetched SMEM operand 2']
  %s0 = inlined_call_operand.<no memory space> [shape: s32[1], index: 0, kind: input, shape index: {}]
  %s1 = inlined_call_operand.<no memory space> [shape: s32[1], index: 1, kind: input, shape index: {}]
  %s2 = inlined_call_operand.<no memory space> [shape: s32[1], index: 2, kind: input, shape index: {}]
  %s3 = inlined_call_operand.vmem [shape: bf16[256,128], index: 3, kind: input, shape index: {}]
  %s4 = inlined_call_operand.vmem [shape: bf16[256,128], index: 4, kind: input, shape index: {}]
  %s5 = inlined_call_operand.hbm [shape: bf16[256,128], index: 5, kind: input, shape index: {}]
  %s6 = inlined_call_operand.vmem [shape: s32[256,1], index: 6, kind: input, shape index: {}]
  %s7 = inlined_call_operand.vmem [shape: s32[1,256], index: 7, kind: input, shape index: {}]
  %s8 = inlined_call_operand.hbm [shape: bf16[128,128], index: 8, kind: input, shape index: {}]
  %s9 = inlined_call_operand.vmem [shape: f32[1,128], index: 9, kind: input, shape index: {}]
  %s10 = inlined_call_operand.hbm [shape: f32[256,128], index: 10, kind: output, shape index: {}]
  %s11 = sld [smem:[#allocation0]]
  $region62: #{tpu_custom_call.1} parent=0
    _
  %s13 = ssub.s32 1, %s11
  %s14 = scalar_select 0, %s13, %s11
  %15 = sst [smem:[#allocation6]] %s0
  %16 = sst [smem:[#allocation7]] %s1
  %17 = sst [smem:[#allocation8]] %s2
  $region1: #{tpu_custom_call.1} parent=0
    #allocation9 [shape = 'u8[32768]{0}', space=vmem, size = 0x8000, scoped, tag = 'input window, operand 5, single buffered']
    #allocation10 [shape = 's32[1]{0}', space=sflag, size = 0x4, scoped, tag = 'scoped memory for tpu_custom_call.1']
    #allocation11 [shape = 's32[1]{0}', space=sflag, size = 0x4, scoped, tag = 'scoped memory for tpu_custom_call.1']
    #allocation12 [shape = 'u8[32768]{0}', space=vmem, size = 0x8000, scoped, tag = 'input window, operand 8, single buffered']
    #allocation13 [shape = 's32[1]{0}', space=sflag, size = 0x4, scoped, tag = 'scoped memory for tpu_custom_call.1']
    #allocation14 [shape = 'u8[131072]{0}', space=vmem, size = 0x20000, scoped, tag = 'output window, operand 0, single buffered']
    %18 = vsyncpa [#allocation10], 0
    %19 = vsyncpa [#allocation13], 0
    %20 = vsyncpa [#allocation11], 0
    // Predicated region
    $region2: #{tpu_custom_call.1} parent=1 // pred_check
      _
    $region3: #{tpu_custom_call.1} parent=1 // pred_check_branch
      %22 = sbr.rel (0) target = $region5
    $region4: #{tpu_custom_call.1} parent=1 // pred_region
      _
    $region5: #{tpu_custom_call.1} parent=1 // pred_fallthru
      _
    // Predicated region
    $region6: #{tpu_custom_call.1} parent=1 // pred_check
      _
    $region7: #{tpu_custom_call.1} parent=1 // pred_check_branch
      %24 = sbr.rel (0) target = $region9
    $region8: #{tpu_custom_call.1} parent=1 // pred_region
      %s25 = sld [smem:[#allocation6]]
      %s26 = sadd.s32 %s25, 0
      %s27 = sld [smem:[#allocation7]]
      %p28 = scmp.gt.s32.totalorder %s27, 0
      %s29 = scalar_select %p28, %s27, 0
      %p30 = scmp.lt.s32.totalorder %s26, %s29
      %s31 = scalar_select %p30, %s26, %s29
      %s32 = smul.u32 16, %s31
      %p33 = scmp.lt.s32.totalorder %s32, 31
      %s34 = scalar_select %p33, %s32, 31
      %s35 = smul.addr %s34, 4
      %s36 = scalar_lea.vmem %s4, %s35
      %s37 = sld [smem:[#allocation6]]
      %s38 = sadd.s32 %s37, 0
      %s39 = sld [smem:[#allocation7]]
      %p40 = scmp.gt.s32.totalorder %s39, 0
      %s41 = scalar_select %p40, %s39, 0
      %p42 = scmp.lt.s32.totalorder %s38, %s41
      %s43 = scalar_select %p42, %s38, %s41
      %s44 = smul.u32 16, %s43
    $region9: #{tpu_custom_call.1} parent=1 // pred_fallthru
      _
    // Predicated region
    $region10: #{tpu_custom_call.1} parent=1 // pred_check
      _
    $region11: #{tpu_custom_call.1} parent=1 // pred_check_branch
      %46 = sbr.rel (0) target = $region13
    $region12: #{tpu_custom_call.1} parent=1 // pred_region
      %s47 = sld [smem:[#allocation6]]
      %s48 = sadd.s32 %s47, 0
      %s49 = sld [smem:[#allocation7]]
      %p50 = scmp.gt.s32.totalorder %s49, 0
      %s51 = scalar_select %p50, %s49, 0
      %p52 = scmp.lt.s32.totalorder %s48, %s51
      %s53 = scalar_select %p52, %s48, %s51
      %s54 = smul.u32 16, %s53
      %s56 = ssub.s32 1024, 1024
      %57 = vsyncadd [#allocation10], %s56
      %s58 = smul.addr %s54, 64
      %s59 = scalar_lea.hbm %s5, %s58
      %s60 = sshll.u32 [#allocation9], 4
      %s61 = int_to_ptr.vmem [resolvable:$true] %s60
      %66 = dma.hbm_to_vmem [thread:$0]  %s59, 1024, %s61, [#allocation10], 64, 64, 4
    $region13: #{tpu_custom_call.1} parent=1 // pred_fallthru
      _
    // Predicated region
    $region14: #{tpu_custom_call.1} parent=1 // pred_check
      _
    $region15: #{tpu_custom_call.1} parent=1 // pred_check_branch
      %68 = sbr.rel (0) target = $region17
    $region16: #{tpu_custom_call.1} parent=1 // pred_region
      _
    $region17: #{tpu_custom_call.1} parent=1 // pred_fallthru
      _
    // Predicated region
    $region18: #{tpu_custom_call.1} parent=1 // pred_check
      _
    $region19: #{tpu_custom_call.1} parent=1 // pred_check_branch
      %70 = sbr.rel (0) target = $region21
    $region20: #{tpu_custom_call.1} parent=1 // pred_region
      %s71 = sld [smem:[#allocation6]]
      %s72 = sadd.s32 %s71, 0
      %s73 = sld [smem:[#allocation7]]
      %p74 = scmp.gt.s32.totalorder %s73, 0
      %s75 = scalar_select %p74, %s73, 0
      %p76 = scmp.lt.s32.totalorder %s72, %s75
      %s77 = scalar_select %p76, %s72, %s75
      %p78 = scmp.lt.s32.totalorder %s77, 1
      %s79 = scalar_select %p78, %s77, 1
      %s80 = scalar_lea.vmem %s7, %s79
      %s81 = sld [smem:[#allocation6]]
      %s82 = sadd.s32 %s81, 0
      %s83 = sld [smem:[#allocation7]]
      %p84 = scmp.gt.s32.totalorder %s83, 0
      %s85 = scalar_select %p84, %s83, 0
      %p86 = scmp.lt.s32.totalorder %s82, %s85
      %s87 = scalar_select %p86, %s82, %s85
    $region21: #{tpu_custom_call.1} parent=1 // pred_fallthru
      _
    // Predicated region
    $region22: #{tpu_custom_call.1} parent=1 // pred_check
      _
    $region23: #{tpu_custom_call.1} parent=1 // pred_check_branch
      %89 = sbr.rel (0) target = $region25
    $region24: #{tpu_custom_call.1} parent=1 // pred_region
      %s91 = ssub.s32 1024, 1024
      %92 = vsyncadd [#allocation13], %s91
      %s93 = sshll.u32 [#allocation12], 4
      %s94 = int_to_ptr.vmem [resolvable:$true] %s93
      %99 = dma.hbm_to_vmem [thread:$0]  %s8, 1024, %s94, [#allocation13], 64, 64, 4
    $region25: #{tpu_custom_call.1} parent=1 // pred_fallthru
      _
    // Predicated region
    $region26: #{tpu_custom_call.1} parent=1 // pred_check
      _
    $region27: #{tpu_custom_call.1} parent=1 // pred_check_branch
      %101 = sbr.rel (0) target = $region29
    $region28: #{tpu_custom_call.1} parent=1 // pred_region
      _
    $region29: #{tpu_custom_call.1} parent=1 // pred_fallthru
      _
    // Predicated region
    $region30: #{tpu_custom_call.1} parent=1 // pred_check
      _
    $region31: #{tpu_custom_call.1} parent=1 // pred_check_branch
      %103 = sbr.rel (0) target = $region33
    $region32: #{tpu_custom_call.1} parent=1 // pred_region
      %104 = dma.done [#allocation10], 1024
    $region33: #{tpu_custom_call.1} parent=1 // pred_fallthru
      _
    // Predicated region
    $region34: #{tpu_custom_call.1} parent=1 // pred_check
      _
    $region35: #{tpu_custom_call.1} parent=1 // pred_check_branch
      %106 = sbr.rel (0) target = $region37
    $region36: #{tpu_custom_call.1} parent=1 // pred_region
      %107 = dma.done [#allocation13], 1024
    $region37: #{tpu_custom_call.1} parent=1 // pred_fallthru
      _
    %s108 = sld [smem:[#allocation6]]
    %s109 = sadd.s32 %s108, 0
    %s110 = sld [smem:[#allocation7]]
    %p111 = scmp.gt.s32.totalorder %s110, 0
    %s112 = scalar_select %p111, %s110, 0
    %p113 = scmp.lt.s32.totalorder %s109, %s112
    %s114 = scalar_select %p113, %s109, %s112
    %s115 = smul.u32 16, %s114
    %p116 = scmp.lt.s32.totalorder %s115, 31
    %s117 = scalar_select %p116, %s115, 31
    %s118 = smul.addr %s117, 4
    %s119 = scalar_lea.vmem %s4, %s118
    %s120 = sld [smem:[#allocation6]]
    %s121 = sadd.s32 %s120, 0
    %s122 = sld [smem:[#allocation7]]
    %p123 = scmp.gt.s32.totalorder %s122, 0
    %s124 = scalar_select %p123, %s122, 0
    %p125 = scmp.lt.s32.totalorder %s121, %s124
    %s126 = scalar_select %p125, %s121, %s124
    %p127 = scmp.lt.s32.totalorder %s126, 1
    %s128 = scalar_select %p127, %s126, 1
    %s129 = scalar_lea.vmem %s7, %s128
    %s130 = sld [smem:[#allocation6]]
    %s131 = sadd.s32 %s130, 0
    %s132 = sld [smem:[#allocation7]]
    %p133 = scmp.gt.s32.totalorder %s132, 0
    %s134 = scalar_select %p133, %s132, 0
    %p135 = scmp.lt.s32.totalorder %s131, %s134
    %s136 = scalar_select %p135, %s131, %s134
    %s137 = smul.u32 16, %s136
    %p138 = scmp.lt.s32.totalorder %s137, 31
    %s139 = scalar_select %p138, %s137, 31
    %s140 = smul.addr %s139, 4
    %s141 = scalar_lea.vmem %s4, %s140
    %s142 = sld [smem:[#allocation6]]
    %s143 = sadd.s32 %s142, 0
    %s144 = sld [smem:[#allocation7]]
    %p145 = scmp.gt.s32.totalorder %s144, 0
    %s146 = scalar_select %p145, %s144, 0
    %p147 = scmp.lt.s32.totalorder %s143, %s146
    %s148 = scalar_select %p147, %s143, %s146
    %s149 = smul.u32 16, %s148
    %s150 = sld [smem:[#allocation6]]
    %s151 = sadd.s32 %s150, 0
    %s152 = sld [smem:[#allocation7]]
    %p153 = scmp.gt.s32.totalorder %s152, 0
    %s154 = scalar_select %p153, %s152, 0
    %p155 = scmp.lt.s32.totalorder %s151, %s154
    %s156 = scalar_select %p155, %s151, %s154
    %s157 = smul.u32 16, %s156
    %s158 = sld [smem:[#allocation6]]
    %s159 = sadd.s32 %s158, 0
    %s160 = sld [smem:[#allocation7]]
    %p161 = scmp.gt.s32.totalorder %s160, 0
    %s162 = scalar_select %p161, %s160, 0
    %p163 = scmp.lt.s32.totalorder %s159, %s162
    %s164 = scalar_select %p163, %s159, %s162
    %p165 = scmp.lt.s32.totalorder %s164, 1
    %s166 = scalar_select %p165, %s164, 1
    %s167 = scalar_lea.vmem %s7, %s166
    %s168 = sld [smem:[#allocation6]]
    %s169 = sadd.s32 %s168, 0
    %s170 = sld [smem:[#allocation7]]
    %p171 = scmp.gt.s32.totalorder %s170, 0
    %s172 = scalar_select %p171, %s170, 0
    %p173 = scmp.lt.s32.totalorder %s169, %s172
    %s174 = scalar_select %p173, %s169, %s172
    %s176 = sld [smem:[#allocation8]]
    %p177 = scmp.gt.s32.totalorder %s176, 0
    %p178 = scmp.eq.s32.totalorder 0, 0
    // Predicated region
    $region38: #{tpu_custom_call.1} parent=1 // pred_check
      %p179 = pneg %p178
    $region39: #{tpu_custom_call.1} parent=1 // pred_check_branch
      %181 = sbr.rel (%p179) target = $region41
    $region40: #{tpu_custom_call.1} parent=1 // pred_region
      %vm182 = vcmask 7168
      %183 = vst.msk [vmem:[#allocation2] sm:$0xff] %vm182, -inf
      %184 = vst.msk [vmem:[#allocation2 + $0x8] sm:$0xff] %vm182, -inf
      %185 = vst.msk [vmem:[#allocation2 + $0x10] sm:$0xff] %vm182, -inf
      %186 = vst.msk [vmem:[#allocation2 + $0x18] sm:$0xff] %vm182, -inf
      %187 = vst.msk [vmem:[#allocation2 + $0x20] sm:$0xff] %vm182, -inf
      %188 = vst.msk [vmem:[#allocation2 + $0x28] sm:$0xff] %vm182, -inf
      %189 = vst.msk [vmem:[#allocation2 + $0x30] sm:$0xff] %vm182, -inf
      %190 = vst.msk [vmem:[#allocation2 + $0x38] sm:$0xff] %vm182, -inf
      %191 = vst.msk [vmem:[#allocation2 + $0x40] sm:$0xff] %vm182, -inf
      %192 = vst.msk [vmem:[#allocation2 + $0x48] sm:$0xff] %vm182, -inf
      %193 = vst.msk [vmem:[#allocation2 + $0x50] sm:$0xff] %vm182, -inf
      %194 = vst.msk [vmem:[#allocation2 + $0x58] sm:$0xff] %vm182, -inf
      %195 = vst.msk [vmem:[#allocation2 + $0x60] sm:$0xff] %vm182, -inf
      %196 = vst.msk [vmem:[#allocation2 + $0x68] sm:$0xff] %vm182, -inf
      %197 = vst.msk [vmem:[#allocation2 + $0x70] sm:$0xff] %vm182, -inf
      %198 = vst.msk [vmem:[#allocation2 + $0x78] sm:$0xff] %vm182, -inf
      %199 = vst.msk [vmem:[#allocation2 + $0x80] sm:$0xff] %vm182, -inf
      %200 = vst.msk [vmem:[#allocation2 + $0x88] sm:$0xff] %vm182, -inf
      %201 = vst.msk [vmem:[#allocation2 + $0x90] sm:$0xff] %vm182, -inf
      %202 = vst.msk [vmem:[#allocation2 + $0x98] sm:$0xff] %vm182, -inf
      %203 = vst.msk [vmem:[#allocation2 + $0xa0] sm:$0xff] %vm182, -inf
      %204 = vst.msk [vmem:[#allocation2 + $0xa8] sm:$0xff] %vm182, -inf
      %205 = vst.msk [vmem:[#allocation2 + $0xb0] sm:$0xff] %vm182, -inf
      %206 = vst.msk [vmem:[#allocation2 + $0xb8] sm:$0xff] %vm182, -inf
      %207 = vst.msk [vmem:[#allocation2 + $0xc0] sm:$0xff] %vm182, -inf
      %208 = vst.msk [vmem:[#allocation2 + $0xc8] sm:$0xff] %vm182, -inf
      %209 = vst.msk [vmem:[#allocation2 + $0xd0] sm:$0xff] %vm182, -inf
      %210 = vst.msk [vmem:[#allocation2 + $0xd8] sm:$0xff] %vm182, -inf
      %211 = vst.msk [vmem:[#allocation2 + $0xe0] sm:$0xff] %vm182, -inf
      %212 = vst.msk [vmem:[#allocation2 + $0xe8] sm:$0xff] %vm182, -inf
      %213 = vst.msk [vmem:[#allocation2 + $0xf0] sm:$0xff] %vm182, -inf
      %214 = vst.msk [vmem:[#allocation2 + $0xf8] sm:$0xff] %vm182, -inf
      %215 = vst.msk [vmem:[#allocation3] sm:$0xff] %vm182, 0.0
      %216 = vst.msk [vmem:[#allocation3 + $0x8] sm:$0xff] %vm182, 0.0
      %217 = vst.msk [vmem:[#allocation3 + $0x10] sm:$0xff] %vm182, 0.0
      %218 = vst.msk [vmem:[#allocation3 + $0x18] sm:$0xff] %vm182, 0.0
      %219 = vst.msk [vmem:[#allocation3 + $0x20] sm:$0xff] %vm182, 0.0
      %220 = vst.msk [vmem:[#allocation3 + $0x28] sm:$0xff] %vm182, 0.0
      %221 = vst.msk [vmem:[#allocation3 + $0x30] sm:$0xff] %vm182, 0.0
      %222 = vst.msk [vmem:[#allocation3 + $0x38] sm:$0xff] %vm182, 0.0
      %223 = vst.msk [vmem:[#allocation3 + $0x40] sm:$0xff] %vm182, 0.0
      %224 = vst.msk [vmem:[#allocation3 + $0x48] sm:$0xff] %vm182, 0.0
      %225 = vst.msk [vmem:[#allocation3 + $0x50] sm:$0xff] %vm182, 0.0
      %226 = vst.msk [vmem:[#allocation3 + $0x58] sm:$0xff] %vm182, 0.0
      %227 = vst.msk [vmem:[#allocation3 + $0x60] sm:$0xff] %vm182, 0.0
      %228 = vst.msk [vmem:[#allocation3 + $0x68] sm:$0xff] %vm182, 0.0
      %229 = vst.msk [vmem:[#allocation3 + $0x70] sm:$0xff] %vm182, 0.0
      %230 = vst.msk [vmem:[#allocation3 + $0x78] sm:$0xff] %vm182, 0.0
      %231 = vst.msk [vmem:[#allocation3 + $0x80] sm:$0xff] %vm182, 0.0
      %232 = vst.msk [vmem:[#allocation3 + $0x88] sm:$0xff] %vm182, 0.0
      %233 = vst.msk [vmem:[#allocation3 + $0x90] sm:$0xff] %vm182, 0.0
      %234 = vst.msk [vmem:[#allocation3 + $0x98] sm:$0xff] %vm182, 0.0
      %235 = vst.msk [vmem:[#allocation3 + $0xa0] sm:$0xff] %vm182, 0.0
      %236 = vst.msk [vmem:[#allocation3 + $0xa8] sm:$0xff] %vm182, 0.0
      %237 = vst.msk [vmem:[#allocation3 + $0xb0] sm:$0xff] %vm182, 0.0
      %238 = vst.msk [vmem:[#allocation3 + $0xb8] sm:$0xff] %vm182, 0.0
      %239 = vst.msk [vmem:[#allocation3 + $0xc0] sm:$0xff] %vm182, 0.0
      %240 = vst.msk [vmem:[#allocation3 + $0xc8] sm:$0xff] %vm182, 0.0
      %241 = vst.msk [vmem:[#allocation3 + $0xd0] sm:$0xff] %vm182, 0.0
      %242 = vst.msk [vmem:[#allocation3 + $0xd8] sm:$0xff] %vm182, 0.0
      %243 = vst.msk [vmem:[#allocation3 + $0xe0] sm:$0xff] %vm182, 0.0
      %244 = vst.msk [vmem:[#allocation3 + $0xe8] sm:$0xff] %vm182, 0.0
      %245 = vst.msk [vmem:[#allocation3 + $0xf0] sm:$0xff] %vm182, 0.0
      %246 = vst.msk [vmem:[#allocation3 + $0xf8] sm:$0xff] %vm182, 0.0
      %247 = vst [vmem:[#allocation4] sm:$0xff] 0.0
      %248 = vst [vmem:[#allocation4 + $0x8] sm:$0xff] 0.0
      %249 = vst [vmem:[#allocation4 + $0x10] sm:$0xff] 0.0
      %250 = vst [vmem:[#allocation4 + $0x18] sm:$0xff] 0.0
      %251 = vst [vmem:[#allocation4 + $0x20] sm:$0xff] 0.0
      %252 = vst [vmem:[#allocation4 + $0x28] sm:$0xff] 0.0
      %253 = vst [vmem:[#allocation4 + $0x30] sm:$0xff] 0.0
      %254 = vst [vmem:[#allocation4 + $0x38] sm:$0xff] 0.0
      %255 = vst [vmem:[#allocation4 + $0x40] sm:$0xff] 0.0
      %256 = vst [vmem:[#allocation4 + $0x48] sm:$0xff] 0.0
      %257 = vst [vmem:[#allocation4 + $0x50] sm:$0xff] 0.0
      %258 = vst [vmem:[#allocation4 + $0x58] sm:$0xff] 0.0
      %259 = vst [vmem:[#allocation4 + $0x60] sm:$0xff] 0.0
      %260 = vst [vmem:[#allocation4 + $0x68] sm:$0xff] 0.0
      %261 = vst [vmem:[#allocation4 + $0x70] sm:$0xff] 0.0
      %262 = vst [vmem:[#allocation4 + $0x78] sm:$0xff] 0.0
      %263 = vst [vmem:[#allocation4 + $0x80] sm:$0xff] 0.0
      %264 = vst [vmem:[#allocation4 + $0x88] sm:$0xff] 0.0
      %265 = vst [vmem:[#allocation4 + $0x90] sm:$0xff] 0.0
      %266 = vst [vmem:[#allocation4 + $0x98] sm:$0xff] 0.0
      %267 = vst [vmem:[#allocation4 + $0xa0] sm:$0xff] 0.0
      %268 = vst [vmem:[#allocation4 + $0xa8] sm:$0xff] 0.0
      %269 = vst [vmem:[#allocation4 + $0xb0] sm:$0xff] 0.0
      %270 = vst [vmem:[#allocation4 + $0xb8] sm:$0xff] 0.0
      %271 = vst [vmem:[#allocation4 + $0xc0] sm:$0xff] 0.0
      %272 = vst [vmem:[#allocation4 + $0xc8] sm:$0xff] 0.0
      %273 = vst [vmem:[#allocation4 + $0xd0] sm:$0xff] 0.0
      %274 = vst [vmem:[#allocation4 + $0xd8] sm:$0xff] 0.0
      %275 = vst [vmem:[#allocation4 + $0xe0] sm:$0xff] 0.0
      %276 = vst [vmem:[#allocation4 + $0xe8] sm:$0xff] 0.0
      %277 = vst [vmem:[#allocation4 + $0xf0] sm:$0xff] 0.0
      %278 = vst [vmem:[#allocation4 + $0xf8] sm:$0xff] 0.0
    $region41: #{tpu_custom_call.1} parent=1 // pred_fallthru
      _
    %s279 = sld [smem:[#allocation7]]
    %s280 = sld [smem:[#allocation6]]
    %s281 = ssub.s32 %s279, %s280
    %p282 = scmp.le.s32.totalorder 0, %s281
    %p283 = pnand %p177, %p282
    %p284 = pneg %p283
    // Predicated region
    $region42: #{tpu_custom_call.1} parent=1 // pred_check
      _
    $region43: #{tpu_custom_call.1} parent=1 // pred_check_branch
      %286 = sbr.rel (%p283) target = $region45
    $region44: #{tpu_custom_call.1} parent=1 // pred_region
      %v287 = vld [vmem:[%s3] sm:$0xf]
      %v288 = vld [vmem:[%s3 + $0x4] sm:$0xf]
      %v289 = vld [vmem:[%s3 + $0x8] sm:$0xf]
      %v290 = vld [vmem:[%s3 + $0xc] sm:$0xf]
      %v291 = vld [vmem:[%s3 + $0x10] sm:$0xf]
      %v292 = vld [vmem:[%s3 + $0x14] sm:$0xf]
      %v293 = vld [vmem:[%s3 + $0x18] sm:$0xf]
      %v294 = vld [vmem:[%s3 + $0x1c] sm:$0xf]
      %v295 = vld [vmem:[%s3 + $0x20] sm:$0xf]
      %v296 = vld [vmem:[%s3 + $0x24] sm:$0xf]
      %v297 = vld [vmem:[%s3 + $0x28] sm:$0xf]
      %v298 = vld [vmem:[%s3 + $0x2c] sm:$0xf]
      %v299 = vld [vmem:[%s3 + $0x30] sm:$0xf]
      %v300 = vld [vmem:[%s3 + $0x34] sm:$0xf]
      %v301 = vld [vmem:[%s3 + $0x38] sm:$0xf]
      %v302 = vld [vmem:[%s3 + $0x3c] sm:$0xf]
      %v303 = vld [vmem:[%s3 + $0x40] sm:$0xf]
      %v304 = vld [vmem:[%s3 + $0x44] sm:$0xf]
      %v305 = vld [vmem:[%s3 + $0x48] sm:$0xf]
      %v306 = vld [vmem:[%s3 + $0x4c] sm:$0xf]
      %v307 = vld [vmem:[%s3 + $0x50] sm:$0xf]
      %v308 = vld [vmem:[%s3 + $0x54] sm:$0xf]
      %v309 = vld [vmem:[%s3 + $0x58] sm:$0xf]
      %v310 = vld [vmem:[%s3 + $0x5c] sm:$0xf]
      %v311 = vld [vmem:[%s3 + $0x60] sm:$0xf]
      %v312 = vld [vmem:[%s3 + $0x64] sm:$0xf]
      %v313 = vld [vmem:[%s3 + $0x68] sm:$0xf]
      %v314 = vld [vmem:[%s3 + $0x6c] sm:$0xf]
      %v315 = vld [vmem:[%s3 + $0x70] sm:$0xf]
      %v316 = vld [vmem:[%s3 + $0x74] sm:$0xf]
      %v317 = vld [vmem:[%s3 + $0x78] sm:$0xf]
      %v318 = vld [vmem:[%s3 + $0x7c] sm:$0xf]
      %v319 = vld [vmem:[%s141] sm:$0xf]
      %v320 = vld [vmem:[%s141 + $0x4] sm:$0xf]
      %v321 = vld [vmem:[%s141 + $0x8] sm:$0xf]
      %v322 = vld [vmem:[%s141 + $0xc] sm:$0xf]
      %v323 = vld [vmem:[%s141 + $0x10] sm:$0xf]
      %v324 = vld [vmem:[%s141 + $0x14] sm:$0xf]
      %v325 = vld [vmem:[%s141 + $0x18] sm:$0xf]
      %v326 = vld [vmem:[%s141 + $0x1c] sm:$0xf]
      %v327 = vld [vmem:[%s141 + $0x20] sm:$0xf]
      %v328 = vld [vmem:[%s141 + $0x24] sm:$0xf]
      %v329 = vld [vmem:[%s141 + $0x28] sm:$0xf]
      %v330 = vld [vmem:[%s141 + $0x2c] sm:$0xf]
      %v331 = vld [vmem:[%s141 + $0x30] sm:$0xf]
      %v332 = vld [vmem:[%s141 + $0x34] sm:$0xf]
      %v333 = vld [vmem:[%s141 + $0x38] sm:$0xf]
      %v334 = vld [vmem:[%s141 + $0x3c] sm:$0xf]
      %v367 = vunpack.c.l.b16 %v287
      %v368 = vunpack.c.l.b16 %v288
      %v369 = vunpack.c.l.b16 %v289
      %v370 = vunpack.c.l.b16 %v290
      %v371 = vunpack.c.l.b16 %v291
      %v372 = vunpack.c.l.b16 %v292
      %v373 = vunpack.c.l.b16 %v293
      %v374 = vunpack.c.l.b16 %v294
      %v375 = vunpack.c.l.b16 %v295
      %v376 = vunpack.c.l.b16 %v296
      %v377 = vunpack.c.l.b16 %v297
      %v378 = vunpack.c.l.b16 %v298
      %v379 = vunpack.c.l.b16 %v299
      %v380 = vunpack.c.l.b16 %v300
      %v381 = vunpack.c.l.b16 %v301
      %v382 = vunpack.c.l.b16 %v302
      %v383 = vunpack.c.l.b16 %v303
      %v384 = vunpack.c.l.b16 %v304
      %v385 = vunpack.c.l.b16 %v305
      %v386 = vunpack.c.l.b16 %v306
      %v387 = vunpack.c.l.b16 %v307
      %v388 = vunpack.c.l.b16 %v308
      %v389 = vunpack.c.l.b16 %v309
      %v390 = vunpack.c.l.b16 %v310
      %v391 = vunpack.c.l.b16 %v311
      %v392 = vunpack.c.l.b16 %v312
      %v393 = vunpack.c.l.b16 %v313
      %v394 = vunpack.c.l.b16 %v314
      %v395 = vunpack.c.l.b16 %v315
      %v396 = vunpack.c.l.b16 %v316
      %v397 = vunpack.c.l.b16 %v317
      %v398 = vunpack.c.l.b16 %v318
      %v399 = vpack.c.b16 %v368, %v367
      %v400 = vpack.c.b16 %v370, %v369
      %v401 = vpack.c.b16 %v372, %v371
      %v402 = vpack.c.b16 %v374, %v373
      %v403 = vpack.c.b16 %v376, %v375
      %v404 = vpack.c.b16 %v378, %v377
      %v405 = vpack.c.b16 %v380, %v379
      %v406 = vpack.c.b16 %v382, %v381
      %v407 = vpack.c.b16 %v384, %v383
      %v408 = vpack.c.b16 %v386, %v385
      %v409 = vpack.c.b16 %v388, %v387
      %v410 = vpack.c.b16 %v390, %v389
      %v411 = vpack.c.b16 %v392, %v391
      %v412 = vpack.c.b16 %v394, %v393
      %v413 = vpack.c.b16 %v396, %v395
      %v414 = vpack.c.b16 %v398, %v397
      %v447 = vunpack.c.l.b16 %v319
      %v448 = vunpack.c.l.b16 %v320
      %v449 = vunpack.c.l.b16 %v321
      %v450 = vunpack.c.l.b16 %v322
      %v451 = vunpack.c.l.b16 %v323
      %v452 = vunpack.c.l.b16 %v324
      %v453 = vunpack.c.l.b16 %v325
      %v454 = vunpack.c.l.b16 %v326
      %v455 = vunpack.c.l.b16 %v327
      %v456 = vunpack.c.l.b16 %v328
      %v457 = vunpack.c.l.b16 %v329
      %v458 = vunpack.c.l.b16 %v330
      %v459 = vunpack.c.l.b16 %v331
      %v460 = vunpack.c.l.b16 %v332
      %v461 = vunpack.c.l.b16 %v333
      %v462 = vunpack.c.l.b16 %v334
      %v463 = vpack.c.b16 %v448, %v447
      %v464 = vpack.c.b16 %v450, %v449
      %v465 = vpack.c.b16 %v452, %v451
      %v466 = vpack.c.b16 %v454, %v453
      %v467 = vpack.c.b16 %v456, %v455
      %v468 = vpack.c.b16 %v458, %v457
      %v469 = vpack.c.b16 %v460, %v459
      %v470 = vpack.c.b16 %v462, %v461
      %479 = vmatprep.subr.bf16.mxu0 0
      %480 = vmatpush1.bf16.xpose.msra.mxu0 %v463
      %481 = vmatprep.subr.bf16.mxu0 0
      %482 = vmatpush1.bf16.xpose.msra.mxu0 %v464
      %483 = vmatprep.subr.bf16.mxu0 0
      %484 = vmatpush1.bf16.xpose.msra.mxu0 %v465
      %485 = vmatprep.subr.bf16.mxu0 0
      %486 = vmatpush1.bf16.xpose.msra.mxu0 %v466
      %487 = vmatprep.subr.bf16.mxu0 0
      %488 = vmatpush1.bf16.xpose.msra.mxu0 %v467
      %489 = vmatprep.subr.bf16.mxu0 0
      %490 = vmatpush1.bf16.xpose.msra.mxu0 %v468
      %491 = vmatprep.subr.bf16.mxu0 0
      %492 = vmatpush1.bf16.xpose.msra.mxu0 %v469
      %493 = vmatprep.subr.bf16.mxu0 0
      %494 = vmatpush1.bf16.xpose.msra.mxu0 %v470
      %495 = vmatprep.subr.bf16.mxu0 0
      %496 = vmatpush1.bf16.xpose.msra.mxu0 0
      %497 = vmatprep.subr.bf16.mxu0 0
      %498 = vmatpush1.bf16.xpose.msra.mxu0 0
      %499 = vmatprep.subr.bf16.mxu0 0
      %500 = vmatpush1.bf16.xpose.msra.mxu0 0
      %501 = vmatprep.subr.bf16.mxu0 0
      %502 = vmatpush1.bf16.xpose.msra.mxu0 0
      %503 = vmatprep.subr.bf16.mxu0 0
      %504 = vmatpush1.bf16.xpose.msra.mxu0 0
      %505 = vmatprep.subr.bf16.mxu0 0
      %506 = vmatpush1.bf16.xpose.msra.mxu0 0
      %507 = vmatprep.subr.bf16.mxu0 0
      %508 = vmatpush1.bf16.xpose.msra.mxu0 0
      %509 = vmatprep.subr.bf16.mxu0 0
      %510 = vmatpush1.bf16.xpose.msra.mxu0 0
      %511 = vmatprep.mubr.bf16.mxu0 0
      %512 = vmatmul.mubr.bf16.gmra.mrb[0].mxu0 %v399
      %v513 = vpop.f32.mrb[0].mxu0
      %v514 = vadd.f32 0.0, %v513
      %v515 = vpop.f32.mrb[0].mxu0
      %v516 = vpop.f32.mrb[0].mxu0
      %v517 = vadd.f32 0.0, %v516
      %v518 = vpop.f32.mrb[0].mxu0
      %519 = vmatprep.mubr.bf16.mxu0 0
      %520 = vmatmul.mubr.bf16.gmra.mrb[0].mxu0 %v400
      %v521 = vpop.f32.mrb[0].mxu0
      %v522 = vadd.f32 0.0, %v521
      %v523 = vpop.f32.mrb[0].mxu0
      %v524 = vpop.f32.mrb[0].mxu0
      %v525 = vadd.f32 0.0, %v524
      %v526 = vpop.f32.mrb[0].mxu0
      %527 = vmatprep.mubr.bf16.mxu0 0
      %528 = vmatmul.mubr.bf16.gmra.mrb[0].mxu0 %v401
      %v529 = vpop.f32.mrb[0].mxu0
      %v530 = vadd.f32 0.0, %v529
      %v531 = vpop.f32.mrb[0].mxu0
      %v532 = vpop.f32.mrb[0].mxu0
      %v533 = vadd.f32 0.0, %v532
      %v534 = vpop.f32.mrb[0].mxu0
      %535 = vmatprep.mubr.bf16.mxu0 0
      %536 = vmatmul.mubr.bf16.gmra.mrb[0].mxu0 %v402
      %v537 = vpop.f32.mrb[0].mxu0
      %v538 = vadd.f32 0.0, %v537
      %v539 = vpop.f32.mrb[0].mxu0
      %v540 = vpop.f32.mrb[0].mxu0
      %v541 = vadd.f32 0.0, %v540
      %v542 = vpop.f32.mrb[0].mxu0
      %543 = vmatprep.mubr.bf16.mxu0 0
      %544 = vmatmul.mubr.bf16.gmra.mrb[0].mxu0 %v403
      %v545 = vpop.f32.mrb[0].mxu0
      %v546 = vadd.f32 0.0, %v545
      %v547 = vpop.f32.mrb[0].mxu0
      %v548 = vpop.f32.mrb[0].mxu0
      %v549 = vadd.f32 0.0, %v548
      %v550 = vpop.f32.mrb[0].mxu0
      %551 = vmatprep.mubr.bf16.mxu0 0
      %552 = vmatmul.mubr.bf16.gmra.mrb[0].mxu0 %v404
      %v553 = vpop.f32.mrb[0].mxu0
      %v554 = vadd.f32 0.0, %v553
      %v555 = vpop.f32.mrb[0].mxu0
      %v556 = vpop.f32.mrb[0].mxu0
      %v557 = vadd.f32 0.0, %v556
      %v558 = vpop.f32.mrb[0].mxu0
      %559 = vmatprep.mubr.bf16.mxu0 0
      %560 = vmatmul.mubr.bf16.gmra.mrb[0].mxu0 %v405
      %v561 = vpop.f32.mrb[0].mxu0
      %v562 = vadd.f32 0.0, %v561
      %v563 = vpop.f32.mrb[0].mxu0
      %v564 = vpop.f32.mrb[0].mxu0
      %v565 = vadd.f32 0.0, %v564
      %v566 = vpop.f32.mrb[0].mxu0
      %567 = vmatprep.mubr.bf16.mxu0 0
      %568 = vmatmul.mubr.bf16.gmra.mrb[0].mxu0 %v406
      %v569 = vpop.f32.mrb[0].mxu0
      %v570 = vadd.f32 0.0, %v569
      %v571 = vpop.f32.mrb[0].mxu0
      %v572 = vpop.f32.mrb[0].mxu0
      %v573 = vadd.f32 0.0, %v572
      %v574 = vpop.f32.mrb[0].mxu0
      %575 = vmatprep.mubr.bf16.mxu0 0
      %576 = vmatmul.mubr.bf16.gmra.mrb[0].mxu0 %v407
      %v577 = vpop.f32.mrb[0].mxu0
      %v578 = vadd.f32 0.0, %v577
      %v579 = vpop.f32.mrb[0].mxu0
      %v580 = vpop.f32.mrb[0].mxu0
      %v581 = vadd.f32 0.0, %v580
      %v582 = vpop.f32.mrb[0].mxu0
      %583 = vmatprep.mubr.bf16.mxu0 0
      %584 = vmatmul.mubr.bf16.gmra.mrb[0].mxu0 %v408
      %v585 = vpop.f32.mrb[0].mxu0
      %v586 = vadd.f32 0.0, %v585
      %v587 = vpop.f32.mrb[0].mxu0
      %v588 = vpop.f32.mrb[0].mxu0
      %v589 = vadd.f32 0.0, %v588
      %v590 = vpop.f32.mrb[0].mxu0
      %591 = vmatprep.mubr.bf16.mxu0 0
      %592 = vmatmul.mubr.bf16.gmra.mrb[0].mxu0 %v409
      %v593 = vpop.f32.mrb[0].mxu0
      %v594 = vadd.f32 0.0, %v593
      %v595 = vpop.f32.mrb[0].mxu0
      %v596 = vpop.f32.mrb[0].mxu0
      %v597 = vadd.f32 0.0, %v596
      %v598 = vpop.f32.mrb[0].mxu0
      %599 = vmatprep.mubr.bf16.mxu0 0
      %600 = vmatmul.mubr.bf16.gmra.mrb[0].mxu0 %v410
      %v601 = vpop.f32.mrb[0].mxu0
      %v602 = vadd.f32 0.0, %v601
      %v603 = vpop.f32.mrb[0].mxu0
      %v604 = vpop.f32.mrb[0].mxu0
      %v605 = vadd.f32 0.0, %v604
      %v606 = vpop.f32.mrb[0].mxu0
      %607 = vmatprep.mubr.bf16.mxu0 0
      %608 = vmatmul.mubr.bf16.gmra.mrb[0].mxu0 %v411
      %v609 = vpop.f32.mrb[0].mxu0
      %v610 = vadd.f32 0.0, %v609
      %v611 = vpop.f32.mrb[0].mxu0
      %v612 = vpop.f32.mrb[0].mxu0
      %v613 = vadd.f32 0.0, %v612
      %v614 = vpop.f32.mrb[0].mxu0
      %615 = vmatprep.mubr.bf16.mxu0 0
      %616 = vmatmul.mubr.bf16.gmra.mrb[0].mxu0 %v412
      %v617 = vpop.f32.mrb[0].mxu0
      %v618 = vadd.f32 0.0, %v617
      %v619 = vpop.f32.mrb[0].mxu0
      %v620 = vpop.f32.mrb[0].mxu0
      %v621 = vadd.f32 0.0, %v620
      %v622 = vpop.f32.mrb[0].mxu0
      %623 = vmatprep.mubr.bf16.mxu0 0
      %624 = vmatmul.mubr.bf16.gmra.mrb[0].mxu0 %v413
      %v625 = vpop.f32.mrb[0].mxu0
      %v626 = vadd.f32 0.0, %v625
      %v627 = vpop.f32.mrb[0].mxu0
      %v628 = vpop.f32.mrb[0].mxu0
      %v629 = vadd.f32 0.0, %v628
      %v630 = vpop.f32.mrb[0].mxu0
      %631 = vmatprep.mubr.bf16.mxu0 0
      %632 = vmatmul.mubr.bf16.gmra.mrb[0].mxu0 %v414
      %v633 = vpop.f32.mrb[0].mxu0
      %v634 = vadd.f32 0.0, %v633
      %v635 = vpop.f32.mrb[0].mxu0
      %v636 = vpop.f32.mrb[0].mxu0
      %v637 = vadd.f32 0.0, %v636
      %v638 = vpop.f32.mrb[0].mxu0
      %639 = vdwg.mxu0
      %v640 = vld [vmem:[%s6] sm:$0xff]
      %v641 = vld [vmem:[%s6 + $0x8] sm:$0xff]
      %v642 = vld [vmem:[%s6 + $0x10] sm:$0xff]
      %v643 = vld [vmem:[%s6 + $0x18] sm:$0xff]
      %v644 = vld [vmem:[%s6 + $0x20] sm:$0xff]
      %v645 = vld [vmem:[%s6 + $0x28] sm:$0xff]
      %v646 = vld [vmem:[%s6 + $0x30] sm:$0xff]
      %v647 = vld [vmem:[%s6 + $0x38] sm:$0xff]
      %v648 = vld [vmem:[%s6 + $0x40] sm:$0xff]
      %v649 = vld [vmem:[%s6 + $0x48] sm:$0xff]
      %v650 = vld [vmem:[%s6 + $0x50] sm:$0xff]
      %v651 = vld [vmem:[%s6 + $0x58] sm:$0xff]
      %v652 = vld [vmem:[%s6 + $0x60] sm:$0xff]
      %v653 = vld [vmem:[%s6 + $0x68] sm:$0xff]
      %v654 = vld [vmem:[%s6 + $0x70] sm:$0xff]
      %v655 = vld [vmem:[%s6 + $0x78] sm:$0xff]
      %v656 = vld [vmem:[%s6 + $0x80] sm:$0xff]
      %v657 = vld [vmem:[%s6 + $0x88] sm:$0xff]
      %v658 = vld [vmem:[%s6 + $0x90] sm:$0xff]
      %v659 = vld [vmem:[%s6 + $0x98] sm:$0xff]
      %v660 = vld [vmem:[%s6 + $0xa0] sm:$0xff]
      %v661 = vld [vmem:[%s6 + $0xa8] sm:$0xff]
      %v662 = vld [vmem:[%s6 + $0xb0] sm:$0xff]
      %v663 = vld [vmem:[%s6 + $0xb8] sm:$0xff]
      %v664 = vld [vmem:[%s6 + $0xc0] sm:$0xff]
      %v665 = vld [vmem:[%s6 + $0xc8] sm:$0xff]
      %v666 = vld [vmem:[%s6 + $0xd0] sm:$0xff]
      %v667 = vld [vmem:[%s6 + $0xd8] sm:$0xff]
      %v668 = vld [vmem:[%s6 + $0xe0] sm:$0xff]
      %v669 = vld [vmem:[%s6 + $0xe8] sm:$0xff]
      %v670 = vld [vmem:[%s6 + $0xf0] sm:$0xff]
      %v671 = vld [vmem:[%s6 + $0xf8] sm:$0xff]
      %v672 = vld [vmem:[%s167] sm:$0x1]
      %673 = vset.pattern.permute.xlu0 0
      %674 = vperm.xlu0 %673, %v640
      %v675 = vpop.permute.xlu0 %674
      %676 = vset.pattern.permute.xlu0 0
      %677 = vperm.xlu0 %676, %v641
      %v678 = vpop.permute.xlu0 %677
      %679 = vset.pattern.permute.xlu0 0
      %680 = vperm.xlu0 %679, %v642
      %v681 = vpop.permute.xlu0 %680
      %682 = vset.pattern.permute.xlu0 0
      %683 = vperm.xlu0 %682, %v643
      %v684 = vpop.permute.xlu0 %683
      %685 = vset.pattern.permute.xlu0 0
      %686 = vperm.xlu0 %685, %v644
      %v687 = vpop.permute.xlu0 %686
      %688 = vset.pattern.permute.xlu0 0
      %689 = vperm.xlu0 %688, %v645
      %v690 = vpop.permute.xlu0 %689
      %691 = vset.pattern.permute.xlu0 0
      %692 = vperm.xlu0 %691, %v646
      %v693 = vpop.permute.xlu0 %692
      %694 = vset.pattern.permute.xlu0 0
      %695 = vperm.xlu0 %694, %v647
      %v696 = vpop.permute.xlu0 %695
      %697 = vset.pattern.permute.xlu0 0
      %698 = vperm.xlu0 %697, %v648
      %v699 = vpop.permute.xlu0 %698
      %700 = vset.pattern.permute.xlu0 0
      %701 = vperm.xlu0 %700, %v649
      %v702 = vpop.permute.xlu0 %701
      %703 = vset.pattern.permute.xlu0 0
      %704 = vperm.xlu0 %703, %v650
      %v705 = vpop.permute.xlu0 %704
      %706 = vset.pattern.permute.xlu0 0
      %707 = vperm.xlu0 %706, %v651
      %v708 = vpop.permute.xlu0 %707
      %709 = vset.pattern.permute.xlu0 0
      %710 = vperm.xlu0 %709, %v652
      %v711 = vpop.permute.xlu0 %710
      %712 = vset.pattern.permute.xlu0 0
      %713 = vperm.xlu0 %712, %v653
      %v714 = vpop.permute.xlu0 %713
      %715 = vset.pattern.permute.xlu0 0
      %716 = vperm.xlu0 %715, %v654
      %v717 = vpop.permute.xlu0 %716
      %718 = vset.pattern.permute.xlu0 0
      %719 = vperm.xlu0 %718, %v655
      %v720 = vpop.permute.xlu0 %719
      %721 = vset.pattern.permute.xlu0 0
      %722 = vperm.xlu0 %721, %v656
      %v723 = vpop.permute.xlu0 %722
      %724 = vset.pattern.permute.xlu0 0
      %725 = vperm.xlu0 %724, %v657
      %v726 = vpop.permute.xlu0 %725
      %727 = vset.pattern.permute.xlu0 0
      %728 = vperm.xlu0 %727, %v658
      %v729 = vpop.permute.xlu0 %728
      %730 = vset.pattern.permute.xlu0 0
      %731 = vperm.xlu0 %730, %v659
      %v732 = vpop.permute.xlu0 %731
      %733 = vset.pattern.permute.xlu0 0
      %734 = vperm.xlu0 %733, %v660
      %v735 = vpop.permute.xlu0 %734
      %736 = vset.pattern.permute.xlu0 0
      %737 = vperm.xlu0 %736, %v661
      %v738 = vpop.permute.xlu0 %737
      %739 = vset.pattern.permute.xlu0 0
      %740 = vperm.xlu0 %739, %v662
      %v741 = vpop.permute.xlu0 %740
      %742 = vset.pattern.permute.xlu0 0
      %743 = vperm.xlu0 %742, %v663
      %v744 = vpop.permute.xlu0 %743
      %745 = vset.pattern.permute.xlu0 0
      %746 = vperm.xlu0 %745, %v664
      %v747 = vpop.permute.xlu0 %746
      %748 = vset.pattern.permute.xlu0 0
      %749 = vperm.xlu0 %748, %v665
      %v750 = vpop.permute.xlu0 %749
      %751 = vset.pattern.permute.xlu0 0
      %752 = vperm.xlu0 %751, %v666
      %v753 = vpop.permute.xlu0 %752
      %754 = vset.pattern.permute.xlu0 0
      %755 = vperm.xlu0 %754, %v667
      %v756 = vpop.permute.xlu0 %755
      %757 = vset.pattern.permute.xlu0 0
      %758 = vperm.xlu0 %757, %v668
      %v759 = vpop.permute.xlu0 %758
      %760 = vset.pattern.permute.xlu0 0
      %761 = vperm.xlu0 %760, %v669
      %v762 = vpop.permute.xlu0 %761
      %763 = vset.pattern.permute.xlu0 0
      %764 = vperm.xlu0 %763, %v670
      %v765 = vpop.permute.xlu0 %764
      %766 = vset.pattern.permute.xlu0 0
      %767 = vperm.xlu0 %766, %v671
      %v768 = vpop.permute.xlu0 %767
      %v769 = vlaneseq
      %v770 = vshrl.u32 %v769, 7
      %v771 = vsub.s32 0, %v770
      %v772 = vrot.slane %v672, %v771
      %vm773 = vcmp.eq.s32.totalorder %v675, %v772
      %vm774 = vcmp.eq.s32.totalorder %v678, %v772
      %vm775 = vcmp.eq.s32.totalorder %v681, %v772
      %vm776 = vcmp.eq.s32.totalorder %v684, %v772
      %vm777 = vcmp.eq.s32.totalorder %v687, %v772
      %vm778 = vcmp.eq.s32.totalorder %v690, %v772
      %vm779 = vcmp.eq.s32.totalorder %v693, %v772
      %vm780 = vcmp.eq.s32.totalorder %v696, %v772
      %vm781 = vcmp.eq.s32.totalorder %v699, %v772
      %vm782 = vcmp.eq.s32.totalorder %v702, %v772
      %vm783 = vcmp.eq.s32.totalorder %v705, %v772
      %vm784 = vcmp.eq.s32.totalorder %v708, %v772
      %vm785 = vcmp.eq.s32.totalorder %v711, %v772
      %vm786 = vcmp.eq.s32.totalorder %v714, %v772
      %vm787 = vcmp.eq.s32.totalorder %v717, %v772
      %vm788 = vcmp.eq.s32.totalorder %v720, %v772
      %vm789 = vcmp.eq.s32.totalorder %v723, %v772
      %vm790 = vcmp.eq.s32.totalorder %v726, %v772
      %vm791 = vcmp.eq.s32.totalorder %v729, %v772
      %vm792 = vcmp.eq.s32.totalorder %v732, %v772
      %vm793 = vcmp.eq.s32.totalorder %v735, %v772
      %vm794 = vcmp.eq.s32.totalorder %v738, %v772
      %vm795 = vcmp.eq.s32.totalorder %v741, %v772
      %vm796 = vcmp.eq.s32.totalorder %v744, %v772
      %vm797 = vcmp.eq.s32.totalorder %v747, %v772
      %vm798 = vcmp.eq.s32.totalorder %v750, %v772
      %vm799 = vcmp.eq.s32.totalorder %v753, %v772
      %vm800 = vcmp.eq.s32.totalorder %v756, %v772
      %vm801 = vcmp.eq.s32.totalorder %v759, %v772
      %vm802 = vcmp.eq.s32.totalorder %v762, %v772
      %vm803 = vcmp.eq.s32.totalorder %v765, %v772
      %vm804 = vcmp.eq.s32.totalorder %v768, %v772
      %vm805 = vcmp.ne.s32.totalorder %v640, 4294967295
      %vm806 = vcmp.ne.s32.totalorder %v641, 4294967295
      %vm807 = vcmp.ne.s32.totalorder %v642, 4294967295
      %vm808 = vcmp.ne.s32.totalorder %v643, 4294967295
      %vm809 = vcmp.ne.s32.totalorder %v644, 4294967295
      %vm810 = vcmp.ne.s32.totalorder %v645, 4294967295
      %vm811 = vcmp.ne.s32.totalorder %v646, 4294967295
      %vm812 = vcmp.ne.s32.totalorder %v647, 4294967295
      %vm813 = vcmp.ne.s32.totalorder %v648, 4294967295
      %vm814 = vcmp.ne.s32.totalorder %v649, 4294967295
      %vm815 = vcmp.ne.s32.totalorder %v650, 4294967295
      %vm816 = vcmp.ne.s32.totalorder %v651, 4294967295
      %vm817 = vcmp.ne.s32.totalorder %v652, 4294967295
      %vm818 = vcmp.ne.s32.totalorder %v653, 4294967295
      %vm819 = vcmp.ne.s32.totalorder %v654, 4294967295
      %vm820 = vcmp.ne.s32.totalorder %v655, 4294967295
      %vm821 = vcmp.ne.s32.totalorder %v656, 4294967295
      %vm822 = vcmp.ne.s32.totalorder %v657, 4294967295
      %vm823 = vcmp.ne.s32.totalorder %v658, 4294967295
      %vm824 = vcmp.ne.s32.totalorder %v659, 4294967295
      %vm825 = vcmp.ne.s32.totalorder %v660, 4294967295
      %vm826 = vcmp.ne.s32.totalorder %v661, 4294967295
      %vm827 = vcmp.ne.s32.totalorder %v662, 4294967295
      %vm828 = vcmp.ne.s32.totalorder %v663, 4294967295
      %vm829 = vcmp.ne.s32.totalorder %v664, 4294967295
      %vm830 = vcmp.ne.s32.totalorder %v665, 4294967295
      %vm831 = vcmp.ne.s32.totalorder %v666, 4294967295
      %vm832 = vcmp.ne.s32.totalorder %v667, 4294967295
      %vm833 = vcmp.ne.s32.totalorder %v668, 4294967295
      %vm834 = vcmp.ne.s32.totalorder %v669, 4294967295
      %vm835 = vcmp.ne.s32.totalorder %v670, 4294967295
      %vm836 = vcmp.ne.s32.totalorder %v671, 4294967295
      %v837 = vsel %vm805, 1, 0
      %v838 = vsel %vm806, 1, 0
      %v839 = vsel %vm807, 1, 0
      %v840 = vsel %vm808, 1, 0
      %v841 = vsel %vm809, 1, 0
      %v842 = vsel %vm810, 1, 0
      %v843 = vsel %vm811, 1, 0
      %v844 = vsel %vm812, 1, 0
      %v845 = vsel %vm813, 1, 0
      %v846 = vsel %vm814, 1, 0
      %v847 = vsel %vm815, 1, 0
      %v848 = vsel %vm816, 1, 0
      %v849 = vsel %vm817, 1, 0
      %v850 = vsel %vm818, 1, 0
      %v851 = vsel %vm819, 1, 0
      %v852 = vsel %vm820, 1, 0
      %v853 = vsel %vm821, 1, 0
      %v854 = vsel %vm822, 1, 0
      %v855 = vsel %vm823, 1, 0
      %v856 = vsel %vm824, 1, 0
      %v857 = vsel %vm825, 1, 0
      %v858 = vsel %vm826, 1, 0
      %v859 = vsel %vm827, 1, 0
      %v860 = vsel %vm828, 1, 0
      %v861 = vsel %vm829, 1, 0
      %v862 = vsel %vm830, 1, 0
      %v863 = vsel %vm831, 1, 0
      %v864 = vsel %vm832, 1, 0
      %v865 = vsel %vm833, 1, 0
      %v866 = vsel %vm834, 1, 0
      %v867 = vsel %vm835, 1, 0
      %v868 = vsel %vm836, 1, 0
      %869 = vset.pattern.permute.xlu0 0
      %870 = vperm.xlu0 %869, %v837
      %v871 = vpop.permute.xlu0 %870
      %872 = vset.pattern.permute.xlu0 0
      %873 = vperm.xlu0 %872, %v838
      %v874 = vpop.permute.xlu0 %873
      %875 = vset.pattern.permute.xlu0 0
      %876 = vperm.xlu0 %875, %v839
      %v877 = vpop.permute.xlu0 %876
      %878 = vset.pattern.permute.xlu0 0
      %879 = vperm.xlu0 %878, %v840
      %v880 = vpop.permute.xlu0 %879
      %881 = vset.pattern.permute.xlu0 0
      %882 = vperm.xlu0 %881, %v841
      %v883 = vpop.permute.xlu0 %882
      %884 = vset.pattern.permute.xlu0 0
      %885 = vperm.xlu0 %884, %v842
      %v886 = vpop.permute.xlu0 %885
      %887 = vset.pattern.permute.xlu0 0
      %888 = vperm.xlu0 %887, %v843
      %v889 = vpop.permute.xlu0 %888
      %890 = vset.pattern.permute.xlu0 0
      %891 = vperm.xlu0 %890, %v844
      %v892 = vpop.permute.xlu0 %891
      %893 = vset.pattern.permute.xlu0 0
      %894 = vperm.xlu0 %893, %v845
      %v895 = vpop.permute.xlu0 %894
      %896 = vset.pattern.permute.xlu0 0
      %897 = vperm.xlu0 %896, %v846
      %v898 = vpop.permute.xlu0 %897
      %899 = vset.pattern.permute.xlu0 0
      %900 = vperm.xlu0 %899, %v847
      %v901 = vpop.permute.xlu0 %900
      %902 = vset.pattern.permute.xlu0 0
      %903 = vperm.xlu0 %902, %v848
      %v904 = vpop.permute.xlu0 %903
      %905 = vset.pattern.permute.xlu0 0
      %906 = vperm.xlu0 %905, %v849
      %v907 = vpop.permute.xlu0 %906
      %908 = vset.pattern.permute.xlu0 0
      %909 = vperm.xlu0 %908, %v850
      %v910 = vpop.permute.xlu0 %909
      %911 = vset.pattern.permute.xlu0 0
      %912 = vperm.xlu0 %911, %v851
      %v913 = vpop.permute.xlu0 %912
      %914 = vset.pattern.permute.xlu0 0
      %915 = vperm.xlu0 %914, %v852
      %v916 = vpop.permute.xlu0 %915
      %917 = vset.pattern.permute.xlu0 0
      %918 = vperm.xlu0 %917, %v853
      %v919 = vpop.permute.xlu0 %918
      %920 = vset.pattern.permute.xlu0 0
      %921 = vperm.xlu0 %920, %v854
      %v922 = vpop.permute.xlu0 %921
      %923 = vset.pattern.permute.xlu0 0
      %924 = vperm.xlu0 %923, %v855
      %v925 = vpop.permute.xlu0 %924
      %926 = vset.pattern.permute.xlu0 0
      %927 = vperm.xlu0 %926, %v856
      %v928 = vpop.permute.xlu0 %927
      %929 = vset.pattern.permute.xlu0 0
      %930 = vperm.xlu0 %929, %v857
      %v931 = vpop.permute.xlu0 %930
      %932 = vset.pattern.permute.xlu0 0
      %933 = vperm.xlu0 %932, %v858
      %v934 = vpop.permute.xlu0 %933
      %935 = vset.pattern.permute.xlu0 0
      %936 = vperm.xlu0 %935, %v859
      %v937 = vpop.permute.xlu0 %936
      %938 = vset.pattern.permute.xlu0 0
      %939 = vperm.xlu0 %938, %v860
      %v940 = vpop.permute.xlu0 %939
      %941 = vset.pattern.permute.xlu0 0
      %942 = vperm.xlu0 %941, %v861
      %v943 = vpop.permute.xlu0 %942
      %944 = vset.pattern.permute.xlu0 0
      %945 = vperm.xlu0 %944, %v862
      %v946 = vpop.permute.xlu0 %945
      %947 = vset.pattern.permute.xlu0 0
      %948 = vperm.xlu0 %947, %v863
      %v949 = vpop.permute.xlu0 %948
      %950 = vset.pattern.permute.xlu0 0
      %951 = vperm.xlu0 %950, %v864
      %v952 = vpop.permute.xlu0 %951
      %953 = vset.pattern.permute.xlu0 0
      %954 = vperm.xlu0 %953, %v865
      %v955 = vpop.permute.xlu0 %954
      %956 = vset.pattern.permute.xlu0 0
      %957 = vperm.xlu0 %956, %v866
      %v958 = vpop.permute.xlu0 %957
      %959 = vset.pattern.permute.xlu0 0
      %960 = vperm.xlu0 %959, %v867
      %v961 = vpop.permute.xlu0 %960
      %962 = vset.pattern.permute.xlu0 0
      %963 = vperm.xlu0 %962, %v868
      %v964 = vpop.permute.xlu0 %963
      %vm965 = vcmp.eq.s32.totalorder %v871, 1
      %vm966 = vcmp.eq.s32.totalorder %v874, 1
      %vm967 = vcmp.eq.s32.totalorder %v877, 1
      %vm968 = vcmp.eq.s32.totalorder %v880, 1
      %vm969 = vcmp.eq.s32.totalorder %v883, 1
      %vm970 = vcmp.eq.s32.totalorder %v886, 1
      %vm971 = vcmp.eq.s32.totalorder %v889, 1
      %vm972 = vcmp.eq.s32.totalorder %v892, 1
      %vm973 = vcmp.eq.s32.totalorder %v895, 1
      %vm974 = vcmp.eq.s32.totalorder %v898, 1
      %vm975 = vcmp.eq.s32.totalorder %v901, 1
      %vm976 = vcmp.eq.s32.totalorder %v904, 1
      %vm977 = vcmp.eq.s32.totalorder %v907, 1
      %vm978 = vcmp.eq.s32.totalorder %v910, 1
      %vm979 = vcmp.eq.s32.totalorder %v913, 1
      %vm980 = vcmp.eq.s32.totalorder %v916, 1
      %vm981 = vcmp.eq.s32.totalorder %v919, 1
      %vm982 = vcmp.eq.s32.totalorder %v922, 1
      %vm983 = vcmp.eq.s32.totalorder %v925, 1
      %vm984 = vcmp.eq.s32.totalorder %v928, 1
      %vm985 = vcmp.eq.s32.totalorder %v931, 1
      %vm986 = vcmp.eq.s32.totalorder %v934, 1
      %vm987 = vcmp.eq.s32.totalorder %v937, 1
      %vm988 = vcmp.eq.s32.totalorder %v940, 1
      %vm989 = vcmp.eq.s32.totalorder %v943, 1
      %vm990 = vcmp.eq.s32.totalorder %v946, 1
      %vm991 = vcmp.eq.s32.totalorder %v949, 1
      %vm992 = vcmp.eq.s32.totalorder %v952, 1
      %vm993 = vcmp.eq.s32.totalorder %v955, 1
      %vm994 = vcmp.eq.s32.totalorder %v958, 1
      %vm995 = vcmp.eq.s32.totalorder %v961, 1
      %vm996 = vcmp.eq.s32.totalorder %v964, 1
      %vm997 = vmand %vm773, %vm965
      %vm998 = vmand %vm774, %vm966
      %vm999 = vmand %vm775, %vm967
      %vm1000 = vmand %vm776, %vm968
      %vm1001 = vmand %vm777, %vm969
      %vm1002 = vmand %vm778, %vm970
      %vm1003 = vmand %vm779, %vm971
      %vm1004 = vmand %vm780, %vm972
      %vm1005 = vmand %vm781, %vm973
      %vm1006 = vmand %vm782, %vm974
      %vm1007 = vmand %vm783, %vm975
      %vm1008 = vmand %vm784, %vm976
      %vm1009 = vmand %vm785, %vm977
      %vm1010 = vmand %vm786, %vm978
      %vm1011 = vmand %vm787, %vm979
      %vm1012 = vmand %vm788, %vm980
      %vm1013 = vmand %vm789, %vm981
      %vm1014 = vmand %vm790, %vm982
      %vm1015 = vmand %vm791, %vm983
      %vm1016 = vmand %vm792, %vm984
      %vm1017 = vmand %vm793, %vm985
      %vm1018 = vmand %vm794, %vm986
      %vm1019 = vmand %vm795, %vm987
      %vm1020 = vmand %vm796, %vm988
      %vm1021 = vmand %vm797, %vm989
      %vm1022 = vmand %vm798, %vm990
      %vm1023 = vmand %vm799, %vm991
      %vm1024 = vmand %vm800, %vm992
      %vm1025 = vmand %vm801, %vm993
      %vm1026 = vmand %vm802, %vm994
      %vm1027 = vmand %vm803, %vm995
      %vm1028 = vmand %vm804, %vm996
      %v1029 = vsel %vm997, %v514, -1e+30
      %v1030 = vsel %vm998, %v517, -1e+30
      %v1031 = vsel %vm999, %v522, -1e+30
      %v1032 = vsel %vm1000, %v525, -1e+30
      %v1033 = vsel %vm1001, %v530, -1e+30
      %v1034 = vsel %vm1002, %v533, -1e+30
      %v1035 = vsel %vm1003, %v538, -1e+30
      %v1036 = vsel %vm1004, %v541, -1e+30
      %v1037 = vsel %vm1005, %v546, -1e+30
      %v1038 = vsel %vm1006, %v549, -1e+30
      %v1039 = vsel %vm1007, %v554, -1e+30
      %v1040 = vsel %vm1008, %v557, -1e+30
      %v1041 = vsel %vm1009, %v562, -1e+30
      %v1042 = vsel %vm1010, %v565, -1e+30
      %v1043 = vsel %vm1011, %v570, -1e+30
      %v1044 = vsel %vm1012, %v573, -1e+30
      %v1045 = vsel %vm1013, %v578, -1e+30
      %v1046 = vsel %vm1014, %v581, -1e+30
      %v1047 = vsel %vm1015, %v586, -1e+30
      %v1048 = vsel %vm1016, %v589, -1e+30
      %v1049 = vsel %vm1017, %v594, -1e+30
      %v1050 = vsel %vm1018, %v597, -1e+30
      %v1051 = vsel %vm1019, %v602, -1e+30
      %v1052 = vsel %vm1020, %v605, -1e+30
      %v1053 = vsel %vm1021, %v610, -1e+30
      %v1054 = vsel %vm1022, %v613, -1e+30
      %v1055 = vsel %vm1023, %v618, -1e+30
      %v1056 = vsel %vm1024, %v621, -1e+30
      %v1057 = vsel %vm1025, %v626, -1e+30
      %v1058 = vsel %vm1026, %v629, -1e+30
      %v1059 = vsel %vm1027, %v634, -1e+30
      %v1060 = vsel %vm1028, %v637, -1e+30
      %v1061 = vld [vmem:[#allocation2] sm:$0xff]
      %v1062 = vld [vmem:[#allocation2 + $0x8] sm:$0xff]
      %v1063 = vld [vmem:[#allocation2 + $0x10] sm:$0xff]
      %v1064 = vld [vmem:[#allocation2 + $0x18] sm:$0xff]
      %v1065 = vld [vmem:[#allocation2 + $0x20] sm:$0xff]
      %v1066 = vld [vmem:[#allocation2 + $0x28] sm:$0xff]
      %v1067 = vld [vmem:[#allocation2 + $0x30] sm:$0xff]
      %v1068 = vld [vmem:[#allocation2 + $0x38] sm:$0xff]
      %v1069 = vld [vmem:[#allocation2 + $0x40] sm:$0xff]
      %v1070 = vld [vmem:[#allocation2 + $0x48] sm:$0xff]
      %v1071 = vld [vmem:[#allocation2 + $0x50] sm:$0xff]
      %v1072 = vld [vmem:[#allocation2 + $0x58] sm:$0xff]
      %v1073 = vld [vmem:[#allocation2 + $0x60] sm:$0xff]
      %v1074 = vld [vmem:[#allocation2 + $0x68] sm:$0xff]
      %v1075 = vld [vmem:[#allocation2 + $0x70] sm:$0xff]
      %v1076 = vld [vmem:[#allocation2 + $0x78] sm:$0xff]
      %v1077 = vld [vmem:[#allocation2 + $0x80] sm:$0xff]
      %v1078 = vld [vmem:[#allocation2 + $0x88] sm:$0xff]
      %v1079 = vld [vmem:[#allocation2 + $0x90] sm:$0xff]
      %v1080 = vld [vmem:[#allocation2 + $0x98] sm:$0xff]
      %v1081 = vld [vmem:[#allocation2 + $0xa0] sm:$0xff]
      %v1082 = vld [vmem:[#allocation2 + $0xa8] sm:$0xff]
      %v1083 = vld [vmem:[#allocation2 + $0xb0] sm:$0xff]
      %v1084 = vld [vmem:[#allocation2 + $0xb8] sm:$0xff]
      %v1085 = vld [vmem:[#allocation2 + $0xc0] sm:$0xff]
      %v1086 = vld [vmem:[#allocation2 + $0xc8] sm:$0xff]
      %v1087 = vld [vmem:[#allocation2 + $0xd0] sm:$0xff]
      %v1088 = vld [vmem:[#allocation2 + $0xd8] sm:$0xff]
      %v1089 = vld [vmem:[#allocation2 + $0xe0] sm:$0xff]
      %v1090 = vld [vmem:[#allocation2 + $0xe8] sm:$0xff]
      %v1091 = vld [vmem:[#allocation2 + $0xf0] sm:$0xff]
      %v1092 = vld [vmem:[#allocation2 + $0xf8] sm:$0xff]
      %1093 = vmax.xlane.f32.xlu0 %v1029
      %v1094 = vpop.xlane.xlu0 %1093
      %1095 = vmax.xlane.f32.xlu0 %v1030
      %v1096 = vpop.xlane.xlu0 %1095
      %1097 = vmax.xlane.f32.xlu0 %v1031
      %v1098 = vpop.xlane.xlu0 %1097
      %1099 = vmax.xlane.f32.xlu0 %v1032
      %v1100 = vpop.xlane.xlu0 %1099
      %1101 = vmax.xlane.f32.xlu0 %v1033
      %v1102 = vpop.xlane.xlu0 %1101
      %1103 = vmax.xlane.f32.xlu0 %v1034
      %v1104 = vpop.xlane.xlu0 %1103
      %1105 = vmax.xlane.f32.xlu0 %v1035
      %v1106 = vpop.xlane.xlu0 %1105
      %1107 = vmax.xlane.f32.xlu0 %v1036
      %v1108 = vpop.xlane.xlu0 %1107
      %1109 = vmax.xlane.f32.xlu0 %v1037
      %v1110 = vpop.xlane.xlu0 %1109
      %1111 = vmax.xlane.f32.xlu0 %v1038
      %v1112 = vpop.xlane.xlu0 %1111
      %1113 = vmax.xlane.f32.xlu0 %v1039
      %v1114 = vpop.xlane.xlu0 %1113
      %1115 = vmax.xlane.f32.xlu0 %v1040
      %v1116 = vpop.xlane.xlu0 %1115
      %1117 = vmax.xlane.f32.xlu0 %v1041
      %v1118 = vpop.xlane.xlu0 %1117
      %1119 = vmax.xlane.f32.xlu0 %v1042
      %v1120 = vpop.xlane.xlu0 %1119
      %1121 = vmax.xlane.f32.xlu0 %v1043
      %v1122 = vpop.xlane.xlu0 %1121
      %1123 = vmax.xlane.f32.xlu0 %v1044
      %v1124 = vpop.xlane.xlu0 %1123
      %1125 = vmax.xlane.f32.xlu0 %v1045
      %v1126 = vpop.xlane.xlu0 %1125
      %1127 = vmax.xlane.f32.xlu0 %v1046
      %v1128 = vpop.xlane.xlu0 %1127
      %1129 = vmax.xlane.f32.xlu0 %v1047
      %v1130 = vpop.xlane.xlu0 %1129
      %1131 = vmax.xlane.f32.xlu0 %v1048
      %v1132 = vpop.xlane.xlu0 %1131
      %1133 = vmax.xlane.f32.xlu0 %v1049
      %v1134 = vpop.xlane.xlu0 %1133
      %1135 = vmax.xlane.f32.xlu0 %v1050
      %v1136 = vpop.xlane.xlu0 %1135
      %1137 = vmax.xlane.f32.xlu0 %v1051
      %v1138 = vpop.xlane.xlu0 %1137
      %1139 = vmax.xlane.f32.xlu0 %v1052
      %v1140 = vpop.xlane.xlu0 %1139
      %1141 = vmax.xlane.f32.xlu0 %v1053
      %v1142 = vpop.xlane.xlu0 %1141
      %1143 = vmax.xlane.f32.xlu0 %v1054
      %v1144 = vpop.xlane.xlu0 %1143
      %1145 = vmax.xlane.f32.xlu0 %v1055
      %v1146 = vpop.xlane.xlu0 %1145
      %1147 = vmax.xlane.f32.xlu0 %v1056
      %v1148 = vpop.xlane.xlu0 %1147
      %1149 = vmax.xlane.f32.xlu0 %v1057
      %v1150 = vpop.xlane.xlu0 %1149
      %1151 = vmax.xlane.f32.xlu0 %v1058
      %v1152 = vpop.xlane.xlu0 %1151
      %1153 = vmax.xlane.f32.xlu0 %v1059
      %v1154 = vpop.xlane.xlu0 %1153
      %1155 = vmax.xlane.f32.xlu0 %v1060
      %v1156 = vpop.xlane.xlu0 %1155
      %v1157 = vmax.f32 %v1061, %v1094
      %v1158 = vmax.f32 %v1062, %v1096
      %v1159 = vmax.f32 %v1063, %v1098
      %v1160 = vmax.f32 %v1064, %v1100
      %v1161 = vmax.f32 %v1065, %v1102
      %v1162 = vmax.f32 %v1066, %v1104
      %v1163 = vmax.f32 %v1067, %v1106
      %v1164 = vmax.f32 %v1068, %v1108
      %v1165 = vmax.f32 %v1069, %v1110
      %v1166 = vmax.f32 %v1070, %v1112
      %v1167 = vmax.f32 %v1071, %v1114
      %v1168 = vmax.f32 %v1072, %v1116
      %v1169 = vmax.f32 %v1073, %v1118
      %v1170 = vmax.f32 %v1074, %v1120
      %v1171 = vmax.f32 %v1075, %v1122
      %v1172 = vmax.f32 %v1076, %v1124
      %v1173 = vmax.f32 %v1077, %v1126
      %v1174 = vmax.f32 %v1078, %v1128
      %v1175 = vmax.f32 %v1079, %v1130
      %v1176 = vmax.f32 %v1080, %v1132
      %v1177 = vmax.f32 %v1081, %v1134
      %v1178 = vmax.f32 %v1082, %v1136
      %v1179 = vmax.f32 %v1083, %v1138
      %v1180 = vmax.f32 %v1084, %v1140
      %v1181 = vmax.f32 %v1085, %v1142
      %v1182 = vmax.f32 %v1086, %v1144
      %v1183 = vmax.f32 %v1087, %v1146
      %v1184 = vmax.f32 %v1088, %v1148
      %v1185 = vmax.f32 %v1089, %v1150
      %v1186 = vmax.f32 %v1090, %v1152
      %v1187 = vmax.f32 %v1091, %v1154
      %v1188 = vmax.f32 %v1092, %v1156
      %v1189 = vsub.f32 %v1061, %v1157
      %v1190 = vsub.f32 %v1062, %v1158
      %v1191 = vsub.f32 %v1063, %v1159
      %v1192 = vsub.f32 %v1064, %v1160
      %v1193 = vsub.f32 %v1065, %v1161
      %v1194 = vsub.f32 %v1066, %v1162
      %v1195 = vsub.f32 %v1067, %v1163
      %v1196 = vsub.f32 %v1068, %v1164
      %v1197 = vsub.f32 %v1069, %v1165
      %v1198 = vsub.f32 %v1070, %v1166
      %v1199 = vsub.f32 %v1071, %v1167
      %v1200 = vsub.f32 %v1072, %v1168
      %v1201 = vsub.f32 %v1073, %v1169
      %v1202 = vsub.f32 %v1074, %v1170
      %v1203 = vsub.f32 %v1075, %v1171
      %v1204 = vsub.f32 %v1076, %v1172
      %v1205 = vsub.f32 %v1077, %v1173
      %v1206 = vsub.f32 %v1078, %v1174
      %v1207 = vsub.f32 %v1079, %v1175
      %v1208 = vsub.f32 %v1080, %v1176
      %v1209 = vsub.f32 %v1081, %v1177
      %v1210 = vsub.f32 %v1082, %v1178
      %v1211 = vsub.f32 %v1083, %v1179
      %v1212 = vsub.f32 %v1084, %v1180
      %v1213 = vsub.f32 %v1085, %v1181
      %v1214 = vsub.f32 %v1086, %v1182
      %v1215 = vsub.f32 %v1087, %v1183
      %v1216 = vsub.f32 %v1088, %v1184
      %v1217 = vsub.f32 %v1089, %v1185
      %v1218 = vsub.f32 %v1090, %v1186
      %v1219 = vsub.f32 %v1091, %v1187
      %v1220 = vsub.f32 %v1092, %v1188
      %v1221 = vmul.f32 %v1189, 1.442695
      %v1222 = vpow.pop %v1221
      %v1223 = vmul.f32 %v1190, 1.442695
      %v1224 = vpow.pop %v1223
      %v1225 = vmul.f32 %v1191, 1.442695
      %v1226 = vpow.pop %v1225
      %v1227 = vmul.f32 %v1192, 1.442695
      %v1228 = vpow.pop %v1227
      %v1229 = vmul.f32 %v1193, 1.442695
      %v1230 = vpow.pop %v1229
      %v1231 = vmul.f32 %v1194, 1.442695
      %v1232 = vpow.pop %v1231
      %v1233 = vmul.f32 %v1195, 1.442695
      %v1234 = vpow.pop %v1233
      %v1235 = vmul.f32 %v1196, 1.442695
      %v1236 = vpow.pop %v1235
      %v1237 = vmul.f32 %v1197, 1.442695
      %v1238 = vpow.pop %v1237
      %v1239 = vmul.f32 %v1198, 1.442695
      %v1240 = vpow.pop %v1239
      %v1241 = vmul.f32 %v1199, 1.442695
      %v1242 = vpow.pop %v1241
      %v1243 = vmul.f32 %v1200, 1.442695
      %v1244 = vpow.pop %v1243
      %v1245 = vmul.f32 %v1201, 1.442695
      %v1246 = vpow.pop %v1245
      %v1247 = vmul.f32 %v1202, 1.442695
      %v1248 = vpow.pop %v1247
      %v1249 = vmul.f32 %v1203, 1.442695
      %v1250 = vpow.pop %v1249
      %v1251 = vmul.f32 %v1204, 1.442695
      %v1252 = vpow.pop %v1251
      %v1253 = vmul.f32 %v1205, 1.442695
      %v1254 = vpow.pop %v1253
      %v1255 = vmul.f32 %v1206, 1.442695
      %v1256 = vpow.pop %v1255
      %v1257 = vmul.f32 %v1207, 1.442695
      %v1258 = vpow.pop %v1257
      %v1259 = vmul.f32 %v1208, 1.442695
      %v1260 = vpow.pop %v1259
      %v1261 = vmul.f32 %v1209, 1.442695
      %v1262 = vpow.pop %v1261
      %v1263 = vmul.f32 %v1210, 1.442695
      %v1264 = vpow.pop %v1263
      %v1265 = vmul.f32 %v1211, 1.442695
      %v1266 = vpow.pop %v1265
      %v1267 = vmul.f32 %v1212, 1.442695
      %v1268 = vpow.pop %v1267
      %v1269 = vmul.f32 %v1213, 1.442695
      %v1270 = vpow.pop %v1269
      %v1271 = vmul.f32 %v1214, 1.442695
      %v1272 = vpow.pop %v1271
      %v1273 = vmul.f32 %v1215, 1.442695
      %v1274 = vpow.pop %v1273
      %v1275 = vmul.f32 %v1216, 1.442695
      %v1276 = vpow.pop %v1275
      %v1277 = vmul.f32 %v1217, 1.442695
      %v1278 = vpow.pop %v1277
      %v1279 = vmul.f32 %v1218, 1.442695
      %v1280 = vpow.pop %v1279
      %v1281 = vmul.f32 %v1219, 1.442695
      %v1282 = vpow.pop %v1281
      %v1283 = vmul.f32 %v1220, 1.442695
      %v1284 = vpow.pop %v1283
      %1286 = vset.pattern.permute.xlu0 0
      %1287 = vperm.xlu0 %1286, %v1157
      %v1288 = vpop.permute.xlu0 %1287
      %1291 = vset.pattern.permute.xlu0 0
      %1292 = vperm.xlu0 %1291, %v1158
      %v1293 = vpop.permute.xlu0 %1292
      %1296 = vset.pattern.permute.xlu0 0
      %1297 = vperm.xlu0 %1296, %v1159
      %v1298 = vpop.permute.xlu0 %1297
      %1301 = vset.pattern.permute.xlu0 0
      %1302 = vperm.xlu0 %1301, %v1160
      %v1303 = vpop.permute.xlu0 %1302
      %1306 = vset.pattern.permute.xlu0 0
      %1307 = vperm.xlu0 %1306, %v1161
      %v1308 = vpop.permute.xlu0 %1307
      %1311 = vset.pattern.permute.xlu0 0
      %1312 = vperm.xlu0 %1311, %v1162
      %v1313 = vpop.permute.xlu0 %1312
      %1316 = vset.pattern.permute.xlu0 0
      %1317 = vperm.xlu0 %1316, %v1163
      %v1318 = vpop.permute.xlu0 %1317
      %1321 = vset.pattern.permute.xlu0 0
      %1322 = vperm.xlu0 %1321, %v1164
      %v1323 = vpop.permute.xlu0 %1322
      %1326 = vset.pattern.permute.xlu0 0
      %1327 = vperm.xlu0 %1326, %v1165
      %v1328 = vpop.permute.xlu0 %1327
      %1331 = vset.pattern.permute.xlu0 0
      %1332 = vperm.xlu0 %1331, %v1166
      %v1333 = vpop.permute.xlu0 %1332
      %1336 = vset.pattern.permute.xlu0 0
      %1337 = vperm.xlu0 %1336, %v1167
      %v1338 = vpop.permute.xlu0 %1337
      %1341 = vset.pattern.permute.xlu0 0
      %1342 = vperm.xlu0 %1341, %v1168
      %v1343 = vpop.permute.xlu0 %1342
      %1346 = vset.pattern.permute.xlu0 0
      %1347 = vperm.xlu0 %1346, %v1169
      %v1348 = vpop.permute.xlu0 %1347
      %1351 = vset.pattern.permute.xlu0 0
      %1352 = vperm.xlu0 %1351, %v1170
      %v1353 = vpop.permute.xlu0 %1352
      %1356 = vset.pattern.permute.xlu0 0
      %1357 = vperm.xlu0 %1356, %v1171
      %v1358 = vpop.permute.xlu0 %1357
      %1361 = vset.pattern.permute.xlu0 0
      %1362 = vperm.xlu0 %1361, %v1172
      %v1363 = vpop.permute.xlu0 %1362
      %1366 = vset.pattern.permute.xlu0 0
      %1367 = vperm.xlu0 %1366, %v1173
      %v1368 = vpop.permute.xlu0 %1367
      %1371 = vset.pattern.permute.xlu0 0
      %1372 = vperm.xlu0 %1371, %v1174
      %v1373 = vpop.permute.xlu0 %1372
      %1376 = vset.pattern.permute.xlu0 0
      %1377 = vperm.xlu0 %1376, %v1175
      %v1378 = vpop.permute.xlu0 %1377
      %1381 = vset.pattern.permute.xlu0 0
      %1382 = vperm.xlu0 %1381, %v1176
      %v1383 = vpop.permute.xlu0 %1382
      %1386 = vset.pattern.permute.xlu0 0
      %1387 = vperm.xlu0 %1386, %v1177
      %v1388 = vpop.permute.xlu0 %1387
      %1391 = vset.pattern.permute.xlu0 0
      %1392 = vperm.xlu0 %1391, %v1178
      %v1393 = vpop.permute.xlu0 %1392
      %1396 = vset.pattern.permute.xlu0 0
      %1397 = vperm.xlu0 %1396, %v1179
      %v1398 = vpop.permute.xlu0 %1397
      %1401 = vset.pattern.permute.xlu0 0
      %1402 = vperm.xlu0 %1401, %v1180
      %v1403 = vpop.permute.xlu0 %1402
      %1406 = vset.pattern.permute.xlu0 0
      %1407 = vperm.xlu0 %1406, %v1181
      %v1408 = vpop.permute.xlu0 %1407
      %1411 = vset.pattern.permute.xlu0 0
      %1412 = vperm.xlu0 %1411, %v1182
      %v1413 = vpop.permute.xlu0 %1412
      %1416 = vset.pattern.permute.xlu0 0
      %1417 = vperm.xlu0 %1416, %v1183
      %v1418 = vpop.permute.xlu0 %1417
      %1421 = vset.pattern.permute.xlu0 0
      %1422 = vperm.xlu0 %1421, %v1184
      %v1423 = vpop.permute.xlu0 %1422
      %1426 = vset.pattern.permute.xlu0 0
      %1427 = vperm.xlu0 %1426, %v1185
      %v1428 = vpop.permute.xlu0 %1427
      %1431 = vset.pattern.permute.xlu0 0
      %1432 = vperm.xlu0 %1431, %v1186
      %v1433 = vpop.permute.xlu0 %1432
      %1436 = vset.pattern.permute.xlu0 0
      %1437 = vperm.xlu0 %1436, %v1187
      %v1438 = vpop.permute.xlu0 %1437
      %1441 = vset.pattern.permute.xlu0 0
      %1442 = vperm.xlu0 %1441, %v1188
      %v1443 = vpop.permute.xlu0 %1442
      %v1445 = vsub.f32 %v1029, %v1288
      %v1446 = vsub.f32 %v1030, %v1293
      %v1447 = vsub.f32 %v1031, %v1298
      %v1448 = vsub.f32 %v1032, %v1303
      %v1449 = vsub.f32 %v1033, %v1308
      %v1450 = vsub.f32 %v1034, %v1313
      %v1451 = vsub.f32 %v1035, %v1318
      %v1452 = vsub.f32 %v1036, %v1323
      %v1453 = vsub.f32 %v1037, %v1328
      %v1454 = vsub.f32 %v1038, %v1333
      %v1455 = vsub.f32 %v1039, %v1338
      %v1456 = vsub.f32 %v1040, %v1343
      %v1457 = vsub.f32 %v1041, %v1348
      %v1458 = vsub.f32 %v1042, %v1353
      %v1459 = vsub.f32 %v1043, %v1358
      %v1460 = vsub.f32 %v1044, %v1363
      %v1461 = vsub.f32 %v1045, %v1368
      %v1462 = vsub.f32 %v1046, %v1373
      %v1463 = vsub.f32 %v1047, %v1378
      %v1464 = vsub.f32 %v1048, %v1383
      %v1465 = vsub.f32 %v1049, %v1388
      %v1466 = vsub.f32 %v1050, %v1393
      %v1467 = vsub.f32 %v1051, %v1398
      %v1468 = vsub.f32 %v1052, %v1403
      %v1469 = vsub.f32 %v1053, %v1408
      %v1470 = vsub.f32 %v1054, %v1413
      %v1471 = vsub.f32 %v1055, %v1418
      %v1472 = vsub.f32 %v1056, %v1423
      %v1473 = vsub.f32 %v1057, %v1428
      %v1474 = vsub.f32 %v1058, %v1433
      %v1475 = vsub.f32 %v1059, %v1438
      %v1476 = vsub.f32 %v1060, %v1443
      %v1477 = vmul.f32 %v1445, 1.442695
      %v1478 = vpow.pop %v1477
      %v1479 = vmul.f32 %v1446, 1.442695
      %v1480 = vpow.pop %v1479
      %v1481 = vmul.f32 %v1447, 1.442695
      %v1482 = vpow.pop %v1481
      %v1483 = vmul.f32 %v1448, 1.442695
      %v1484 = vpow.pop %v1483
      %v1485 = vmul.f32 %v1449, 1.442695
      %v1486 = vpow.pop %v1485
      %v1487 = vmul.f32 %v1450, 1.442695
      %v1488 = vpow.pop %v1487
      %v1489 = vmul.f32 %v1451, 1.442695
      %v1490 = vpow.pop %v1489
      %v1491 = vmul.f32 %v1452, 1.442695
      %v1492 = vpow.pop %v1491
      %v1493 = vmul.f32 %v1453, 1.442695
      %v1494 = vpow.pop %v1493
      %v1495 = vmul.f32 %v1454, 1.442695
      %v1496 = vpow.pop %v1495
      %v1497 = vmul.f32 %v1455, 1.442695
      %v1498 = vpow.pop %v1497
      %v1499 = vmul.f32 %v1456, 1.442695
      %v1500 = vpow.pop %v1499
      %v1501 = vmul.f32 %v1457, 1.442695
      %v1502 = vpow.pop %v1501
      %v1503 = vmul.f32 %v1458, 1.442695
      %v1504 = vpow.pop %v1503
      %v1505 = vmul.f32 %v1459, 1.442695
      %v1506 = vpow.pop %v1505
      %v1507 = vmul.f32 %v1460, 1.442695
      %v1508 = vpow.pop %v1507
      %v1509 = vmul.f32 %v1461, 1.442695
      %v1510 = vpow.pop %v1509
      %v1511 = vmul.f32 %v1462, 1.442695
      %v1512 = vpow.pop %v1511
      %v1513 = vmul.f32 %v1463, 1.442695
      %v1514 = vpow.pop %v1513
      %v1515 = vmul.f32 %v1464, 1.442695
      %v1516 = vpow.pop %v1515
      %v1517 = vmul.f32 %v1465, 1.442695
      %v1518 = vpow.pop %v1517
      %v1519 = vmul.f32 %v1466, 1.442695
      %v1520 = vpow.pop %v1519
      %v1521 = vmul.f32 %v1467, 1.442695
      %v1522 = vpow.pop %v1521
      %v1523 = vmul.f32 %v1468, 1.442695
      %v1524 = vpow.pop %v1523
      %v1525 = vmul.f32 %v1469, 1.442695
      %v1526 = vpow.pop %v1525
      %v1527 = vmul.f32 %v1470, 1.442695
      %v1528 = vpow.pop %v1527
      %v1529 = vmul.f32 %v1471, 1.442695
      %v1530 = vpow.pop %v1529
      %v1531 = vmul.f32 %v1472, 1.442695
      %v1532 = vpow.pop %v1531
      %v1533 = vmul.f32 %v1473, 1.442695
      %v1534 = vpow.pop %v1533
      %v1535 = vmul.f32 %v1474, 1.442695
      %v1536 = vpow.pop %v1535
      %v1537 = vmul.f32 %v1475, 1.442695
      %v1538 = vpow.pop %v1537
      %v1539 = vmul.f32 %v1476, 1.442695
      %v1540 = vpow.pop %v1539
      %v1541 = vld [vmem:[#allocation3] sm:$0xff]
      %v1542 = vld [vmem:[#allocation3 + $0x8] sm:$0xff]
      %v1543 = vld [vmem:[#allocation3 + $0x10] sm:$0xff]
      %v1544 = vld [vmem:[#allocation3 + $0x18] sm:$0xff]
      %v1545 = vld [vmem:[#allocation3 + $0x20] sm:$0xff]
      %v1546 = vld [vmem:[#allocation3 + $0x28] sm:$0xff]
      %v1547 = vld [vmem:[#allocation3 + $0x30] sm:$0xff]
      %v1548 = vld [vmem:[#allocation3 + $0x38] sm:$0xff]
      %v1549 = vld [vmem:[#allocation3 + $0x40] sm:$0xff]
      %v1550 = vld [vmem:[#allocation3 + $0x48] sm:$0xff]
      %v1551 = vld [vmem:[#allocation3 + $0x50] sm:$0xff]
      %v1552 = vld [vmem:[#allocation3 + $0x58] sm:$0xff]
      %v1553 = vld [vmem:[#allocation3 + $0x60] sm:$0xff]
      %v1554 = vld [vmem:[#allocation3 + $0x68] sm:$0xff]
      %v1555 = vld [vmem:[#allocation3 + $0x70] sm:$0xff]
      %v1556 = vld [vmem:[#allocation3 + $0x78] sm:$0xff]
      %v1557 = vld [vmem:[#allocation3 + $0x80] sm:$0xff]
      %v1558 = vld [vmem:[#allocation3 + $0x88] sm:$0xff]
      %v1559 = vld [vmem:[#allocation3 + $0x90] sm:$0xff]
      %v1560 = vld [vmem:[#allocation3 + $0x98] sm:$0xff]
      %v1561 = vld [vmem:[#allocation3 + $0xa0] sm:$0xff]
      %v1562 = vld [vmem:[#allocation3 + $0xa8] sm:$0xff]
      %v1563 = vld [vmem:[#allocation3 + $0xb0] sm:$0xff]
      %v1564 = vld [vmem:[#allocation3 + $0xb8] sm:$0xff]
      %v1565 = vld [vmem:[#allocation3 + $0xc0] sm:$0xff]
      %v1566 = vld [vmem:[#allocation3 + $0xc8] sm:$0xff]
      %v1567 = vld [vmem:[#allocation3 + $0xd0] sm:$0xff]
      %v1568 = vld [vmem:[#allocation3 + $0xd8] sm:$0xff]
      %v1569 = vld [vmem:[#allocation3 + $0xe0] sm:$0xff]
      %v1570 = vld [vmem:[#allocation3 + $0xe8] sm:$0xff]
      %v1571 = vld [vmem:[#allocation3 + $0xf0] sm:$0xff]
      %v1572 = vld [vmem:[#allocation3 + $0xf8] sm:$0xff]
      %v1573 = vmul.f32 %v1222, %v1541
      %v1574 = vmul.f32 %v1224, %v1542
      %v1575 = vmul.f32 %v1226, %v1543
      %v1576 = vmul.f32 %v1228, %v1544
      %v1577 = vmul.f32 %v1230, %v1545
      %v1578 = vmul.f32 %v1232, %v1546
      %v1579 = vmul.f32 %v1234, %v1547
      %v1580 = vmul.f32 %v1236, %v1548
      %v1581 = vmul.f32 %v1238, %v1549
      %v1582 = vmul.f32 %v1240, %v1550
      %v1583 = vmul.f32 %v1242, %v1551
      %v1584 = vmul.f32 %v1244, %v1552
      %v1585 = vmul.f32 %v1246, %v1553
      %v1586 = vmul.f32 %v1248, %v1554
      %v1587 = vmul.f32 %v1250, %v1555
      %v1588 = vmul.f32 %v1252, %v1556
      %v1589 = vmul.f32 %v1254, %v1557
      %v1590 = vmul.f32 %v1256, %v1558
      %v1591 = vmul.f32 %v1258, %v1559
      %v1592 = vmul.f32 %v1260, %v1560
      %v1593 = vmul.f32 %v1262, %v1561
      %v1594 = vmul.f32 %v1264, %v1562
      %v1595 = vmul.f32 %v1266, %v1563
      %v1596 = vmul.f32 %v1268, %v1564
      %v1597 = vmul.f32 %v1270, %v1565
      %v1598 = vmul.f32 %v1272, %v1566
      %v1599 = vmul.f32 %v1274, %v1567
      %v1600 = vmul.f32 %v1276, %v1568
      %v1601 = vmul.f32 %v1278, %v1569
      %v1602 = vmul.f32 %v1280, %v1570
      %v1603 = vmul.f32 %v1282, %v1571
      %v1604 = vmul.f32 %v1284, %v1572
      %1605 = vadd.xlane.f32.xlu0 %v1478
      %v1606 = vpop.xlane.xlu0 %1605
      %1607 = vadd.xlane.f32.xlu0 %v1480
      %v1608 = vpop.xlane.xlu0 %1607
      %1609 = vadd.xlane.f32.xlu0 %v1482
      %v1610 = vpop.xlane.xlu0 %1609
      %1611 = vadd.xlane.f32.xlu0 %v1484
      %v1612 = vpop.xlane.xlu0 %1611
      %1613 = vadd.xlane.f32.xlu0 %v1486
      %v1614 = vpop.xlane.xlu0 %1613
      %1615 = vadd.xlane.f32.xlu0 %v1488
      %v1616 = vpop.xlane.xlu0 %1615
      %1617 = vadd.xlane.f32.xlu0 %v1490
      %v1618 = vpop.xlane.xlu0 %1617
      %1619 = vadd.xlane.f32.xlu0 %v1492
      %v1620 = vpop.xlane.xlu0 %1619
      %1621 = vadd.xlane.f32.xlu0 %v1494
      %v1622 = vpop.xlane.xlu0 %1621
      %1623 = vadd.xlane.f32.xlu0 %v1496
      %v1624 = vpop.xlane.xlu0 %1623
      %1625 = vadd.xlane.f32.xlu0 %v1498
      %v1626 = vpop.xlane.xlu0 %1625
      %1627 = vadd.xlane.f32.xlu0 %v1500
      %v1628 = vpop.xlane.xlu0 %1627
      %1629 = vadd.xlane.f32.xlu0 %v1502
      %v1630 = vpop.xlane.xlu0 %1629
      %1631 = vadd.xlane.f32.xlu0 %v1504
      %v1632 = vpop.xlane.xlu0 %1631
      %1633 = vadd.xlane.f32.xlu0 %v1506
      %v1634 = vpop.xlane.xlu0 %1633
      %1635 = vadd.xlane.f32.xlu0 %v1508
      %v1636 = vpop.xlane.xlu0 %1635
      %1637 = vadd.xlane.f32.xlu0 %v1510
      %v1638 = vpop.xlane.xlu0 %1637
      %1639 = vadd.xlane.f32.xlu0 %v1512
      %v1640 = vpop.xlane.xlu0 %1639
      %1641 = vadd.xlane.f32.xlu0 %v1514
      %v1642 = vpop.xlane.xlu0 %1641
      %1643 = vadd.xlane.f32.xlu0 %v1516
      %v1644 = vpop.xlane.xlu0 %1643
      %1645 = vadd.xlane.f32.xlu0 %v1518
      %v1646 = vpop.xlane.xlu0 %1645
      %1647 = vadd.xlane.f32.xlu0 %v1520
      %v1648 = vpop.xlane.xlu0 %1647
      %1649 = vadd.xlane.f32.xlu0 %v1522
      %v1650 = vpop.xlane.xlu0 %1649
      %1651 = vadd.xlane.f32.xlu0 %v1524
      %v1652 = vpop.xlane.xlu0 %1651
      %1653 = vadd.xlane.f32.xlu0 %v1526
      %v1654 = vpop.xlane.xlu0 %1653
      %1655 = vadd.xlane.f32.xlu0 %v1528
      %v1656 = vpop.xlane.xlu0 %1655
      %1657 = vadd.xlane.f32.xlu0 %v1530
      %v1658 = vpop.xlane.xlu0 %1657
      %1659 = vadd.xlane.f32.xlu0 %v1532
      %v1660 = vpop.xlane.xlu0 %1659
      %1661 = vadd.xlane.f32.xlu0 %v1534
      %v1662 = vpop.xlane.xlu0 %1661
      %1663 = vadd.xlane.f32.xlu0 %v1536
      %v1664 = vpop.xlane.xlu0 %1663
      %1665 = vadd.xlane.f32.xlu0 %v1538
      %v1666 = vpop.xlane.xlu0 %1665
      %1667 = vadd.xlane.f32.xlu0 %v1540
      %v1668 = vpop.xlane.xlu0 %1667
      %v1669 = vadd.f32 %v1573, %v1606
      %v1670 = vadd.f32 %v1574, %v1608
      %v1671 = vadd.f32 %v1575, %v1610
      %v1672 = vadd.f32 %v1576, %v1612
      %v1673 = vadd.f32 %v1577, %v1614
      %v1674 = vadd.f32 %v1578, %v1616
      %v1675 = vadd.f32 %v1579, %v1618
      %v1676 = vadd.f32 %v1580, %v1620
      %v1677 = vadd.f32 %v1581, %v1622
      %v1678 = vadd.f32 %v1582, %v1624
      %v1679 = vadd.f32 %v1583, %v1626
      %v1680 = vadd.f32 %v1584, %v1628
      %v1681 = vadd.f32 %v1585, %v1630
      %v1682 = vadd.f32 %v1586, %v1632
      %v1683 = vadd.f32 %v1587, %v1634
      %v1684 = vadd.f32 %v1588, %v1636
      %v1685 = vadd.f32 %v1589, %v1638
      %v1686 = vadd.f32 %v1590, %v1640
      %v1687 = vadd.f32 %v1591, %v1642
      %v1688 = vadd.f32 %v1592, %v1644
      %v1689 = vadd.f32 %v1593, %v1646
      %v1690 = vadd.f32 %v1594, %v1648
      %v1691 = vadd.f32 %v1595, %v1650
      %v1692 = vadd.f32 %v1596, %v1652
      %v1693 = vadd.f32 %v1597, %v1654
      %v1694 = vadd.f32 %v1598, %v1656
      %v1695 = vadd.f32 %v1599, %v1658
      %v1696 = vadd.f32 %v1600, %v1660
      %v1697 = vadd.f32 %v1601, %v1662
      %v1698 = vadd.f32 %v1602, %v1664
      %v1699 = vadd.f32 %v1603, %v1666
      %v1700 = vadd.f32 %v1604, %v1668
      %vm1701 = vcmask 7168
      %1702 = vst.msk [vmem:[#allocation3] sm:$0xff] %vm1701, %v1669
      %1703 = vst.msk [vmem:[#allocation3 + $0x8] sm:$0xff] %vm1701, %v1670
      %1704 = vst.msk [vmem:[#allocation3 + $0x10] sm:$0xff] %vm1701, %v1671
      %1705 = vst.msk [vmem:[#allocation3 + $0x18] sm:$0xff] %vm1701, %v1672
      %1706 = vst.msk [vmem:[#allocation3 + $0x20] sm:$0xff] %vm1701, %v1673
      %1707 = vst.msk [vmem:[#allocation3 + $0x28] sm:$0xff] %vm1701, %v1674
      %1708 = vst.msk [vmem:[#allocation3 + $0x30] sm:$0xff] %vm1701, %v1675
      %1709 = vst.msk [vmem:[#allocation3 + $0x38] sm:$0xff] %vm1701, %v1676
      %1710 = vst.msk [vmem:[#allocation3 + $0x40] sm:$0xff] %vm1701, %v1677
      %1711 = vst.msk [vmem:[#allocation3 + $0x48] sm:$0xff] %vm1701, %v1678
      %1712 = vst.msk [vmem:[#allocation3 + $0x50] sm:$0xff] %vm1701, %v1679
      %1713 = vst.msk [vmem:[#allocation3 + $0x58] sm:$0xff] %vm1701, %v1680
      %1714 = vst.msk [vmem:[#allocation3 + $0x60] sm:$0xff] %vm1701, %v1681
      %1715 = vst.msk [vmem:[#allocation3 + $0x68] sm:$0xff] %vm1701, %v1682
      %1716 = vst.msk [vmem:[#allocation3 + $0x70] sm:$0xff] %vm1701, %v1683
      %1717 = vst.msk [vmem:[#allocation3 + $0x78] sm:$0xff] %vm1701, %v1684
      %1718 = vst.msk [vmem:[#allocation3 + $0x80] sm:$0xff] %vm1701, %v1685
      %1719 = vst.msk [vmem:[#allocation3 + $0x88] sm:$0xff] %vm1701, %v1686
      %1720 = vst.msk [vmem:[#allocation3 + $0x90] sm:$0xff] %vm1701, %v1687
      %1721 = vst.msk [vmem:[#allocation3 + $0x98] sm:$0xff] %vm1701, %v1688
      %1722 = vst.msk [vmem:[#allocation3 + $0xa0] sm:$0xff] %vm1701, %v1689
      %1723 = vst.msk [vmem:[#allocation3 + $0xa8] sm:$0xff] %vm1701, %v1690
      %1724 = vst.msk [vmem:[#allocation3 + $0xb0] sm:$0xff] %vm1701, %v1691
      %1725 = vst.msk [vmem:[#allocation3 + $0xb8] sm:$0xff] %vm1701, %v1692
      %1726 = vst.msk [vmem:[#allocation3 + $0xc0] sm:$0xff] %vm1701, %v1693
      %1727 = vst.msk [vmem:[#allocation3 + $0xc8] sm:$0xff] %vm1701, %v1694
      %1728 = vst.msk [vmem:[#allocation3 + $0xd0] sm:$0xff] %vm1701, %v1695
      %1729 = vst.msk [vmem:[#allocation3 + $0xd8] sm:$0xff] %vm1701, %v1696
      %1730 = vst.msk [vmem:[#allocation3 + $0xe0] sm:$0xff] %vm1701, %v1697
      %1731 = vst.msk [vmem:[#allocation3 + $0xe8] sm:$0xff] %vm1701, %v1698
      %1732 = vst.msk [vmem:[#allocation3 + $0xf0] sm:$0xff] %vm1701, %v1699
      %1733 = vst.msk [vmem:[#allocation3 + $0xf8] sm:$0xff] %vm1701, %v1700
      %v1734 = vld [vmem:[#allocation4] sm:$0xff]
      %v1735 = vld [vmem:[#allocation4 + $0x8] sm:$0xff]
      %v1736 = vld [vmem:[#allocation4 + $0x10] sm:$0xff]
      %v1737 = vld [vmem:[#allocation4 + $0x18] sm:$0xff]
      %v1738 = vld [vmem:[#allocation4 + $0x20] sm:$0xff]
      %v1739 = vld [vmem:[#allocation4 + $0x28] sm:$0xff]
      %v1740 = vld [vmem:[#allocation4 + $0x30] sm:$0xff]
      %v1741 = vld [vmem:[#allocation4 + $0x38] sm:$0xff]
      %v1742 = vld [vmem:[#allocation4 + $0x40] sm:$0xff]
      %v1743 = vld [vmem:[#allocation4 + $0x48] sm:$0xff]
      %v1744 = vld [vmem:[#allocation4 + $0x50] sm:$0xff]
      %v1745 = vld [vmem:[#allocation4 + $0x58] sm:$0xff]
      %v1746 = vld [vmem:[#allocation4 + $0x60] sm:$0xff]
      %v1747 = vld [vmem:[#allocation4 + $0x68] sm:$0xff]
      %v1748 = vld [vmem:[#allocation4 + $0x70] sm:$0xff]
      %v1749 = vld [vmem:[#allocation4 + $0x78] sm:$0xff]
      %v1750 = vld [vmem:[#allocation4 + $0x80] sm:$0xff]
      %v1751 = vld [vmem:[#allocation4 + $0x88] sm:$0xff]
      %v1752 = vld [vmem:[#allocation4 + $0x90] sm:$0xff]
      %v1753 = vld [vmem:[#allocation4 + $0x98] sm:$0xff]
      %v1754 = vld [vmem:[#allocation4 + $0xa0] sm:$0xff]
      %v1755 = vld [vmem:[#allocation4 + $0xa8] sm:$0xff]
      %v1756 = vld [vmem:[#allocation4 + $0xb0] sm:$0xff]
      %v1757 = vld [vmem:[#allocation4 + $0xb8] sm:$0xff]
      %v1758 = vld [vmem:[#allocation4 + $0xc0] sm:$0xff]
      %v1759 = vld [vmem:[#allocation4 + $0xc8] sm:$0xff]
      %v1760 = vld [vmem:[#allocation4 + $0xd0] sm:$0xff]
      %v1761 = vld [vmem:[#allocation4 + $0xd8] sm:$0xff]
      %v1762 = vld [vmem:[#allocation4 + $0xe0] sm:$0xff]
      %v1763 = vld [vmem:[#allocation4 + $0xe8] sm:$0xff]
      %v1764 = vld [vmem:[#allocation4 + $0xf0] sm:$0xff]
      %v1765 = vld [vmem:[#allocation4 + $0xf8] sm:$0xff]
      %1767 = vset.pattern.permute.xlu0 0
      %1768 = vperm.xlu0 %1767, %v1222
      %v1769 = vpop.permute.xlu0 %1768
      %1772 = vset.pattern.permute.xlu0 0
      %1773 = vperm.xlu0 %1772, %v1224
      %v1774 = vpop.permute.xlu0 %1773
      %1777 = vset.pattern.permute.xlu0 0
      %1778 = vperm.xlu0 %1777, %v1226
      %v1779 = vpop.permute.xlu0 %1778
      %1782 = vset.pattern.permute.xlu0 0
      %1783 = vperm.xlu0 %1782, %v1228
      %v1784 = vpop.permute.xlu0 %1783
      %1787 = vset.pattern.permute.xlu0 0
      %1788 = vperm.xlu0 %1787, %v1230
      %v1789 = vpop.permute.xlu0 %1788
      %1792 = vset.pattern.permute.xlu0 0
      %1793 = vperm.xlu0 %1792, %v1232
      %v1794 = vpop.permute.xlu0 %1793
      %1797 = vset.pattern.permute.xlu0 0
      %1798 = vperm.xlu0 %1797, %v1234
      %v1799 = vpop.permute.xlu0 %1798
      %1802 = vset.pattern.permute.xlu0 0
      %1803 = vperm.xlu0 %1802, %v1236
      %v1804 = vpop.permute.xlu0 %1803
      %1807 = vset.pattern.permute.xlu0 0
      %1808 = vperm.xlu0 %1807, %v1238
      %v1809 = vpop.permute.xlu0 %1808
      %1812 = vset.pattern.permute.xlu0 0
      %1813 = vperm.xlu0 %1812, %v1240
      %v1814 = vpop.permute.xlu0 %1813
      %1817 = vset.pattern.permute.xlu0 0
      %1818 = vperm.xlu0 %1817, %v1242
      %v1819 = vpop.permute.xlu0 %1818
      %1822 = vset.pattern.permute.xlu0 0
      %1823 = vperm.xlu0 %1822, %v1244
      %v1824 = vpop.permute.xlu0 %1823
      %1827 = vset.pattern.permute.xlu0 0
      %1828 = vperm.xlu0 %1827, %v1246
      %v1829 = vpop.permute.xlu0 %1828
      %1832 = vset.pattern.permute.xlu0 0
      %1833 = vperm.xlu0 %1832, %v1248
      %v1834 = vpop.permute.xlu0 %1833
      %1837 = vset.pattern.permute.xlu0 0
      %1838 = vperm.xlu0 %1837, %v1250
      %v1839 = vpop.permute.xlu0 %1838
      %1842 = vset.pattern.permute.xlu0 0
      %1843 = vperm.xlu0 %1842, %v1252
      %v1844 = vpop.permute.xlu0 %1843
      %1847 = vset.pattern.permute.xlu0 0
      %1848 = vperm.xlu0 %1847, %v1254
      %v1849 = vpop.permute.xlu0 %1848
      %1852 = vset.pattern.permute.xlu0 0
      %1853 = vperm.xlu0 %1852, %v1256
      %v1854 = vpop.permute.xlu0 %1853
      %1857 = vset.pattern.permute.xlu0 0
      %1858 = vperm.xlu0 %1857, %v1258
      %v1859 = vpop.permute.xlu0 %1858
      %1862 = vset.pattern.permute.xlu0 0
      %1863 = vperm.xlu0 %1862, %v1260
      %v1864 = vpop.permute.xlu0 %1863
      %1867 = vset.pattern.permute.xlu0 0
      %1868 = vperm.xlu0 %1867, %v1262
      %v1869 = vpop.permute.xlu0 %1868
      %1872 = vset.pattern.permute.xlu0 0
      %1873 = vperm.xlu0 %1872, %v1264
      %v1874 = vpop.permute.xlu0 %1873
      %1877 = vset.pattern.permute.xlu0 0
      %1878 = vperm.xlu0 %1877, %v1266
      %v1879 = vpop.permute.xlu0 %1878
      %1882 = vset.pattern.permute.xlu0 0
      %1883 = vperm.xlu0 %1882, %v1268
      %v1884 = vpop.permute.xlu0 %1883
      %1887 = vset.pattern.permute.xlu0 0
      %1888 = vperm.xlu0 %1887, %v1270
      %v1889 = vpop.permute.xlu0 %1888
      %1892 = vset.pattern.permute.xlu0 0
      %1893 = vperm.xlu0 %1892, %v1272
      %v1894 = vpop.permute.xlu0 %1893
      %1897 = vset.pattern.permute.xlu0 0
      %1898 = vperm.xlu0 %1897, %v1274
      %v1899 = vpop.permute.xlu0 %1898
      %1902 = vset.pattern.permute.xlu0 0
      %1903 = vperm.xlu0 %1902, %v1276
      %v1904 = vpop.permute.xlu0 %1903
      %1907 = vset.pattern.permute.xlu0 0
      %1908 = vperm.xlu0 %1907, %v1278
      %v1909 = vpop.permute.xlu0 %1908
      %1912 = vset.pattern.permute.xlu0 0
      %1913 = vperm.xlu0 %1912, %v1280
      %v1914 = vpop.permute.xlu0 %1913
      %1917 = vset.pattern.permute.xlu0 0
      %1918 = vperm.xlu0 %1917, %v1282
      %v1919 = vpop.permute.xlu0 %1918
      %1922 = vset.pattern.permute.xlu0 0
      %1923 = vperm.xlu0 %1922, %v1284
      %v1924 = vpop.permute.xlu0 %1923
      %v1926 = vmul.f32 %v1769, %v1734
      %v1927 = vmul.f32 %v1774, %v1735
      %v1928 = vmul.f32 %v1779, %v1736
      %v1929 = vmul.f32 %v1784, %v1737
      %v1930 = vmul.f32 %v1789, %v1738
      %v1931 = vmul.f32 %v1794, %v1739
      %v1932 = vmul.f32 %v1799, %v1740
      %v1933 = vmul.f32 %v1804, %v1741
      %v1934 = vmul.f32 %v1809, %v1742
      %v1935 = vmul.f32 %v1814, %v1743
      %v1936 = vmul.f32 %v1819, %v1744
      %v1937 = vmul.f32 %v1824, %v1745
      %v1938 = vmul.f32 %v1829, %v1746
      %v1939 = vmul.f32 %v1834, %v1747
      %v1940 = vmul.f32 %v1839, %v1748
      %v1941 = vmul.f32 %v1844, %v1749
      %v1942 = vmul.f32 %v1849, %v1750
      %v1943 = vmul.f32 %v1854, %v1751
      %v1944 = vmul.f32 %v1859, %v1752
      %v1945 = vmul.f32 %v1864, %v1753
      %v1946 = vmul.f32 %v1869, %v1754
      %v1947 = vmul.f32 %v1874, %v1755
      %v1948 = vmul.f32 %v1879, %v1756
      %v1949 = vmul.f32 %v1884, %v1757
      %v1950 = vmul.f32 %v1889, %v1758
      %v1951 = vmul.f32 %v1894, %v1759
      %v1952 = vmul.f32 %v1899, %v1760
      %v1953 = vmul.f32 %v1904, %v1761
      %v1954 = vmul.f32 %v1909, %v1762
      %v1955 = vmul.f32 %v1914, %v1763
      %v1956 = vmul.f32 %v1919, %v1764
      %v1957 = vmul.f32 %v1924, %v1765
      %v1958 = vpack.c.bf16 %v1480, %v1478
      %v1959 = vpack.c.bf16 %v1484, %v1482
      %v1960 = vpack.c.bf16 %v1488, %v1486
      %v1961 = vpack.c.bf16 %v1492, %v1490
      %v1962 = vpack.c.bf16 %v1496, %v1494
      %v1963 = vpack.c.bf16 %v1500, %v1498
      %v1964 = vpack.c.bf16 %v1504, %v1502
      %v1965 = vpack.c.bf16 %v1508, %v1506
      %v1966 = vpack.c.bf16 %v1512, %v1510
      %v1967 = vpack.c.bf16 %v1516, %v1514
      %v1968 = vpack.c.bf16 %v1520, %v1518
      %v1969 = vpack.c.bf16 %v1524, %v1522
      %v1970 = vpack.c.bf16 %v1528, %v1526
      %v1971 = vpack.c.bf16 %v1532, %v1530
      %v1972 = vpack.c.bf16 %v1536, %v1534
      %v1973 = vpack.c.bf16 %v1540, %v1538
      %v1974 = vld [vmem:[#allocation9] sm:$0xf]
      %v1975 = vld [vmem:[#allocation9 + $0x4] sm:$0xf]
      %v1976 = vld [vmem:[#allocation9 + $0x8] sm:$0xf]
      %v1977 = vld [vmem:[#allocation9 + $0xc] sm:$0xf]
      %v1978 = vld [vmem:[#allocation9 + $0x10] sm:$0xf]
      %v1979 = vld [vmem:[#allocation9 + $0x14] sm:$0xf]
      %v1980 = vld [vmem:[#allocation9 + $0x18] sm:$0xf]
      %v1981 = vld [vmem:[#allocation9 + $0x1c] sm:$0xf]
      %v1982 = vld [vmem:[#allocation9 + $0x20] sm:$0xf]
      %v1983 = vld [vmem:[#allocation9 + $0x24] sm:$0xf]
      %v1984 = vld [vmem:[#allocation9 + $0x28] sm:$0xf]
      %v1985 = vld [vmem:[#allocation9 + $0x2c] sm:$0xf]
      %v1986 = vld [vmem:[#allocation9 + $0x30] sm:$0xf]
      %v1987 = vld [vmem:[#allocation9 + $0x34] sm:$0xf]
      %v1988 = vld [vmem:[#allocation9 + $0x38] sm:$0xf]
      %v1989 = vld [vmem:[#allocation9 + $0x3c] sm:$0xf]
      %v2006 = vunpack.c.l.b16 %v1974
      %v2007 = vunpack.c.l.b16 %v1975
      %v2008 = vunpack.c.l.b16 %v1976
      %v2009 = vunpack.c.l.b16 %v1977
      %v2010 = vunpack.c.l.b16 %v1978
      %v2011 = vunpack.c.l.b16 %v1979
      %v2012 = vunpack.c.l.b16 %v1980
      %v2013 = vunpack.c.l.b16 %v1981
      %v2014 = vunpack.c.l.b16 %v1982
      %v2015 = vunpack.c.l.b16 %v1983
      %v2016 = vunpack.c.l.b16 %v1984
      %v2017 = vunpack.c.l.b16 %v1985
      %v2018 = vunpack.c.l.b16 %v1986
      %v2019 = vunpack.c.l.b16 %v1987
      %v2020 = vunpack.c.l.b16 %v1988
      %v2021 = vunpack.c.l.b16 %v1989
      %v2022 = vpack.c.b16 %v2007, %v2006
      %v2023 = vpack.c.b16 %v2009, %v2008
      %v2024 = vpack.c.b16 %v2011, %v2010
      %v2025 = vpack.c.b16 %v2013, %v2012
      %v2026 = vpack.c.b16 %v2015, %v2014
      %v2027 = vpack.c.b16 %v2017, %v2016
      %v2028 = vpack.c.b16 %v2019, %v2018
      %v2029 = vpack.c.b16 %v2021, %v2020
      %2038 = vmatprep.subr.bf16.mxu0 0
      %2039 = vmatpush1.bf16.msra.mxu0 %v2022
      %2040 = vmatprep.subr.bf16.mxu0 0
      %2041 = vmatpush1.bf16.msra.mxu0 %v2023
      %2042 = vmatprep.subr.bf16.mxu0 0
      %2043 = vmatpush1.bf16.msra.mxu0 %v2024
      %2044 = vmatprep.subr.bf16.mxu0 0
      %2045 = vmatpush1.bf16.msra.mxu0 %v2025
      %2046 = vmatprep.subr.bf16.mxu0 0
      %2047 = vmatpush1.bf16.msra.mxu0 %v2026
      %2048 = vmatprep.subr.bf16.mxu0 0
      %2049 = vmatpush1.bf16.msra.mxu0 %v2027
      %2050 = vmatprep.subr.bf16.mxu0 0
      %2051 = vmatpush1.bf16.msra.mxu0 %v2028
      %2052 = vmatprep.subr.bf16.mxu0 0
      %2053 = vmatpush1.bf16.msra.mxu0 %v2029
      %2054 = vmatprep.subr.bf16.mxu0 0
      %2055 = vmatpush1.bf16.msra.mxu0 0
      %2056 = vmatprep.subr.bf16.mxu0 0
      %2057 = vmatpush1.bf16.msra.mxu0 0
      %2058 = vmatprep.subr.bf16.mxu0 0
      %2059 = vmatpush1.bf16.msra.mxu0 0
      %2060 = vmatprep.subr.bf16.mxu0 0
      %2061 = vmatpush1.bf16.msra.mxu0 0
      %2062 = vmatprep.subr.bf16.mxu0 0
      %2063 = vmatpush1.bf16.msra.mxu0 0
      %2064 = vmatprep.subr.bf16.mxu0 0
      %2065 = vmatpush1.bf16.msra.mxu0 0
      %2066 = vmatprep.subr.bf16.mxu0 0
      %2067 = vmatpush1.bf16.msra.mxu0 0
      %2068 = vmatprep.subr.bf16.mxu0 0
      %2069 = vmatpush1.bf16.msra.mxu0 0
      %2070 = vmatprep.mubr.bf16.mxu0 0
      %2071 = vmatmul.mubr.bf16.gmra.mrb[0].mxu0 %v1958
      %v2072 = vpop.f32.mrb[0].mxu0
      %v2073 = vadd.f32 0.0, %v2072
      %v2074 = vpop.f32.mrb[0].mxu0
      %v2075 = vpop.f32.mrb[0].mxu0
      %v2076 = vadd.f32 0.0, %v2075
      %v2077 = vpop.f32.mrb[0].mxu0
      %2078 = vmatprep.mubr.bf16.mxu0 0
      %2079 = vmatmul.mubr.bf16.gmra.mrb[0].mxu0 %v1959
      %v2080 = vpop.f32.mrb[0].mxu0
      %v2081 = vadd.f32 0.0, %v2080
      %v2082 = vpop.f32.mrb[0].mxu0
      %v2083 = vpop.f32.mrb[0].mxu0
      %v2084 = vadd.f32 0.0, %v2083
      %v2085 = vpop.f32.mrb[0].mxu0
      %2086 = vmatprep.mubr.bf16.mxu0 0
      %2087 = vmatmul.mubr.bf16.gmra.mrb[0].mxu0 %v1960
      %v2088 = vpop.f32.mrb[0].mxu0
      %v2089 = vadd.f32 0.0, %v2088
      %v2090 = vpop.f32.mrb[0].mxu0
      %v2091 = vpop.f32.mrb[0].mxu0
      %v2092 = vadd.f32 0.0, %v2091
      %v2093 = vpop.f32.mrb[0].mxu0
      %2094 = vmatprep.mubr.bf16.mxu0 0
      %2095 = vmatmul.mubr.bf16.gmra.mrb[0].mxu0 %v1961
      %v2096 = vpop.f32.mrb[0].mxu0
      %v2097 = vadd.f32 0.0, %v2096
      %v2098 = vpop.f32.mrb[0].mxu0
      %v2099 = vpop.f32.mrb[0].mxu0
      %v2100 = vadd.f32 0.0, %v2099
      %v2101 = vpop.f32.mrb[0].mxu0
      %2102 = vmatprep.mubr.bf16.mxu0 0
      %2103 = vmatmul.mubr.bf16.gmra.mrb[0].mxu0 %v1962
      %v2104 = vpop.f32.mrb[0].mxu0
      %v2105 = vadd.f32 0.0, %v2104
      %v2106 = vpop.f32.mrb[0].mxu0
      %v2107 = vpop.f32.mrb[0].mxu0
      %v2108 = vadd.f32 0.0, %v2107
      %v2109 = vpop.f32.mrb[0].mxu0
      %2110 = vmatprep.mubr.bf16.mxu0 0
      %2111 = vmatmul.mubr.bf16.gmra.mrb[0].mxu0 %v1963
      %v2112 = vpop.f32.mrb[0].mxu0
      %v2113 = vadd.f32 0.0, %v2112
      %v2114 = vpop.f32.mrb[0].mxu0
      %v2115 = vpop.f32.mrb[0].mxu0
      %v2116 = vadd.f32 0.0, %v2115
      %v2117 = vpop.f32.mrb[0].mxu0
      %2118 = vmatprep.mubr.bf16.mxu0 0
      %2119 = vmatmul.mubr.bf16.gmra.mrb[0].mxu0 %v1964
      %v2120 = vpop.f32.mrb[0].mxu0
      %v2121 = vadd.f32 0.0, %v2120
      %v2122 = vpop.f32.mrb[0].mxu0
      %v2123 = vpop.f32.mrb[0].mxu0
      %v2124 = vadd.f32 0.0, %v2123
      %v2125 = vpop.f32.mrb[0].mxu0
      %2126 = vmatprep.mubr.bf16.mxu0 0
      %2127 = vmatmul.mubr.bf16.gmra.mrb[0].mxu0 %v1965
      %v2128 = vpop.f32.mrb[0].mxu0
      %v2129 = vadd.f32 0.0, %v2128
      %v2130 = vpop.f32.mrb[0].mxu0
      %v2131 = vpop.f32.mrb[0].mxu0
      %v2132 = vadd.f32 0.0, %v2131
      %v2133 = vpop.f32.mrb[0].mxu0
      %2134 = vmatprep.mubr.bf16.mxu0 0
      %2135 = vmatmul.mubr.bf16.gmra.mrb[0].mxu0 %v1966
      %v2136 = vpop.f32.mrb[0].mxu0
      %v2137 = vadd.f32 0.0, %v2136
      %v2138 = vpop.f32.mrb[0].mxu0
      %v2139 = vpop.f32.mrb[0].mxu0
      %v2140 = vadd.f32 0.0, %v2139
      %v2141 = vpop.f32.mrb[0].mxu0
      %2142 = vmatprep.mubr.bf16.mxu0 0
      %2143 = vmatmul.mubr.bf16.gmra.mrb[0].mxu0 %v1967
      %v2144 = vpop.f32.mrb[0].mxu0
      %v2145 = vadd.f32 0.0, %v2144
      %v2146 = vpop.f32.mrb[0].mxu0
      %v2147 = vpop.f32.mrb[0].mxu0
      %v2148 = vadd.f32 0.0, %v2147
      %v2149 = vpop.f32.mrb[0].mxu0
      %2150 = vmatprep.mubr.bf16.mxu0 0
      %2151 = vmatmul.mubr.bf16.gmra.mrb[0].mxu0 %v1968
      %v2152 = vpop.f32.mrb[0].mxu0
      %v2153 = vadd.f32 0.0, %v2152
      %v2154 = vpop.f32.mrb[0].mxu0
      %v2155 = vpop.f32.mrb[0].mxu0
      %v2156 = vadd.f32 0.0, %v2155
      %v2157 = vpop.f32.mrb[0].mxu0
      %2158 = vmatprep.mubr.bf16.mxu0 0
      %2159 = vmatmul.mubr.bf16.gmra.mrb[0].mxu0 %v1969
      %v2160 = vpop.f32.mrb[0].mxu0
      %v2161 = vadd.f32 0.0, %v2160
      %v2162 = vpop.f32.mrb[0].mxu0
      %v2163 = vpop.f32.mrb[0].mxu0
      %v2164 = vadd.f32 0.0, %v2163
      %v2165 = vpop.f32.mrb[0].mxu0
      %2166 = vmatprep.mubr.bf16.mxu0 0
      %2167 = vmatmul.mubr.bf16.gmra.mrb[0].mxu0 %v1970
      %v2168 = vpop.f32.mrb[0].mxu0
      %v2169 = vadd.f32 0.0, %v2168
      %v2170 = vpop.f32.mrb[0].mxu0
      %v2171 = vpop.f32.mrb[0].mxu0
      %v2172 = vadd.f32 0.0, %v2171
      %v2173 = vpop.f32.mrb[0].mxu0
      %2174 = vmatprep.mubr.bf16.mxu0 0
      %2175 = vmatmul.mubr.bf16.gmra.mrb[0].mxu0 %v1971
      %v2176 = vpop.f32.mrb[0].mxu0
      %v2177 = vadd.f32 0.0, %v2176
      %v2178 = vpop.f32.mrb[0].mxu0
      %v2179 = vpop.f32.mrb[0].mxu0
      %v2180 = vadd.f32 0.0, %v2179
      %v2181 = vpop.f32.mrb[0].mxu0
      %2182 = vmatprep.mubr.bf16.mxu0 0
      %2183 = vmatmul.mubr.bf16.gmra.mrb[0].mxu0 %v1972
      %v2184 = vpop.f32.mrb[0].mxu0
      %v2185 = vadd.f32 0.0, %v2184
      %v2186 = vpop.f32.mrb[0].mxu0
      %v2187 = vpop.f32.mrb[0].mxu0
      %v2188 = vadd.f32 0.0, %v2187
      %v2189 = vpop.f32.mrb[0].mxu0
      %2190 = vmatprep.mubr.bf16.mxu0 0
      %2191 = vmatmul.mubr.bf16.gmra.mrb[0].mxu0 %v1973
      %v2192 = vpop.f32.mrb[0].mxu0
      %v2193 = vadd.f32 0.0, %v2192
      %v2194 = vpop.f32.mrb[0].mxu0
      %v2195 = vpop.f32.mrb[0].mxu0
      %v2196 = vadd.f32 0.0, %v2195
      %v2197 = vpop.f32.mrb[0].mxu0
      %2198 = vdwg.mxu0
      %v2199 = vadd.f32 %v1926, %v2073
      %v2200 = vadd.f32 %v1927, %v2076
      %v2201 = vadd.f32 %v1928, %v2081
      %v2202 = vadd.f32 %v1929, %v2084
      %v2203 = vadd.f32 %v1930, %v2089
      %v2204 = vadd.f32 %v1931, %v2092
      %v2205 = vadd.f32 %v1932, %v2097
      %v2206 = vadd.f32 %v1933, %v2100
      %v2207 = vadd.f32 %v1934, %v2105
      %v2208 = vadd.f32 %v1935, %v2108
      %v2209 = vadd.f32 %v1936, %v2113
      %v2210 = vadd.f32 %v1937, %v2116
      %v2211 = vadd.f32 %v1938, %v2121
      %v2212 = vadd.f32 %v1939, %v2124
      %v2213 = vadd.f32 %v1940, %v2129
      %v2214 = vadd.f32 %v1941, %v2132
      %v2215 = vadd.f32 %v1942, %v2137
      %v2216 = vadd.f32 %v1943, %v2140
      %v2217 = vadd.f32 %v1944, %v2145
      %v2218 = vadd.f32 %v1945, %v2148
      %v2219 = vadd.f32 %v1946, %v2153
      %v2220 = vadd.f32 %v1947, %v2156
      %v2221 = vadd.f32 %v1948, %v2161
      %v2222 = vadd.f32 %v1949, %v2164
      %v2223 = vadd.f32 %v1950, %v2169
      %v2224 = vadd.f32 %v1951, %v2172
      %v2225 = vadd.f32 %v1952, %v2177
      %v2226 = vadd.f32 %v1953, %v2180
      %v2227 = vadd.f32 %v1954, %v2185
      %v2228 = vadd.f32 %v1955, %v2188
      %v2229 = vadd.f32 %v1956, %v2193
      %v2230 = vadd.f32 %v1957, %v2196
      %2231 = vst [vmem:[#allocation4] sm:$0xff] %v2199
      %2232 = vst [vmem:[#allocation4 + $0x8] sm:$0xff] %v2200
      %2233 = vst [vmem:[#allocation4 + $0x10] sm:$0xff] %v2201
      %2234 = vst [vmem:[#allocation4 + $0x18] sm:$0xff] %v2202
      %2235 = vst [vmem:[#allocation4 + $0x20] sm:$0xff] %v2203
      %2236 = vst [vmem:[#allocation4 + $0x28] sm:$0xff] %v2204
      %2237 = vst [vmem:[#allocation4 + $0x30] sm:$0xff] %v2205
      %2238 = vst [vmem:[#allocation4 + $0x38] sm:$0xff] %v2206
      %2239 = vst [vmem:[#allocation4 + $0x40] sm:$0xff] %v2207
      %2240 = vst [vmem:[#allocation4 + $0x48] sm:$0xff] %v2208
      %2241 = vst [vmem:[#allocation4 + $0x50] sm:$0xff] %v2209
      %2242 = vst [vmem:[#allocation4 + $0x58] sm:$0xff] %v2210
      %2243 = vst [vmem:[#allocation4 + $0x60] sm:$0xff] %v2211
      %2244 = vst [vmem:[#allocation4 + $0x68] sm:$0xff] %v2212
      %2245 = vst [vmem:[#allocation4 + $0x70] sm:$0xff] %v2213
      %2246 = vst [vmem:[#allocation4 + $0x78] sm:$0xff] %v2214
      %2247 = vst [vmem:[#allocation4 + $0x80] sm:$0xff] %v2215
      %2248 = vst [vmem:[#allocation4 + $0x88] sm:$0xff] %v2216
      %2249 = vst [vmem:[#allocation4 + $0x90] sm:$0xff] %v2217
      %2250 = vst [vmem:[#allocation4 + $0x98] sm:$0xff] %v2218
      %2251 = vst [vmem:[#allocation4 + $0xa0] sm:$0xff] %v2219
      %2252 = vst [vmem:[#allocation4 + $0xa8] sm:$0xff] %v2220
      %2253 = vst [vmem:[#allocation4 + $0xb0] sm:$0xff] %v2221
      %2254 = vst [vmem:[#allocation4 + $0xb8] sm:$0xff] %v2222
      %2255 = vst [vmem:[#allocation4 + $0xc0] sm:$0xff] %v2223
      %2256 = vst [vmem:[#allocation4 + $0xc8] sm:$0xff] %v2224
      %2257 = vst [vmem:[#allocation4 + $0xd0] sm:$0xff] %v2225
      %2258 = vst [vmem:[#allocation4 + $0xd8] sm:$0xff] %v2226
      %2259 = vst [vmem:[#allocation4 + $0xe0] sm:$0xff] %v2227
      %2260 = vst [vmem:[#allocation4 + $0xe8] sm:$0xff] %v2228
      %2261 = vst [vmem:[#allocation4 + $0xf0] sm:$0xff] %v2229
      %2262 = vst [vmem:[#allocation4 + $0xf8] sm:$0xff] %v2230
      %2263 = vst.msk [vmem:[#allocation2] sm:$0xff] %vm1701, %v1157
      %2264 = vst.msk [vmem:[#allocation2 + $0x8] sm:$0xff] %vm1701, %v1158
      %2265 = vst.msk [vmem:[#allocation2 + $0x10] sm:$0xff] %vm1701, %v1159
      %2266 = vst.msk [vmem:[#allocation2 + $0x18] sm:$0xff] %vm1701, %v1160
      %2267 = vst.msk [vmem:[#allocation2 + $0x20] sm:$0xff] %vm1701, %v1161
      %2268 = vst.msk [vmem:[#allocation2 + $0x28] sm:$0xff] %vm1701, %v1162
      %2269 = vst.msk [vmem:[#allocation2 + $0x30] sm:$0xff] %vm1701, %v1163
      %2270 = vst.msk [vmem:[#allocation2 + $0x38] sm:$0xff] %vm1701, %v1164
      %2271 = vst.msk [vmem:[#allocation2 + $0x40] sm:$0xff] %vm1701, %v1165
      %2272 = vst.msk [vmem:[#allocation2 + $0x48] sm:$0xff] %vm1701, %v1166
      %2273 = vst.msk [vmem:[#allocation2 + $0x50] sm:$0xff] %vm1701, %v1167
      %2274 = vst.msk [vmem:[#allocation2 + $0x58] sm:$0xff] %vm1701, %v1168
      %2275 = vst.msk [vmem:[#allocation2 + $0x60] sm:$0xff] %vm1701, %v1169
      %2276 = vst.msk [vmem:[#allocation2 + $0x68] sm:$0xff] %vm1701, %v1170
      %2277 = vst.msk [vmem:[#allocation2 + $0x70] sm:$0xff] %vm1701, %v1171
      %2278 = vst.msk [vmem:[#allocation2 + $0x78] sm:$0xff] %vm1701, %v1172
      %2279 = vst.msk [vmem:[#allocation2 + $0x80] sm:$0xff] %vm1701, %v1173
      %2280 = vst.msk [vmem:[#allocation2 + $0x88] sm:$0xff] %vm1701, %v1174
      %2281 = vst.msk [vmem:[#allocation2 + $0x90] sm:$0xff] %vm1701, %v1175
      %2282 = vst.msk [vmem:[#allocation2 + $0x98] sm:$0xff] %vm1701, %v1176
      %2283 = vst.msk [vmem:[#allocation2 + $0xa0] sm:$0xff] %vm1701, %v1177
      %2284 = vst.msk [vmem:[#allocation2 + $0xa8] sm:$0xff] %vm1701, %v1178
      %2285 = vst.msk [vmem:[#allocation2 + $0xb0] sm:$0xff] %vm1701, %v1179
      %2286 = vst.msk [vmem:[#allocation2 + $0xb8] sm:$0xff] %vm1701, %v1180
      %2287 = vst.msk [vmem:[#allocation2 + $0xc0] sm:$0xff] %vm1701, %v1181
      %2288 = vst.msk [vmem:[#allocation2 + $0xc8] sm:$0xff] %vm1701, %v1182
      %2289 = vst.msk [vmem:[#allocation2 + $0xd0] sm:$0xff] %vm1701, %v1183
      %2290 = vst.msk [vmem:[#allocation2 + $0xd8] sm:$0xff] %vm1701, %v1184
      %2291 = vst.msk [vmem:[#allocation2 + $0xe0] sm:$0xff] %vm1701, %v1185
      %2292 = vst.msk [vmem:[#allocation2 + $0xe8] sm:$0xff] %vm1701, %v1186
      %2293 = vst.msk [vmem:[#allocation2 + $0xf0] sm:$0xff] %vm1701, %v1187
      %2294 = vst.msk [vmem:[#allocation2 + $0xf8] sm:$0xff] %vm1701, %v1188
    $region45: #{tpu_custom_call.1} parent=1 // pred_fallthru
      _
    %p2295 = pnand %p178, %p177
    %p2296 = pneg %p2295
    // Predicated region
    $region46: #{tpu_custom_call.1} parent=1 // pred_check
      _
    $region47: #{tpu_custom_call.1} parent=1 // pred_check_branch
      %2298 = sbr.rel (%p2295) target = $region49
    $region48: #{tpu_custom_call.1} parent=1 // pred_region
      %v2299 = vld [vmem:[%s6] sm:$0xff]
      %v2300 = vld [vmem:[%s6 + $0x8] sm:$0xff]
      %v2301 = vld [vmem:[%s6 + $0x10] sm:$0xff]
      %v2302 = vld [vmem:[%s6 + $0x18] sm:$0xff]
      %v2303 = vld [vmem:[%s6 + $0x20] sm:$0xff]
      %v2304 = vld [vmem:[%s6 + $0x28] sm:$0xff]
      %v2305 = vld [vmem:[%s6 + $0x30] sm:$0xff]
      %v2306 = vld [vmem:[%s6 + $0x38] sm:$0xff]
      %v2307 = vld [vmem:[%s6 + $0x40] sm:$0xff]
      %v2308 = vld [vmem:[%s6 + $0x48] sm:$0xff]
      %v2309 = vld [vmem:[%s6 + $0x50] sm:$0xff]
      %v2310 = vld [vmem:[%s6 + $0x58] sm:$0xff]
      %v2311 = vld [vmem:[%s6 + $0x60] sm:$0xff]
      %v2312 = vld [vmem:[%s6 + $0x68] sm:$0xff]
      %v2313 = vld [vmem:[%s6 + $0x70] sm:$0xff]
      %v2314 = vld [vmem:[%s6 + $0x78] sm:$0xff]
      %v2315 = vld [vmem:[%s6 + $0x80] sm:$0xff]
      %v2316 = vld [vmem:[%s6 + $0x88] sm:$0xff]
      %v2317 = vld [vmem:[%s6 + $0x90] sm:$0xff]
      %v2318 = vld [vmem:[%s6 + $0x98] sm:$0xff]
      %v2319 = vld [vmem:[%s6 + $0xa0] sm:$0xff]
      %v2320 = vld [vmem:[%s6 + $0xa8] sm:$0xff]
      %v2321 = vld [vmem:[%s6 + $0xb0] sm:$0xff]
      %v2322 = vld [vmem:[%s6 + $0xb8] sm:$0xff]
      %v2323 = vld [vmem:[%s6 + $0xc0] sm:$0xff]
      %v2324 = vld [vmem:[%s6 + $0xc8] sm:$0xff]
      %v2325 = vld [vmem:[%s6 + $0xd0] sm:$0xff]
      %v2326 = vld [vmem:[%s6 + $0xd8] sm:$0xff]
      %v2327 = vld [vmem:[%s6 + $0xe0] sm:$0xff]
      %v2328 = vld [vmem:[%s6 + $0xe8] sm:$0xff]
      %v2329 = vld [vmem:[%s6 + $0xf0] sm:$0xff]
      %v2330 = vld [vmem:[%s6 + $0xf8] sm:$0xff]
      %vm2331 = vcmp.ne.s32.totalorder %v2299, 4294967295
      %vm2332 = vcmp.ne.s32.totalorder %v2300, 4294967295
      %vm2333 = vcmp.ne.s32.totalorder %v2301, 4294967295
      %vm2334 = vcmp.ne.s32.totalorder %v2302, 4294967295
      %vm2335 = vcmp.ne.s32.totalorder %v2303, 4294967295
      %vm2336 = vcmp.ne.s32.totalorder %v2304, 4294967295
      %vm2337 = vcmp.ne.s32.totalorder %v2305, 4294967295
      %vm2338 = vcmp.ne.s32.totalorder %v2306, 4294967295
      %vm2339 = vcmp.ne.s32.totalorder %v2307, 4294967295
      %vm2340 = vcmp.ne.s32.totalorder %v2308, 4294967295
      %vm2341 = vcmp.ne.s32.totalorder %v2309, 4294967295
      %vm2342 = vcmp.ne.s32.totalorder %v2310, 4294967295
      %vm2343 = vcmp.ne.s32.totalorder %v2311, 4294967295
      %vm2344 = vcmp.ne.s32.totalorder %v2312, 4294967295
      %vm2345 = vcmp.ne.s32.totalorder %v2313, 4294967295
      %vm2346 = vcmp.ne.s32.totalorder %v2314, 4294967295
      %vm2347 = vcmp.ne.s32.totalorder %v2315, 4294967295
      %vm2348 = vcmp.ne.s32.totalorder %v2316, 4294967295
      %vm2349 = vcmp.ne.s32.totalorder %v2317, 4294967295
      %vm2350 = vcmp.ne.s32.totalorder %v2318, 4294967295
      %vm2351 = vcmp.ne.s32.totalorder %v2319, 4294967295
      %vm2352 = vcmp.ne.s32.totalorder %v2320, 4294967295
      %vm2353 = vcmp.ne.s32.totalorder %v2321, 4294967295
      %vm2354 = vcmp.ne.s32.totalorder %v2322, 4294967295
      %vm2355 = vcmp.ne.s32.totalorder %v2323, 4294967295
      %vm2356 = vcmp.ne.s32.totalorder %v2324, 4294967295
      %vm2357 = vcmp.ne.s32.totalorder %v2325, 4294967295
      %vm2358 = vcmp.ne.s32.totalorder %v2326, 4294967295
      %vm2359 = vcmp.ne.s32.totalorder %v2327, 4294967295
      %vm2360 = vcmp.ne.s32.totalorder %v2328, 4294967295
      %vm2361 = vcmp.ne.s32.totalorder %v2329, 4294967295
      %vm2362 = vcmp.ne.s32.totalorder %v2330, 4294967295
      %v2363 = vld [vmem:[#allocation4] sm:$0xff]
      %v2364 = vld [vmem:[#allocation4 + $0x8] sm:$0xff]
      %v2365 = vld [vmem:[#allocation4 + $0x10] sm:$0xff]
      %v2366 = vld [vmem:[#allocation4 + $0x18] sm:$0xff]
      %v2367 = vld [vmem:[#allocation4 + $0x20] sm:$0xff]
      %v2368 = vld [vmem:[#allocation4 + $0x28] sm:$0xff]
      %v2369 = vld [vmem:[#allocation4 + $0x30] sm:$0xff]
      %v2370 = vld [vmem:[#allocation4 + $0x38] sm:$0xff]
      %v2371 = vld [vmem:[#allocation4 + $0x40] sm:$0xff]
      %v2372 = vld [vmem:[#allocation4 + $0x48] sm:$0xff]
      %v2373 = vld [vmem:[#allocation4 + $0x50] sm:$0xff]
      %v2374 = vld [vmem:[#allocation4 + $0x58] sm:$0xff]
      %v2375 = vld [vmem:[#allocation4 + $0x60] sm:$0xff]
      %v2376 = vld [vmem:[#allocation4 + $0x68] sm:$0xff]
      %v2377 = vld [vmem:[#allocation4 + $0x70] sm:$0xff]
      %v2378 = vld [vmem:[#allocation4 + $0x78] sm:$0xff]
      %v2379 = vld [vmem:[#allocation4 + $0x80] sm:$0xff]
      %v2380 = vld [vmem:[#allocation4 + $0x88] sm:$0xff]
      %v2381 = vld [vmem:[#allocation4 + $0x90] sm:$0xff]
      %v2382 = vld [vmem:[#allocation4 + $0x98] sm:$0xff]
      %v2383 = vld [vmem:[#allocation4 + $0xa0] sm:$0xff]
      %v2384 = vld [vmem:[#allocation4 + $0xa8] sm:$0xff]
      %v2385 = vld [vmem:[#allocation4 + $0xb0] sm:$0xff]
      %v2386 = vld [vmem:[#allocation4 + $0xb8] sm:$0xff]
      %v2387 = vld [vmem:[#allocation4 + $0xc0] sm:$0xff]
      %v2388 = vld [vmem:[#allocation4 + $0xc8] sm:$0xff]
      %v2389 = vld [vmem:[#allocation4 + $0xd0] sm:$0xff]
      %v2390 = vld [vmem:[#allocation4 + $0xd8] sm:$0xff]
      %v2391 = vld [vmem:[#allocation4 + $0xe0] sm:$0xff]
      %v2392 = vld [vmem:[#allocation4 + $0xe8] sm:$0xff]
      %v2393 = vld [vmem:[#allocation4 + $0xf0] sm:$0xff]
      %v2394 = vld [vmem:[#allocation4 + $0xf8] sm:$0xff]
      %v2395 = vld [vmem:[#allocation3] sm:$0xff]
      %v2396 = vld [vmem:[#allocation3 + $0x8] sm:$0xff]
      %v2397 = vld [vmem:[#allocation3 + $0x10] sm:$0xff]
      %v2398 = vld [vmem:[#allocation3 + $0x18] sm:$0xff]
      %v2399 = vld [vmem:[#allocation3 + $0x20] sm:$0xff]
      %v2400 = vld [vmem:[#allocation3 + $0x28] sm:$0xff]
      %v2401 = vld [vmem:[#allocation3 + $0x30] sm:$0xff]
      %v2402 = vld [vmem:[#allocation3 + $0x38] sm:$0xff]
      %v2403 = vld [vmem:[#allocation3 + $0x40] sm:$0xff]
      %v2404 = vld [vmem:[#allocation3 + $0x48] sm:$0xff]
      %v2405 = vld [vmem:[#allocation3 + $0x50] sm:$0xff]
      %v2406 = vld [vmem:[#allocation3 + $0x58] sm:$0xff]
      %v2407 = vld [vmem:[#allocation3 + $0x60] sm:$0xff]
      %v2408 = vld [vmem:[#allocation3 + $0x68] sm:$0xff]
      %v2409 = vld [vmem:[#allocation3 + $0x70] sm:$0xff]
      %v2410 = vld [vmem:[#allocation3 + $0x78] sm:$0xff]
      %v2411 = vld [vmem:[#allocation3 + $0x80] sm:$0xff]
      %v2412 = vld [vmem:[#allocation3 + $0x88] sm:$0xff]
      %v2413 = vld [vmem:[#allocation3 + $0x90] sm:$0xff]
      %v2414 = vld [vmem:[#allocation3 + $0x98] sm:$0xff]
      %v2415 = vld [vmem:[#allocation3 + $0xa0] sm:$0xff]
      %v2416 = vld [vmem:[#allocation3 + $0xa8] sm:$0xff]
      %v2417 = vld [vmem:[#allocation3 + $0xb0] sm:$0xff]
      %v2418 = vld [vmem:[#allocation3 + $0xb8] sm:$0xff]
      %v2419 = vld [vmem:[#allocation3 + $0xc0] sm:$0xff]
      %v2420 = vld [vmem:[#allocation3 + $0xc8] sm:$0xff]
      %v2421 = vld [vmem:[#allocation3 + $0xd0] sm:$0xff]
      %v2422 = vld [vmem:[#allocation3 + $0xd8] sm:$0xff]
      %v2423 = vld [vmem:[#allocation3 + $0xe0] sm:$0xff]
      %v2424 = vld [vmem:[#allocation3 + $0xe8] sm:$0xff]
      %v2425 = vld [vmem:[#allocation3 + $0xf0] sm:$0xff]
      %v2426 = vld [vmem:[#allocation3 + $0xf8] sm:$0xff]
      %v2427 = vrcp.pop %v2395
      %v2428 = vrcp.pop %v2396
      %v2429 = vrcp.pop %v2397
      %v2430 = vrcp.pop %v2398
      %v2431 = vrcp.pop %v2399
      %v2432 = vrcp.pop %v2400
      %v2433 = vrcp.pop %v2401
      %v2434 = vrcp.pop %v2402
      %v2435 = vrcp.pop %v2403
      %v2436 = vrcp.pop %v2404
      %v2437 = vrcp.pop %v2405
      %v2438 = vrcp.pop %v2406
      %v2439 = vrcp.pop %v2407
      %v2440 = vrcp.pop %v2408
      %v2441 = vrcp.pop %v2409
      %v2442 = vrcp.pop %v2410
      %v2443 = vrcp.pop %v2411
      %v2444 = vrcp.pop %v2412
      %v2445 = vrcp.pop %v2413
      %v2446 = vrcp.pop %v2414
      %v2447 = vrcp.pop %v2415
      %v2448 = vrcp.pop %v2416
      %v2449 = vrcp.pop %v2417
      %v2450 = vrcp.pop %v2418
      %v2451 = vrcp.pop %v2419
      %v2452 = vrcp.pop %v2420
      %v2453 = vrcp.pop %v2421
      %v2454 = vrcp.pop %v2422
      %v2455 = vrcp.pop %v2423
      %v2456 = vrcp.pop %v2424
      %v2457 = vrcp.pop %v2425
      %v2458 = vrcp.pop %v2426
      %2460 = vset.pattern.permute.xlu0 0
      %2461 = vperm.xlu0 %2460, %v2427
      %v2462 = vpop.permute.xlu0 %2461
      %2465 = vset.pattern.permute.xlu0 0
      %2466 = vperm.xlu0 %2465, %v2428
      %v2467 = vpop.permute.xlu0 %2466
      %2470 = vset.pattern.permute.xlu0 0
      %2471 = vperm.xlu0 %2470, %v2429
      %v2472 = vpop.permute.xlu0 %2471
      %2475 = vset.pattern.permute.xlu0 0
      %2476 = vperm.xlu0 %2475, %v2430
      %v2477 = vpop.permute.xlu0 %2476
      %2480 = vset.pattern.permute.xlu0 0
      %2481 = vperm.xlu0 %2480, %v2431
      %v2482 = vpop.permute.xlu0 %2481
      %2485 = vset.pattern.permute.xlu0 0
      %2486 = vperm.xlu0 %2485, %v2432
      %v2487 = vpop.permute.xlu0 %2486
      %2490 = vset.pattern.permute.xlu0 0
      %2491 = vperm.xlu0 %2490, %v2433
      %v2492 = vpop.permute.xlu0 %2491
      %2495 = vset.pattern.permute.xlu0 0
      %2496 = vperm.xlu0 %2495, %v2434
      %v2497 = vpop.permute.xlu0 %2496
      %2500 = vset.pattern.permute.xlu0 0
      %2501 = vperm.xlu0 %2500, %v2435
      %v2502 = vpop.permute.xlu0 %2501
      %2505 = vset.pattern.permute.xlu0 0
      %2506 = vperm.xlu0 %2505, %v2436
      %v2507 = vpop.permute.xlu0 %2506
      %2510 = vset.pattern.permute.xlu0 0
      %2511 = vperm.xlu0 %2510, %v2437
      %v2512 = vpop.permute.xlu0 %2511
      %2515 = vset.pattern.permute.xlu0 0
      %2516 = vperm.xlu0 %2515, %v2438
      %v2517 = vpop.permute.xlu0 %2516
      %2520 = vset.pattern.permute.xlu0 0
      %2521 = vperm.xlu0 %2520, %v2439
      %v2522 = vpop.permute.xlu0 %2521
      %2525 = vset.pattern.permute.xlu0 0
      %2526 = vperm.xlu0 %2525, %v2440
      %v2527 = vpop.permute.xlu0 %2526
      %2530 = vset.pattern.permute.xlu0 0
      %2531 = vperm.xlu0 %2530, %v2441
      %v2532 = vpop.permute.xlu0 %2531
      %2535 = vset.pattern.permute.xlu0 0
      %2536 = vperm.xlu0 %2535, %v2442
      %v2537 = vpop.permute.xlu0 %2536
      %2540 = vset.pattern.permute.xlu0 0
      %2541 = vperm.xlu0 %2540, %v2443
      %v2542 = vpop.permute.xlu0 %2541
      %2545 = vset.pattern.permute.xlu0 0
      %2546 = vperm.xlu0 %2545, %v2444
      %v2547 = vpop.permute.xlu0 %2546
      %2550 = vset.pattern.permute.xlu0 0
      %2551 = vperm.xlu0 %2550, %v2445
      %v2552 = vpop.permute.xlu0 %2551
      %2555 = vset.pattern.permute.xlu0 0
      %2556 = vperm.xlu0 %2555, %v2446
      %v2557 = vpop.permute.xlu0 %2556
      %2560 = vset.pattern.permute.xlu0 0
      %2561 = vperm.xlu0 %2560, %v2447
      %v2562 = vpop.permute.xlu0 %2561
      %2565 = vset.pattern.permute.xlu0 0
      %2566 = vperm.xlu0 %2565, %v2448
      %v2567 = vpop.permute.xlu0 %2566
      %2570 = vset.pattern.permute.xlu0 0
      %2571 = vperm.xlu0 %2570, %v2449
      %v2572 = vpop.permute.xlu0 %2571
      %2575 = vset.pattern.permute.xlu0 0
      %2576 = vperm.xlu0 %2575, %v2450
      %v2577 = vpop.permute.xlu0 %2576
      %2580 = vset.pattern.permute.xlu0 0
      %2581 = vperm.xlu0 %2580, %v2451
      %v2582 = vpop.permute.xlu0 %2581
      %2585 = vset.pattern.permute.xlu0 0
      %2586 = vperm.xlu0 %2585, %v2452
      %v2587 = vpop.permute.xlu0 %2586
      %2590 = vset.pattern.permute.xlu0 0
      %2591 = vperm.xlu0 %2590, %v2453
      %v2592 = vpop.permute.xlu0 %2591
      %2595 = vset.pattern.permute.xlu0 0
      %2596 = vperm.xlu0 %2595, %v2454
      %v2597 = vpop.permute.xlu0 %2596
      %2600 = vset.pattern.permute.xlu0 0
      %2601 = vperm.xlu0 %2600, %v2455
      %v2602 = vpop.permute.xlu0 %2601
      %2605 = vset.pattern.permute.xlu0 0
      %2606 = vperm.xlu0 %2605, %v2456
      %v2607 = vpop.permute.xlu0 %2606
      %2610 = vset.pattern.permute.xlu0 0
      %2611 = vperm.xlu0 %2610, %v2457
      %v2612 = vpop.permute.xlu0 %2611
      %2615 = vset.pattern.permute.xlu0 0
      %2616 = vperm.xlu0 %2615, %v2458
      %v2617 = vpop.permute.xlu0 %2616
      %v2619 = vmul.f32 %v2363, %v2462
      %v2620 = vmul.f32 %v2364, %v2467
      %v2621 = vmul.f32 %v2365, %v2472
      %v2622 = vmul.f32 %v2366, %v2477
      %v2623 = vmul.f32 %v2367, %v2482
      %v2624 = vmul.f32 %v2368, %v2487
      %v2625 = vmul.f32 %v2369, %v2492
      %v2626 = vmul.f32 %v2370, %v2497
      %v2627 = vmul.f32 %v2371, %v2502
      %v2628 = vmul.f32 %v2372, %v2507
      %v2629 = vmul.f32 %v2373, %v2512
      %v2630 = vmul.f32 %v2374, %v2517
      %v2631 = vmul.f32 %v2375, %v2522
      %v2632 = vmul.f32 %v2376, %v2527
      %v2633 = vmul.f32 %v2377, %v2532
      %v2634 = vmul.f32 %v2378, %v2537
      %v2635 = vmul.f32 %v2379, %v2542
      %v2636 = vmul.f32 %v2380, %v2547
      %v2637 = vmul.f32 %v2381, %v2552
      %v2638 = vmul.f32 %v2382, %v2557
      %v2639 = vmul.f32 %v2383, %v2562
      %v2640 = vmul.f32 %v2384, %v2567
      %v2641 = vmul.f32 %v2385, %v2572
      %v2642 = vmul.f32 %v2386, %v2577
      %v2643 = vmul.f32 %v2387, %v2582
      %v2644 = vmul.f32 %v2388, %v2587
      %v2645 = vmul.f32 %v2389, %v2592
      %v2646 = vmul.f32 %v2390, %v2597
      %v2647 = vmul.f32 %v2391, %v2602
      %v2648 = vmul.f32 %v2392, %v2607
      %v2649 = vmul.f32 %v2393, %v2612
      %v2650 = vmul.f32 %v2394, %v2617
      %v2651 = vsel %vm2331, 1, 0
      %v2652 = vsel %vm2332, 1, 0
      %v2653 = vsel %vm2333, 1, 0
      %v2654 = vsel %vm2334, 1, 0
      %v2655 = vsel %vm2335, 1, 0
      %v2656 = vsel %vm2336, 1, 0
      %v2657 = vsel %vm2337, 1, 0
      %v2658 = vsel %vm2338, 1, 0
      %v2659 = vsel %vm2339, 1, 0
      %v2660 = vsel %vm2340, 1, 0
      %v2661 = vsel %vm2341, 1, 0
      %v2662 = vsel %vm2342, 1, 0
      %v2663 = vsel %vm2343, 1, 0
      %v2664 = vsel %vm2344, 1, 0
      %v2665 = vsel %vm2345, 1, 0
      %v2666 = vsel %vm2346, 1, 0
      %v2667 = vsel %vm2347, 1, 0
      %v2668 = vsel %vm2348, 1, 0
      %v2669 = vsel %vm2349, 1, 0
      %v2670 = vsel %vm2350, 1, 0
      %v2671 = vsel %vm2351, 1, 0
      %v2672 = vsel %vm2352, 1, 0
      %v2673 = vsel %vm2353, 1, 0
      %v2674 = vsel %vm2354, 1, 0
      %v2675 = vsel %vm2355, 1, 0
      %v2676 = vsel %vm2356, 1, 0
      %v2677 = vsel %vm2357, 1, 0
      %v2678 = vsel %vm2358, 1, 0
      %v2679 = vsel %vm2359, 1, 0
      %v2680 = vsel %vm2360, 1, 0
      %v2681 = vsel %vm2361, 1, 0
      %v2682 = vsel %vm2362, 1, 0
      %2683 = vset.pattern.permute.xlu0 0
      %2684 = vperm.xlu0 %2683, %v2651
      %v2685 = vpop.permute.xlu0 %2684
      %2686 = vset.pattern.permute.xlu0 0
      %2687 = vperm.xlu0 %2686, %v2652
      %v2688 = vpop.permute.xlu0 %2687
      %2689 = vset.pattern.permute.xlu0 0
      %2690 = vperm.xlu0 %2689, %v2653
      %v2691 = vpop.permute.xlu0 %2690
      %2692 = vset.pattern.permute.xlu0 0
      %2693 = vperm.xlu0 %2692, %v2654
      %v2694 = vpop.permute.xlu0 %2693
      %2695 = vset.pattern.permute.xlu0 0
      %2696 = vperm.xlu0 %2695, %v2655
      %v2697 = vpop.permute.xlu0 %2696
      %2698 = vset.pattern.permute.xlu0 0
      %2699 = vperm.xlu0 %2698, %v2656
      %v2700 = vpop.permute.xlu0 %2699
      %2701 = vset.pattern.permute.xlu0 0
      %2702 = vperm.xlu0 %2701, %v2657
      %v2703 = vpop.permute.xlu0 %2702
      %2704 = vset.pattern.permute.xlu0 0
      %2705 = vperm.xlu0 %2704, %v2658
      %v2706 = vpop.permute.xlu0 %2705
      %2707 = vset.pattern.permute.xlu0 0
      %2708 = vperm.xlu0 %2707, %v2659
      %v2709 = vpop.permute.xlu0 %2708
      %2710 = vset.pattern.permute.xlu0 0
      %2711 = vperm.xlu0 %2710, %v2660
      %v2712 = vpop.permute.xlu0 %2711
      %2713 = vset.pattern.permute.xlu0 0
      %2714 = vperm.xlu0 %2713, %v2661
      %v2715 = vpop.permute.xlu0 %2714
      %2716 = vset.pattern.permute.xlu0 0
      %2717 = vperm.xlu0 %2716, %v2662
      %v2718 = vpop.permute.xlu0 %2717
      %2719 = vset.pattern.permute.xlu0 0
      %2720 = vperm.xlu0 %2719, %v2663
      %v2721 = vpop.permute.xlu0 %2720
      %2722 = vset.pattern.permute.xlu0 0
      %2723 = vperm.xlu0 %2722, %v2664
      %v2724 = vpop.permute.xlu0 %2723
      %2725 = vset.pattern.permute.xlu0 0
      %2726 = vperm.xlu0 %2725, %v2665
      %v2727 = vpop.permute.xlu0 %2726
      %2728 = vset.pattern.permute.xlu0 0
      %2729 = vperm.xlu0 %2728, %v2666
      %v2730 = vpop.permute.xlu0 %2729
      %2731 = vset.pattern.permute.xlu0 0
      %2732 = vperm.xlu0 %2731, %v2667
      %v2733 = vpop.permute.xlu0 %2732
      %2734 = vset.pattern.permute.xlu0 0
      %2735 = vperm.xlu0 %2734, %v2668
      %v2736 = vpop.permute.xlu0 %2735
      %2737 = vset.pattern.permute.xlu0 0
      %2738 = vperm.xlu0 %2737, %v2669
      %v2739 = vpop.permute.xlu0 %2738
      %2740 = vset.pattern.permute.xlu0 0
      %2741 = vperm.xlu0 %2740, %v2670
      %v2742 = vpop.permute.xlu0 %2741
      %2743 = vset.pattern.permute.xlu0 0
      %2744 = vperm.xlu0 %2743, %v2671
      %v2745 = vpop.permute.xlu0 %2744
      %2746 = vset.pattern.permute.xlu0 0
      %2747 = vperm.xlu0 %2746, %v2672
      %v2748 = vpop.permute.xlu0 %2747
      %2749 = vset.pattern.permute.xlu0 0
      %2750 = vperm.xlu0 %2749, %v2673
      %v2751 = vpop.permute.xlu0 %2750
      %2752 = vset.pattern.permute.xlu0 0
      %2753 = vperm.xlu0 %2752, %v2674
      %v2754 = vpop.permute.xlu0 %2753
      %2755 = vset.pattern.permute.xlu0 0
      %2756 = vperm.xlu0 %2755, %v2675
      %v2757 = vpop.permute.xlu0 %2756
      %2758 = vset.pattern.permute.xlu0 0
      %2759 = vperm.xlu0 %2758, %v2676
      %v2760 = vpop.permute.xlu0 %2759
      %2761 = vset.pattern.permute.xlu0 0
      %2762 = vperm.xlu0 %2761, %v2677
      %v2763 = vpop.permute.xlu0 %2762
      %2764 = vset.pattern.permute.xlu0 0
      %2765 = vperm.xlu0 %2764, %v2678
      %v2766 = vpop.permute.xlu0 %2765
      %2767 = vset.pattern.permute.xlu0 0
      %2768 = vperm.xlu0 %2767, %v2679
      %v2769 = vpop.permute.xlu0 %2768
      %2770 = vset.pattern.permute.xlu0 0
      %2771 = vperm.xlu0 %2770, %v2680
      %v2772 = vpop.permute.xlu0 %2771
      %2773 = vset.pattern.permute.xlu0 0
      %2774 = vperm.xlu0 %2773, %v2681
      %v2775 = vpop.permute.xlu0 %2774
      %2776 = vset.pattern.permute.xlu0 0
      %2777 = vperm.xlu0 %2776, %v2682
      %v2778 = vpop.permute.xlu0 %2777
      %vm2779 = vcmp.eq.s32.totalorder %v2685, 1
      %vm2780 = vcmp.eq.s32.totalorder %v2688, 1
      %vm2781 = vcmp.eq.s32.totalorder %v2691, 1
      %vm2782 = vcmp.eq.s32.totalorder %v2694, 1
      %vm2783 = vcmp.eq.s32.totalorder %v2697, 1
      %vm2784 = vcmp.eq.s32.totalorder %v2700, 1
      %vm2785 = vcmp.eq.s32.totalorder %v2703, 1
      %vm2786 = vcmp.eq.s32.totalorder %v2706, 1
      %vm2787 = vcmp.eq.s32.totalorder %v2709, 1
      %vm2788 = vcmp.eq.s32.totalorder %v2712, 1
      %vm2789 = vcmp.eq.s32.totalorder %v2715, 1
      %vm2790 = vcmp.eq.s32.totalorder %v2718, 1
      %vm2791 = vcmp.eq.s32.totalorder %v2721, 1
      %vm2792 = vcmp.eq.s32.totalorder %v2724, 1
      %vm2793 = vcmp.eq.s32.totalorder %v2727, 1
      %vm2794 = vcmp.eq.s32.totalorder %v2730, 1
      %vm2795 = vcmp.eq.s32.totalorder %v2733, 1
      %vm2796 = vcmp.eq.s32.totalorder %v2736, 1
      %vm2797 = vcmp.eq.s32.totalorder %v2739, 1
      %vm2798 = vcmp.eq.s32.totalorder %v2742, 1
      %vm2799 = vcmp.eq.s32.totalorder %v2745, 1
      %vm2800 = vcmp.eq.s32.totalorder %v2748, 1
      %vm2801 = vcmp.eq.s32.totalorder %v2751, 1
      %vm2802 = vcmp.eq.s32.totalorder %v2754, 1
      %vm2803 = vcmp.eq.s32.totalorder %v2757, 1
      %vm2804 = vcmp.eq.s32.totalorder %v2760, 1
      %vm2805 = vcmp.eq.s32.totalorder %v2763, 1
      %vm2806 = vcmp.eq.s32.totalorder %v2766, 1
      %vm2807 = vcmp.eq.s32.totalorder %v2769, 1
      %vm2808 = vcmp.eq.s32.totalorder %v2772, 1
      %vm2809 = vcmp.eq.s32.totalorder %v2775, 1
      %vm2810 = vcmp.eq.s32.totalorder %v2778, 1
      %v2811 = vsel %vm2779, %v2619, 0.0
      %v2812 = vsel %vm2780, %v2620, 0.0
      %v2813 = vsel %vm2781, %v2621, 0.0
      %v2814 = vsel %vm2782, %v2622, 0.0
      %v2815 = vsel %vm2783, %v2623, 0.0
      %v2816 = vsel %vm2784, %v2624, 0.0
      %v2817 = vsel %vm2785, %v2625, 0.0
      %v2818 = vsel %vm2786, %v2626, 0.0
      %v2819 = vsel %vm2787, %v2627, 0.0
      %v2820 = vsel %vm2788, %v2628, 0.0
      %v2821 = vsel %vm2789, %v2629, 0.0
      %v2822 = vsel %vm2790, %v2630, 0.0
      %v2823 = vsel %vm2791, %v2631, 0.0
      %v2824 = vsel %vm2792, %v2632, 0.0
      %v2825 = vsel %vm2793, %v2633, 0.0
      %v2826 = vsel %vm2794, %v2634, 0.0
      %v2827 = vsel %vm2795, %v2635, 0.0
      %v2828 = vsel %vm2796, %v2636, 0.0
      %v2829 = vsel %vm2797, %v2637, 0.0
      %v2830 = vsel %vm2798, %v2638, 0.0
      %v2831 = vsel %vm2799, %v2639, 0.0
      %v2832 = vsel %vm2800, %v2640, 0.0
      %v2833 = vsel %vm2801, %v2641, 0.0
      %v2834 = vsel %vm2802, %v2642, 0.0
      %v2835 = vsel %vm2803, %v2643, 0.0
      %v2836 = vsel %vm2804, %v2644, 0.0
      %v2837 = vsel %vm2805, %v2645, 0.0
      %v2838 = vsel %vm2806, %v2646, 0.0
      %v2839 = vsel %vm2807, %v2647, 0.0
      %v2840 = vsel %vm2808, %v2648, 0.0
      %v2841 = vsel %vm2809, %v2649, 0.0
      %v2842 = vsel %vm2810, %v2650, 0.0
      %v2843 = vpack.c.bf16 %v2812, %v2811
      %v2844 = vpack.c.bf16 %v2814, %v2813
      %v2845 = vpack.c.bf16 %v2816, %v2815
      %v2846 = vpack.c.bf16 %v2818, %v2817
      %v2847 = vpack.c.bf16 %v2820, %v2819
      %v2848 = vpack.c.bf16 %v2822, %v2821
      %v2849 = vpack.c.bf16 %v2824, %v2823
      %v2850 = vpack.c.bf16 %v2826, %v2825
      %v2851 = vpack.c.bf16 %v2828, %v2827
      %v2852 = vpack.c.bf16 %v2830, %v2829
      %v2853 = vpack.c.bf16 %v2832, %v2831
      %v2854 = vpack.c.bf16 %v2834, %v2833
      %v2855 = vpack.c.bf16 %v2836, %v2835
      %v2856 = vpack.c.bf16 %v2838, %v2837
      %v2857 = vpack.c.bf16 %v2840, %v2839
      %v2858 = vpack.c.bf16 %v2842, %v2841
      %v2859 = vld [vmem:[#allocation12] sm:$0xf]
      %v2860 = vld [vmem:[#allocation12 + $0x4] sm:$0xf]
      %v2861 = vld [vmem:[#allocation12 + $0x8] sm:$0xf]
      %v2862 = vld [vmem:[#allocation12 + $0xc] sm:$0xf]
      %v2863 = vld [vmem:[#allocation12 + $0x10] sm:$0xf]
      %v2864 = vld [vmem:[#allocation12 + $0x14] sm:$0xf]
      %v2865 = vld [vmem:[#allocation12 + $0x18] sm:$0xf]
      %v2866 = vld [vmem:[#allocation12 + $0x1c] sm:$0xf]
      %v2867 = vld [vmem:[#allocation12 + $0x20] sm:$0xf]
      %v2868 = vld [vmem:[#allocation12 + $0x24] sm:$0xf]
      %v2869 = vld [vmem:[#allocation12 + $0x28] sm:$0xf]
      %v2870 = vld [vmem:[#allocation12 + $0x2c] sm:$0xf]
      %v2871 = vld [vmem:[#allocation12 + $0x30] sm:$0xf]
      %v2872 = vld [vmem:[#allocation12 + $0x34] sm:$0xf]
      %v2873 = vld [vmem:[#allocation12 + $0x38] sm:$0xf]
      %v2874 = vld [vmem:[#allocation12 + $0x3c] sm:$0xf]
      %v2875 = vld [vmem:[%s9] sm:$0x1]
      %v2877 = vlaneseq
      %v2878 = vshrl.u32 %v2877, 7
      %v2879 = vsub.s32 0, %v2878
      %v2880 = vrot.slane %v2875, %v2879
      %v2898 = vunpack.c.l.b16 %v2859
      %v2899 = vunpack.c.l.b16 %v2860
      %v2900 = vunpack.c.l.b16 %v2861
      %v2901 = vunpack.c.l.b16 %v2862
      %v2902 = vunpack.c.l.b16 %v2863
      %v2903 = vunpack.c.l.b16 %v2864
      %v2904 = vunpack.c.l.b16 %v2865
      %v2905 = vunpack.c.l.b16 %v2866
      %v2906 = vunpack.c.l.b16 %v2867
      %v2907 = vunpack.c.l.b16 %v2868
      %v2908 = vunpack.c.l.b16 %v2869
      %v2909 = vunpack.c.l.b16 %v2870
      %v2910 = vunpack.c.l.b16 %v2871
      %v2911 = vunpack.c.l.b16 %v2872
      %v2912 = vunpack.c.l.b16 %v2873
      %v2913 = vunpack.c.l.b16 %v2874
      %v2914 = vpack.c.b16 %v2899, %v2898
      %v2915 = vpack.c.b16 %v2901, %v2900
      %v2916 = vpack.c.b16 %v2903, %v2902
      %v2917 = vpack.c.b16 %v2905, %v2904
      %v2918 = vpack.c.b16 %v2907, %v2906
      %v2919 = vpack.c.b16 %v2909, %v2908
      %v2920 = vpack.c.b16 %v2911, %v2910
      %v2921 = vpack.c.b16 %v2913, %v2912
      %2930 = vmatprep.subr.bf16.mxu0 0
      %2931 = vmatpush1.bf16.msra.mxu0 %v2914
      %2932 = vmatprep.subr.bf16.mxu0 0
      %2933 = vmatpush1.bf16.msra.mxu0 %v2915
      %2934 = vmatprep.subr.bf16.mxu0 0
      %2935 = vmatpush1.bf16.msra.mxu0 %v2916
      %2936 = vmatprep.subr.bf16.mxu0 0
      %2937 = vmatpush1.bf16.msra.mxu0 %v2917
      %2938 = vmatprep.subr.bf16.mxu0 0
      %2939 = vmatpush1.bf16.msra.mxu0 %v2918
      %2940 = vmatprep.subr.bf16.mxu0 0
      %2941 = vmatpush1.bf16.msra.mxu0 %v2919
      %2942 = vmatprep.subr.bf16.mxu0 0
      %2943 = vmatpush1.bf16.msra.mxu0 %v2920
      %2944 = vmatprep.subr.bf16.mxu0 0
      %2945 = vmatpush1.bf16.msra.mxu0 %v2921
      %2946 = vmatprep.subr.bf16.mxu0 0
      %2947 = vmatpush1.bf16.msra.mxu0 0
      %2948 = vmatprep.subr.bf16.mxu0 0
      %2949 = vmatpush1.bf16.msra.mxu0 0
      %2950 = vmatprep.subr.bf16.mxu0 0
      %2951 = vmatpush1.bf16.msra.mxu0 0
      %2952 = vmatprep.subr.bf16.mxu0 0
      %2953 = vmatpush1.bf16.msra.mxu0 0
      %2954 = vmatprep.subr.bf16.mxu0 0
      %2955 = vmatpush1.bf16.msra.mxu0 0
      %2956 = vmatprep.subr.bf16.mxu0 0
      %2957 = vmatpush1.bf16.msra.mxu0 0
      %2958 = vmatprep.subr.bf16.mxu0 0
      %2959 = vmatpush1.bf16.msra.mxu0 0
      %2960 = vmatprep.subr.bf16.mxu0 0
      %2961 = vmatpush1.bf16.msra.mxu0 0
      %2962 = vmatprep.mubr.bf16.mxu0 0
      %2963 = vmatmul.mubr.bf16.gmra.mrb[0].mxu0 %v2843
      %v2964 = vpop.f32.mrb[0].mxu0
      %v2965 = vadd.f32 %v2880, %v2964
      %v2966 = vpop.f32.mrb[0].mxu0
      %v2967 = vpop.f32.mrb[0].mxu0
      %v2968 = vadd.f32 %v2880, %v2967
      %v2969 = vpop.f32.mrb[0].mxu0
      %2970 = vmatprep.mubr.bf16.mxu0 0
      %2971 = vmatmul.mubr.bf16.gmra.mrb[0].mxu0 %v2844
      %v2972 = vpop.f32.mrb[0].mxu0
      %v2973 = vadd.f32 %v2880, %v2972
      %v2974 = vpop.f32.mrb[0].mxu0
      %v2975 = vpop.f32.mrb[0].mxu0
      %v2976 = vadd.f32 %v2880, %v2975
      %v2977 = vpop.f32.mrb[0].mxu0
      %2978 = vmatprep.mubr.bf16.mxu0 0
      %2979 = vmatmul.mubr.bf16.gmra.mrb[0].mxu0 %v2845
      %v2980 = vpop.f32.mrb[0].mxu0
      %v2981 = vadd.f32 %v2880, %v2980
      %v2982 = vpop.f32.mrb[0].mxu0
      %v2983 = vpop.f32.mrb[0].mxu0
      %v2984 = vadd.f32 %v2880, %v2983
      %v2985 = vpop.f32.mrb[0].mxu0
      %2986 = vmatprep.mubr.bf16.mxu0 0
      %2987 = vmatmul.mubr.bf16.gmra.mrb[0].mxu0 %v2846
      %v2988 = vpop.f32.mrb[0].mxu0
      %v2989 = vadd.f32 %v2880, %v2988
      %v2990 = vpop.f32.mrb[0].mxu0
      %v2991 = vpop.f32.mrb[0].mxu0
      %v2992 = vadd.f32 %v2880, %v2991
      %v2993 = vpop.f32.mrb[0].mxu0
      %2994 = vmatprep.mubr.bf16.mxu0 0
      %2995 = vmatmul.mubr.bf16.gmra.mrb[0].mxu0 %v2847
      %v2996 = vpop.f32.mrb[0].mxu0
      %v2997 = vadd.f32 %v2880, %v2996
      %v2998 = vpop.f32.mrb[0].mxu0
      %v2999 = vpop.f32.mrb[0].mxu0
      %v3000 = vadd.f32 %v2880, %v2999
      %v3001 = vpop.f32.mrb[0].mxu0
      %3002 = vmatprep.mubr.bf16.mxu0 0
      %3003 = vmatmul.mubr.bf16.gmra.mrb[0].mxu0 %v2848
      %v3004 = vpop.f32.mrb[0].mxu0
      %v3005 = vadd.f32 %v2880, %v3004
      %v3006 = vpop.f32.mrb[0].mxu0
      %v3007 = vpop.f32.mrb[0].mxu0
      %v3008 = vadd.f32 %v2880, %v3007
      %v3009 = vpop.f32.mrb[0].mxu0
      %3010 = vmatprep.mubr.bf16.mxu0 0
      %3011 = vmatmul.mubr.bf16.gmra.mrb[0].mxu0 %v2849
      %v3012 = vpop.f32.mrb[0].mxu0
      %v3013 = vadd.f32 %v2880, %v3012
      %v3014 = vpop.f32.mrb[0].mxu0
      %v3015 = vpop.f32.mrb[0].mxu0
      %v3016 = vadd.f32 %v2880, %v3015
      %v3017 = vpop.f32.mrb[0].mxu0
      %3018 = vmatprep.mubr.bf16.mxu0 0
      %3019 = vmatmul.mubr.bf16.gmra.mrb[0].mxu0 %v2850
      %v3020 = vpop.f32.mrb[0].mxu0
      %v3021 = vadd.f32 %v2880, %v3020
      %v3022 = vpop.f32.mrb[0].mxu0
      %v3023 = vpop.f32.mrb[0].mxu0
      %v3024 = vadd.f32 %v2880, %v3023
      %v3025 = vpop.f32.mrb[0].mxu0
      %3026 = vmatprep.mubr.bf16.mxu0 0
      %3027 = vmatmul.mubr.bf16.gmra.mrb[0].mxu0 %v2851
      %v3028 = vpop.f32.mrb[0].mxu0
      %v3029 = vadd.f32 %v2880, %v3028
      %v3030 = vpop.f32.mrb[0].mxu0
      %v3031 = vpop.f32.mrb[0].mxu0
      %v3032 = vadd.f32 %v2880, %v3031
      %v3033 = vpop.f32.mrb[0].mxu0
      %3034 = vmatprep.mubr.bf16.mxu0 0
      %3035 = vmatmul.mubr.bf16.gmra.mrb[0].mxu0 %v2852
      %v3036 = vpop.f32.mrb[0].mxu0
      %v3037 = vadd.f32 %v2880, %v3036
      %v3038 = vpop.f32.mrb[0].mxu0
      %v3039 = vpop.f32.mrb[0].mxu0
      %v3040 = vadd.f32 %v2880, %v3039
      %v3041 = vpop.f32.mrb[0].mxu0
      %3042 = vmatprep.mubr.bf16.mxu0 0
      %3043 = vmatmul.mubr.bf16.gmra.mrb[0].mxu0 %v2853
      %v3044 = vpop.f32.mrb[0].mxu0
      %v3045 = vadd.f32 %v2880, %v3044
      %v3046 = vpop.f32.mrb[0].mxu0
      %v3047 = vpop.f32.mrb[0].mxu0
      %v3048 = vadd.f32 %v2880, %v3047
      %v3049 = vpop.f32.mrb[0].mxu0
      %3050 = vmatprep.mubr.bf16.mxu0 0
      %3051 = vmatmul.mubr.bf16.gmra.mrb[0].mxu0 %v2854
      %v3052 = vpop.f32.mrb[0].mxu0
      %v3053 = vadd.f32 %v2880, %v3052
      %v3054 = vpop.f32.mrb[0].mxu0
      %v3055 = vpop.f32.mrb[0].mxu0
      %v3056 = vadd.f32 %v2880, %v3055
      %v3057 = vpop.f32.mrb[0].mxu0
      %3058 = vmatprep.mubr.bf16.mxu0 0
      %3059 = vmatmul.mubr.bf16.gmra.mrb[0].mxu0 %v2855
      %v3060 = vpop.f32.mrb[0].mxu0
      %v3061 = vadd.f32 %v2880, %v3060
      %v3062 = vpop.f32.mrb[0].mxu0
      %v3063 = vpop.f32.mrb[0].mxu0
      %v3064 = vadd.f32 %v2880, %v3063
      %v3065 = vpop.f32.mrb[0].mxu0
      %3066 = vmatprep.mubr.bf16.mxu0 0
      %3067 = vmatmul.mubr.bf16.gmra.mrb[0].mxu0 %v2856
      %v3068 = vpop.f32.mrb[0].mxu0
      %v3069 = vadd.f32 %v2880, %v3068
      %v3070 = vpop.f32.mrb[0].mxu0
      %v3071 = vpop.f32.mrb[0].mxu0
      %v3072 = vadd.f32 %v2880, %v3071
      %v3073 = vpop.f32.mrb[0].mxu0
      %3074 = vmatprep.mubr.bf16.mxu0 0
      %3075 = vmatmul.mubr.bf16.gmra.mrb[0].mxu0 %v2857
      %v3076 = vpop.f32.mrb[0].mxu0
      %v3077 = vadd.f32 %v2880, %v3076
      %v3078 = vpop.f32.mrb[0].mxu0
      %v3079 = vpop.f32.mrb[0].mxu0
      %v3080 = vadd.f32 %v2880, %v3079
      %v3081 = vpop.f32.mrb[0].mxu0
      %3082 = vmatprep.mubr.bf16.mxu0 0
      %3083 = vmatmul.mubr.bf16.gmra.mrb[0].mxu0 %v2858
      %v3084 = vpop.f32.mrb[0].mxu0
      %v3085 = vadd.f32 %v2880, %v3084
      %v3086 = vpop.f32.mrb[0].mxu0
      %v3087 = vpop.f32.mrb[0].mxu0
      %v3088 = vadd.f32 %v2880, %v3087
      %v3089 = vpop.f32.mrb[0].mxu0
      %3090 = vdwg.mxu0
      %3091 = vst [vmem:[#allocation14] sm:$0xff] %v2965
      %3092 = vst [vmem:[#allocation14 + $0x8] sm:$0xff] %v2968
      %3093 = vst [vmem:[#allocation14 + $0x10] sm:$0xff] %v2973
      %3094 = vst [vmem:[#allocation14 + $0x18] sm:$0xff] %v2976
      %3095 = vst [vmem:[#allocation14 + $0x20] sm:$0xff] %v2981
      %3096 = vst [vmem:[#allocation14 + $0x28] sm:$0xff] %v2984
      %3097 = vst [vmem:[#allocation14 + $0x30] sm:$0xff] %v2989
      %3098 = vst [vmem:[#allocation14 + $0x38] sm:$0xff] %v2992
      %3099 = vst [vmem:[#allocation14 + $0x40] sm:$0xff] %v2997
      %3100 = vst [vmem:[#allocation14 + $0x48] sm:$0xff] %v3000
      %3101 = vst [vmem:[#allocation14 + $0x50] sm:$0xff] %v3005
      %3102 = vst [vmem:[#allocation14 + $0x58] sm:$0xff] %v3008
      %3103 = vst [vmem:[#allocation14 + $0x60] sm:$0xff] %v3013
      %3104 = vst [vmem:[#allocation14 + $0x68] sm:$0xff] %v3016
      %3105 = vst [vmem:[#allocation14 + $0x70] sm:$0xff] %v3021
      %3106 = vst [vmem:[#allocation14 + $0x78] sm:$0xff] %v3024
      %3107 = vst [vmem:[#allocation14 + $0x80] sm:$0xff] %v3029
      %3108 = vst [vmem:[#allocation14 + $0x88] sm:$0xff] %v3032
      %3109 = vst [vmem:[#allocation14 + $0x90] sm:$0xff] %v3037
      %3110 = vst [vmem:[#allocation14 + $0x98] sm:$0xff] %v3040
      %3111 = vst [vmem:[#allocation14 + $0xa0] sm:$0xff] %v3045
      %3112 = vst [vmem:[#allocation14 + $0xa8] sm:$0xff] %v3048
      %3113 = vst [vmem:[#allocation14 + $0xb0] sm:$0xff] %v3053
      %3114 = vst [vmem:[#allocation14 + $0xb8] sm:$0xff] %v3056
      %3115 = vst [vmem:[#allocation14 + $0xc0] sm:$0xff] %v3061
      %3116 = vst [vmem:[#allocation14 + $0xc8] sm:$0xff] %v3064
      %3117 = vst [vmem:[#allocation14 + $0xd0] sm:$0xff] %v3069
      %3118 = vst [vmem:[#allocation14 + $0xd8] sm:$0xff] %v3072
      %3119 = vst [vmem:[#allocation14 + $0xe0] sm:$0xff] %v3077
      %3120 = vst [vmem:[#allocation14 + $0xe8] sm:$0xff] %v3080
      %3121 = vst [vmem:[#allocation14 + $0xf0] sm:$0xff] %v3085
      %3122 = vst [vmem:[#allocation14 + $0xf8] sm:$0xff] %v3088
    $region49: #{tpu_custom_call.1} parent=1 // pred_fallthru
      _
    %p3123 = scmp.le.s32.totalorder %s176, 0
    %p3124 = pnand %p178, %p3123
    %p3125 = pneg %p3124
    // Predicated region
    $region50: #{tpu_custom_call.1} parent=1 // pred_check
      _
    $region51: #{tpu_custom_call.1} parent=1 // pred_check_branch
      %3127 = sbr.rel (%p3124) target = $region53
    $region52: #{tpu_custom_call.1} parent=1 // pred_region
      %v3128 = vld [vmem:[%s9] sm:$0x1]
      %v3130 = vlaneseq
      %v3131 = vshrl.u32 %v3130, 7
      %v3132 = vsub.s32 0, %v3131
      %v3133 = vrot.slane %v3128, %v3132
      %3135 = vst [vmem:[#allocation14] sm:$0xff] %v3133
      %3136 = vst [vmem:[#allocation14 + $0x8] sm:$0xff] %v3133
      %3137 = vst [vmem:[#allocation14 + $0x10] sm:$0xff] %v3133
      %3138 = vst [vmem:[#allocation14 + $0x18] sm:$0xff] %v3133
      %3139 = vst [vmem:[#allocation14 + $0x20] sm:$0xff] %v3133
      %3140 = vst [vmem:[#allocation14 + $0x28] sm:$0xff] %v3133
      %3141 = vst [vmem:[#allocation14 + $0x30] sm:$0xff] %v3133
      %3142 = vst [vmem:[#allocation14 + $0x38] sm:$0xff] %v3133
      %3143 = vst [vmem:[#allocation14 + $0x40] sm:$0xff] %v3133
      %3144 = vst [vmem:[#allocation14 + $0x48] sm:$0xff] %v3133
      %3145 = vst [vmem:[#allocation14 + $0x50] sm:$0xff] %v3133
      %3146 = vst [vmem:[#allocation14 + $0x58] sm:$0xff] %v3133
      %3147 = vst [vmem:[#allocation14 + $0x60] sm:$0xff] %v3133
      %3148 = vst [vmem:[#allocation14 + $0x68] sm:$0xff] %v3133
      %3149 = vst [vmem:[#allocation14 + $0x70] sm:$0xff] %v3133
      %3150 = vst [vmem:[#allocation14 + $0x78] sm:$0xff] %v3133
      %3151 = vst [vmem:[#allocation14 + $0x80] sm:$0xff] %v3133
      %3152 = vst [vmem:[#allocation14 + $0x88] sm:$0xff] %v3133
      %3153 = vst [vmem:[#allocation14 + $0x90] sm:$0xff] %v3133
      %3154 = vst [vmem:[#allocation14 + $0x98] sm:$0xff] %v3133
      %3155 = vst [vmem:[#allocation14 + $0xa0] sm:$0xff] %v3133
      %3156 = vst [vmem:[#allocation14 + $0xa8] sm:$0xff] %v3133
      %3157 = vst [vmem:[#allocation14 + $0xb0] sm:$0xff] %v3133
      %3158 = vst [vmem:[#allocation14 + $0xb8] sm:$0xff] %v3133
      %3159 = vst [vmem:[#allocation14 + $0xc0] sm:$0xff] %v3133
      %3160 = vst [vmem:[#allocation14 + $0xc8] sm:$0xff] %v3133
      %3161 = vst [vmem:[#allocation14 + $0xd0] sm:$0xff] %v3133
      %3162 = vst [vmem:[#allocation14 + $0xd8] sm:$0xff] %v3133
      %3163 = vst [vmem:[#allocation14 + $0xe0] sm:$0xff] %v3133
      %3164 = vst [vmem:[#allocation14 + $0xe8] sm:$0xff] %v3133
      %3165 = vst [vmem:[#allocation14 + $0xf0] sm:$0xff] %v3133
      %3166 = vst [vmem:[#allocation14 + $0xf8] sm:$0xff] %v3133
    $region53: #{tpu_custom_call.1} parent=1 // pred_fallthru
      _
    // Predicated region
    $region54: #{tpu_custom_call.1} parent=1 // pred_check
      _
    $region55: #{tpu_custom_call.1} parent=1 // pred_check_branch
      %3168 = sbr.rel (0) target = $region57
    $region56: #{tpu_custom_call.1} parent=1 // pred_region
      %s3170 = ssub.s32 4096, 4096
      %3171 = vsyncadd [#allocation11], %s3170
      %s3172 = sshll.u32 [#allocation14], 4
      %s3173 = int_to_ptr.vmem [resolvable:$true] %s3172
      %3178 = dma.vmem_to_hbm [thread:$0]  %s3173, 4096, %s10, [#allocation11], 128, 128, 8
    $region57: #{tpu_custom_call.1} parent=1 // pred_fallthru
      _
    // Predicated region
    $region58: #{tpu_custom_call.1} parent=1 // pred_check
      _
    $region59: #{tpu_custom_call.1} parent=1 // pred_check_branch
      %3180 = sbr.rel (0) target = $region61
    $region60: #{tpu_custom_call.1} parent=1 // pred_region
      %3181 = dma.done [#allocation11], 4096
    $region61: #{tpu_custom_call.1} parent=1 // pred_fallthru
      _
    %3182 = vsyncpa [#allocation10], 1
    %3183 = vsyncpa [#allocation13], 1
    %3184 = vsyncpa [#allocation11], 1

</llo_original>
